<compile_context>
chip_gen: v6e
topology: v6e:2x2x1
jax: 0.10.0
libtpu: 0.0.40
codegen_flags: <defaults>
</compile_context>

<pallas_src>
import numpy as np
import jax
import jax.numpy as jnp
from jax.experimental import pallas as pl
from jax.experimental.pallas import tpu as pltpu

EPS = 1e-5
LANE = 128


def _round_up(n, m):
    return ((n + m - 1) // m) * m


# ----------------------------------------------------------------------------
# Host-side weight packing: output-row-pair matrices for stride-2 K=3 ConvT.
#
# Row-block layout of an activation feature-map row: index = iw * Cin + ic,
# padded to 128 lanes.  Output row-pair (2j, 2j+1) layout: [row 2j | row 2j+1],
# each 128 lanes with index ow * Cout + oc.
# ----------------------------------------------------------------------------
def _pair_matrix(W, Win, Wout, bn_scale, first_layer):
    """W: (Cin, Cout, 3, 3) PyTorch ConvTranspose2d weight.
    first_layer=True  -> padding=0; the pair reads input rows [j-1, j].
    first_layer=False -> padding=1, output_padding=1; the pair reads rows [j, j+1]."""
    Cin, Cout, K, _ = W.shape
    M = np.zeros((2 * LANE, 2 * LANE), np.float32)
    for ic in range(Cin):
        for oc in range(Cout):
            for kh in range(K):
                for kw in range(K):
                    wgt = W[ic, oc, kh, kw] * bn_scale[oc]
                    for iw in range(Win):
                        ow = 2 * iw + kw if first_layer else 2 * iw - 1 + kw
                        if not (0 <= ow < Wout):
                            continue
                        r = iw * Cin + ic
                        c = ow * Cout + oc
                        if first_layer:
                            # oh = 2*ih + kh ; input slots [in_{j-1} | in_j]
                            if kh == 2:
                                M[r, c] += wgt                    # in_{j-1} -> out_2j
                            elif kh == 0:
                                M[LANE + r, c] += wgt             # in_j     -> out_2j
                            else:
                                M[LANE + r, LANE + c] += wgt      # in_j     -> out_2j+1
                        else:
                            # oh = 2*ih - 1 + kh ; input slots [in_j | in_{j+1}]
                            if kh == 1:
                                M[r, c] += wgt                    # in_j     -> out_2j
                            elif kh == 2:
                                M[r, LANE + c] += wgt             # in_j     -> out_2j+1
                            else:
                                M[LANE + r, LANE + c] += wgt      # in_{j+1} -> out_2j+1
    return M


def _pair_shift(shift_c, Wout):
    """Per-channel shift -> (1, 256) per-pair add in (ow, oc) layout (pads stay 0)."""
    Cout = shift_c.shape[0]
    t = np.zeros((LANE,), np.float32)
    for ow in range(Wout):
        t[ow * Cout:ow * Cout + Cout] = shift_c
    return np.concatenate([t, t])[None, :].astype(np.float32)


def pack_params(p):
    w1 = p["w1"]
    b1 = p["b1"][None, :]

    # Second Linear writes its 288 outputs, unflattened as (32, 3, 3), straight into
    # the row-block layout [zero | row0 | row1 | row2 | zero] (each row (iw, ic), 128-pad).
    w2 = np.zeros((128, 5 * LANE), np.float32)
    b2 = np.zeros((1, 5 * LANE), np.float32)
    for ic in range(32):
        for ih in range(3):
            for iw in range(3):
                src = ic * 9 + ih * 3 + iw                 # nn.Unflatten(1, (32,3,3))
                dst = (1 + ih) * LANE + iw * 32 + ic
                w2[:, dst] = p["w2"][:, src]
                b2[0, dst] = p["b2"][src]

    # Eval-mode BatchNorm folded: scale into pair-matrix columns, shift (+conv bias) added.
    s1 = p["g1"] / np.sqrt(p["v1"] + EPS)
    t1 = s1 * (p["bc1"] - p["mu1"]) + p["be1"]
    s2 = p["g2"] / np.sqrt(p["v2"] + EPS)
    t2 = s2 * (p["bc2"] - p["mu2"]) + p["be2"]

    A = _pair_matrix(p["wc1"], Win=3, Wout=7, bn_scale=s1, first_layer=True)
    B = _pair_matrix(p["wc2"], Win=7, Wout=14, bn_scale=s2, first_layer=False)
    C = _pair_matrix(p["wc3"], Win=14, Wout=28,
                     bn_scale=np.ones(3, np.float32), first_layer=False)
    tA = _pair_shift(t1, Wout=7)
    tB = _pair_shift(t2, Wout=14)
    tC = _pair_shift(p["bc3"], Wout=28)

    bf16 = lambda a: jnp.asarray(a, jnp.bfloat16)   # weights: native MXU rate
    f32 = lambda a: jnp.asarray(a, jnp.float32)     # biases/shifts stay f32
    return (bf16(w1), f32(b1), bf16(w2), f32(b2),
            bf16(A), f32(tA), bf16(B), f32(tB), bf16(C), f32(tC))


# ----------------------------------------------------------------------------
# Pallas kernel: one (TM, feat) batch tile; all weights resident in VMEM.
# ----------------------------------------------------------------------------
def decoder_kernel(x_ref, w1_ref, b1_ref, w2_ref, b2_ref,
                   a_ref, ta_ref, b_ref, tb_ref, c_ref, tc_ref, o_ref):
    bf16 = jnp.bfloat16
    tm = x_ref.shape[0]

    # decoder_lin: Linear(E,128) -> ReLU -> Linear(128,288) -> ReLU (already in row-block layout)
    x = x_ref[...].astype(bf16)
    h = jnp.dot(x, w1_ref[...], preferred_element_type=jnp.float32) + b1_ref[...]
    h = jnp.maximum(h, 0.0).astype(bf16)                                 # (TM, 128)
    h = jnp.dot(h, w2_ref[...], preferred_element_type=jnp.float32) + b2_ref[...]
    h1 = jnp.maximum(h, 0.0).astype(bf16)                                # (TM, 640) [0|r0|r1|r2|0]

    # ConvT(32->16, 3, s=2) + BN + ReLU : 4 output-row-pair matmuls -> rows 0..6 + zero halo
    a = a_ref[...]
    ta = ta_ref[...]
    blocks = []
    for j in range(4):
        c = jnp.dot(h1[:, j * 128:(j + 2) * 128], a,
                    preferred_element_type=jnp.float32) + ta
        c = jnp.maximum(c, 0.0).astype(bf16)
        if j < 3:
            blocks.append(c)
        else:
            blocks.append(c[:, :128])                      # row 6 only
            blocks.append(jnp.zeros((tm, 128), bf16))      # zero halo row 7
    h2 = jnp.concatenate(blocks, axis=1)                   # (TM, 8*128)

    # ConvT(16->8, 3, s=2, p=1, op=1) + BN + ReLU : 7 pair matmuls -> rows 0..13 + zero halo
    b = b_ref[...]
    tb = tb_ref[...]
    blocks = []
    for j in range(7):
        c = jnp.dot(h2[:, j * 128:(j + 2) * 128], b,
                    preferred_element_type=jnp.float32) + tb
        blocks.append(jnp.maximum(c, 0.0).astype(bf16))
    blocks.append(jnp.zeros((tm, 128), bf16))              # zero halo row 14
    h3 = jnp.concatenate(blocks, axis=1)                   # (TM, 15*128)

    # ConvT(8->3, 3, s=2, p=1, op=1) + bias, sigmoid : 14 pair matmuls, bf16 stores
    cm = c_ref[...]
    tc = tc_ref[...]
    for j in range(14):
        z = jnp.dot(h3[:, j * 128:(j + 2) * 128], cm,
                    preferred_element_type=jnp.float32) + tc
        # sigmoid(z) = 0.5*(tanh(z/2)+1): single EUP op per element.
        o_ref[:, j * 256:(j + 1) * 256] = (0.5 * (jnp.tanh(0.5 * z) + 1.0)).astype(bf16)


def decoder_forward(x, params):
    n, e = x.shape
    out_w = 28 * LANE          # 28 output rows, each a 128-lane (ow, oc) block

    # Batch tiling: >=2 tiles when possible (dual-TC v7x), minimal padding, cap 256.
    if n <= 8:
        tm = _round_up(max(n, 1), 8)
    else:
        tiles = max(2, -(-n // 256))
        tm = min(256, _round_up(-(-n // tiles), 8))
    n_pad = _round_up(n, tm)
    if n_pad != n:
        x = jnp.pad(x, ((0, n_pad - n), (0, 0)))
    grid = (n_pad // tm,)

    # Constant index_maps: weights/shifts stay resident in VMEM across grid steps.
    weight_specs = [pl.BlockSpec(p.shape, lambda i: (0, 0)) for p in params]

    out = pl.pallas_call(
        decoder_kernel,
        out_shape=jax.ShapeDtypeStruct((n_pad, out_w), jnp.bfloat16),
        grid=grid,
        in_specs=[pl.BlockSpec((tm, e), lambda i: (i, 0))] + weight_specs,
        out_specs=pl.BlockSpec((tm, out_w), lambda i: (i, 0)),
        compiler_params=pltpu.CompilerParams(
            dimension_semantics=("parallel",),
            vmem_limit_bytes=32 << 20,
        ),
    )(x, *params)

    # (n, 28, 128) row blocks -> keep the 84 real (ow, oc) lanes -> NCHW f32.
    out = out[:n].reshape(n, 28, LANE)[:, :, :3 * 28]
    out = out.reshape(n, 28, 28, 3).transpose(0, 3, 1, 2).astype(jnp.float32)
    return out


# ----------------------------------------------------------------------------
# Deterministic synthetic parameters (matches the nn.Module __init__ shapes).
# ----------------------------------------------------------------------------
def init_raw_params(encoded_space_dim):
    rng = np.random.RandomState(0)

    def rnd(shape, fan_in):
        return (rng.standard_normal(shape) / np.sqrt(fan_in)).astype(np.float32)

    p = {}
    p["w1"] = rnd((encoded_space_dim, 128), encoded_space_dim)   # (in, out)
    p["b1"] = rnd((128,), encoded_space_dim)
    p["w2"] = rnd((128, 288), 128)
    p["b2"] = rnd((288,), 128)
    p["wc1"] = rnd((32, 16, 3, 3), 32 * 9); p["bc1"] = rnd((16,), 32 * 9)
    p["wc2"] = rnd((16, 8, 3, 3), 16 * 9);  p["bc2"] = rnd((8,), 16 * 9)
    p["wc3"] = rnd((8, 3, 3, 3), 8 * 9);    p["bc3"] = rnd((3,), 8 * 9)
    p["g1"] = (1.0 + 0.1 * rng.standard_normal(16)).astype(np.float32)
    p["be1"] = (0.1 * rng.standard_normal(16)).astype(np.float32)
    p["mu1"] = np.zeros(16, np.float32); p["v1"] = np.ones(16, np.float32)
    p["g2"] = (1.0 + 0.1 * rng.standard_normal(8)).astype(np.float32)
    p["be2"] = (0.1 * rng.standard_normal(8)).astype(np.float32)
    p["mu2"] = np.zeros(8, np.float32); p["v2"] = np.ones(8, np.float32)
    return p


# Pure-numpy reference (eval-mode BatchNorm) for a correctness check.
def reference_forward_np(x, p):
    def relu(a):
        return np.maximum(a, 0.0)

    def convT(a, W, b, stride, padding, output_padding):
        N, Cin, H, Wd = a.shape
        _, Cout, K, _ = W.shape
        Ho = (H - 1) * stride - 2 * padding + K + output_padding
        Wo = (Wd - 1) * stride - 2 * padding + K + output_padding
        out = np.zeros((N, Cout, Ho, Wo), np.float32)
        for ih in range(H):
            for iw in range(Wd):
                for kh in range(K):
                    for kw in range(K):
                        oh = ih * stride - padding + kh
                        ow = iw * stride - padding + kw
                        if 0 <= oh < Ho and 0 <= ow < Wo:
                            out[:, :, oh, ow] += a[:, :, ih, iw] @ W[:, :, kh, kw]
        return out + b[None, :, None, None]

    def bn(a, g, be, mu, v):
        return (a - mu[None, :, None, None]) / np.sqrt(v[None, :, None, None] + EPS) \
            * g[None, :, None, None] + be[None, :, None, None]

    h = relu(x @ p["w1"] + p["b1"])
    h = relu(h @ p["w2"] + p["b2"])
    h = h.reshape(-1, 32, 3, 3)
    h = relu(bn(convT(h, p["wc1"], p["bc1"], 2, 0, 0), p["g1"], p["be1"], p["mu1"], p["v1"]))
    h = relu(bn(convT(h, p["wc2"], p["bc2"], 2, 1, 1), p["g2"], p["be2"], p["mu2"], p["v2"]))
    h = convT(h, p["wc3"], p["bc3"], 2, 1, 1)
    return 1.0 / (1.0 + np.exp(-h))


if __name__ == "__main__":
    N, ENCODED_DIM = 2, 32
    key = jax.random.PRNGKey(0)
    x = jax.random.normal(key, (N, ENCODED_DIM), dtype=jnp.float32)

    raw = init_raw_params(ENCODED_DIM)
    params = pack_params(raw)

    out = decoder_forward(x, params)
    jax.block_until_ready(out)

    assert out.shape == (N, 3, 28, 28), out.shape
    out_np = np.asarray(out)
    assert np.all(np.isfinite(out_np))
    assert np.all((out_np >= 0.0) & (out_np <= 1.0))       # sigmoid range

    ref = reference_forward_np(np.asarray(x), raw)
    max_err = float(np.max(np.abs(out_np - ref)))
    assert max_err < 2e-2, f"max abs error vs reference = {max_err}"

    print("KERNEL_OK")
</pallas_src>

<mosaic_0001>
module attributes {stable_mosaic.version = 11 : i64} {
  func.func @decoder_kernel(%arg0: i32, %arg1: memref<8x32xf32, #tpu.memory_space<vmem>>, %arg2: memref<32x128xbf16, #tpu.memory_space<vmem>>, %arg3: memref<1x128xf32, #tpu.memory_space<vmem>>, %arg4: memref<128x640xbf16, #tpu.memory_space<vmem>>, %arg5: memref<1x640xf32, #tpu.memory_space<vmem>>, %arg6: memref<256x256xbf16, #tpu.memory_space<vmem>>, %arg7: memref<1x256xf32, #tpu.memory_space<vmem>>, %arg8: memref<256x256xbf16, #tpu.memory_space<vmem>>, %arg9: memref<1x256xf32, #tpu.memory_space<vmem>>, %arg10: memref<256x256xbf16, #tpu.memory_space<vmem>>, %arg11: memref<1x256xf32, #tpu.memory_space<vmem>>, %arg12: memref<8x3584xbf16, #tpu.memory_space<vmem>>) attributes {dimension_semantics = [#tpu.dimension_semantics<parallel>], iteration_bounds = array<i64: 1>, scalar_prefetch = 0 : i64, scratch_operands = 0 : i64, tpu.core_type = #tpu.core_type<tc>, window_params = [{transform_indices = @transform_0, window_bounds = array<i64: 8, 32>}, {pipeline_mode = #tpu.pipeline_mode<synchronous>, transform_indices = @transform_1, window_bounds = array<i64: 32, 128>}, {pipeline_mode = #tpu.pipeline_mode<synchronous>, transform_indices = @transform_2, window_bounds = array<i64: 1, 128>}, {pipeline_mode = #tpu.pipeline_mode<synchronous>, transform_indices = @transform_3, window_bounds = array<i64: 128, 640>}, {pipeline_mode = #tpu.pipeline_mode<synchronous>, transform_indices = @transform_4, window_bounds = array<i64: 1, 640>}, {pipeline_mode = #tpu.pipeline_mode<synchronous>, transform_indices = @transform_5, window_bounds = array<i64: 256, 256>}, {pipeline_mode = #tpu.pipeline_mode<synchronous>, transform_indices = @transform_6, window_bounds = array<i64: 1, 256>}, {pipeline_mode = #tpu.pipeline_mode<synchronous>, transform_indices = @transform_7, window_bounds = array<i64: 256, 256>}, {pipeline_mode = #tpu.pipeline_mode<synchronous>, transform_indices = @transform_8, window_bounds = array<i64: 1, 256>}, {pipeline_mode = #tpu.pipeline_mode<synchronous>, transform_indices = @transform_9, window_bounds = array<i64: 256, 256>}, {pipeline_mode = #tpu.pipeline_mode<synchronous>, transform_indices = @transform_10, window_bounds = array<i64: 1, 256>}, {transform_indices = @transform_11, window_bounds = array<i64: 8, 3584>}]} {
    %c0 = arith.constant 0 : index
    %c0_0 = arith.constant 0 : index
    %0 = vector.load %arg1[%c0, %c0_0] : memref<8x32xf32, #tpu.memory_space<vmem>>, vector<8x32xf32>
    %1 = arith.truncf %0 : vector<8x32xf32> to vector<8x32xbf16>
    %c0_1 = arith.constant 0 : index
    %c0_2 = arith.constant 0 : index
    %2 = vector.load %arg2[%c0_1, %c0_2] : memref<32x128xbf16, #tpu.memory_space<vmem>>, vector<32x128xbf16>
    %cst = arith.constant dense<0.000000e+00> : vector<8x128xf32>
    %3 = tpu.matmul %1, %2, %cst {dimension_numbers = #tpu.dot_dimension_numbers<[1], [0], [0], [1], [0, 0, 1, 1], [], []>} : vector<8x32xbf16>, vector<32x128xbf16>, vector<8x128xf32> -> vector<8x128xf32>
    %c0_3 = arith.constant 0 : index
    %c0_4 = arith.constant 0 : index
    %4 = vector.load %arg3[%c0_3, %c0_4] : memref<1x128xf32, #tpu.memory_space<vmem>>, vector<1x128xf32>
    %5 = vector.broadcast %4 : vector<1x128xf32> to vector<8x128xf32>
    %6 = arith.addf %3, %5 : vector<8x128xf32>
    %cst_5 = arith.constant 0.000000e+00 : f32
    %7 = vector.broadcast %cst_5 : f32 to vector<8x128xf32>
    %8 = arith.maximumf %6, %7 : vector<8x128xf32>
    %9 = arith.truncf %8 : vector<8x128xf32> to vector<8x128xbf16>
    %c0_6 = arith.constant 0 : index
    %c0_7 = arith.constant 0 : index
    %10 = vector.load %arg4[%c0_6, %c0_7] : memref<128x640xbf16, #tpu.memory_space<vmem>>, vector<128x640xbf16>
    %cst_8 = arith.constant dense<0.000000e+00> : vector<8x640xf32>
    %11 = tpu.matmul %9, %10, %cst_8 {dimension_numbers = #tpu.dot_dimension_numbers<[1], [0], [0], [1], [0, 0, 1, 1], [], []>} : vector<8x128xbf16>, vector<128x640xbf16>, vector<8x640xf32> -> vector<8x640xf32>
    %c0_9 = arith.constant 0 : index
    %c0_10 = arith.constant 0 : index
    %12 = vector.load %arg5[%c0_9, %c0_10] : memref<1x640xf32, #tpu.memory_space<vmem>>, vector<1x640xf32>
    %13 = vector.broadcast %12 : vector<1x640xf32> to vector<8x640xf32>
    %14 = arith.addf %11, %13 : vector<8x640xf32>
    %cst_11 = arith.constant 0.000000e+00 : f32
    %15 = vector.broadcast %cst_11 : f32 to vector<8x640xf32>
    %16 = arith.maximumf %14, %15 : vector<8x640xf32>
    %17 = arith.truncf %16 : vector<8x640xf32> to vector<8x640xbf16>
    %c0_12 = arith.constant 0 : index
    %c0_13 = arith.constant 0 : index
    %18 = vector.load %arg6[%c0_12, %c0_13] : memref<256x256xbf16, #tpu.memory_space<vmem>>, vector<256x256xbf16>
    %c0_14 = arith.constant 0 : index
    %c0_15 = arith.constant 0 : index
    %19 = vector.load %arg7[%c0_14, %c0_15] : memref<1x256xf32, #tpu.memory_space<vmem>>, vector<1x256xf32>
    %20 = vector.extract_strided_slice %17 {offsets = [0, 0], sizes = [8, 256], strides = [1, 1]} : vector<8x640xbf16> to vector<8x256xbf16>
    %cst_16 = arith.constant dense<0.000000e+00> : vector<8x256xf32>
    %21 = tpu.matmul %20, %18, %cst_16 {dimension_numbers = #tpu.dot_dimension_numbers<[1], [0], [0], [1], [0, 0, 1, 1], [], []>} : vector<8x256xbf16>, vector<256x256xbf16>, vector<8x256xf32> -> vector<8x256xf32>
    %22 = vector.broadcast %19 : vector<1x256xf32> to vector<8x256xf32>
    %23 = arith.addf %21, %22 : vector<8x256xf32>
    %cst_17 = arith.constant 0.000000e+00 : f32
    %24 = vector.broadcast %cst_17 : f32 to vector<8x256xf32>
    %25 = arith.maximumf %23, %24 : vector<8x256xf32>
    %26 = arith.truncf %25 : vector<8x256xf32> to vector<8x256xbf16>
    %27 = vector.extract_strided_slice %17 {offsets = [0, 128], sizes = [8, 256], strides = [1, 1]} : vector<8x640xbf16> to vector<8x256xbf16>
    %cst_18 = arith.constant dense<0.000000e+00> : vector<8x256xf32>
    %28 = tpu.matmul %27, %18, %cst_18 {dimension_numbers = #tpu.dot_dimension_numbers<[1], [0], [0], [1], [0, 0, 1, 1], [], []>} : vector<8x256xbf16>, vector<256x256xbf16>, vector<8x256xf32> -> vector<8x256xf32>
    %29 = vector.broadcast %19 : vector<1x256xf32> to vector<8x256xf32>
    %30 = arith.addf %28, %29 : vector<8x256xf32>
    %cst_19 = arith.constant 0.000000e+00 : f32
    %31 = vector.broadcast %cst_19 : f32 to vector<8x256xf32>
    %32 = arith.maximumf %30, %31 : vector<8x256xf32>
    %33 = arith.truncf %32 : vector<8x256xf32> to vector<8x256xbf16>
    %34 = vector.extract_strided_slice %17 {offsets = [0, 256], sizes = [8, 256], strides = [1, 1]} : vector<8x640xbf16> to vector<8x256xbf16>
    %cst_20 = arith.constant dense<0.000000e+00> : vector<8x256xf32>
    %35 = tpu.matmul %34, %18, %cst_20 {dimension_numbers = #tpu.dot_dimension_numbers<[1], [0], [0], [1], [0, 0, 1, 1], [], []>} : vector<8x256xbf16>, vector<256x256xbf16>, vector<8x256xf32> -> vector<8x256xf32>
    %36 = vector.broadcast %19 : vector<1x256xf32> to vector<8x256xf32>
    %37 = arith.addf %35, %36 : vector<8x256xf32>
    %cst_21 = arith.constant 0.000000e+00 : f32
    %38 = vector.broadcast %cst_21 : f32 to vector<8x256xf32>
    %39 = arith.maximumf %37, %38 : vector<8x256xf32>
    %40 = arith.truncf %39 : vector<8x256xf32> to vector<8x256xbf16>
    %41 = vector.extract_strided_slice %17 {offsets = [0, 384], sizes = [8, 256], strides = [1, 1]} : vector<8x640xbf16> to vector<8x256xbf16>
    %cst_22 = arith.constant dense<0.000000e+00> : vector<8x256xf32>
    %42 = tpu.matmul %41, %18, %cst_22 {dimension_numbers = #tpu.dot_dimension_numbers<[1], [0], [0], [1], [0, 0, 1, 1], [], []>} : vector<8x256xbf16>, vector<256x256xbf16>, vector<8x256xf32> -> vector<8x256xf32>
    %43 = vector.broadcast %19 : vector<1x256xf32> to vector<8x256xf32>
    %44 = arith.addf %42, %43 : vector<8x256xf32>
    %cst_23 = arith.constant 0.000000e+00 : f32
    %45 = vector.broadcast %cst_23 : f32 to vector<8x256xf32>
    %46 = arith.maximumf %44, %45 : vector<8x256xf32>
    %47 = arith.truncf %46 : vector<8x256xf32> to vector<8x256xbf16>
    %48 = vector.extract_strided_slice %47 {offsets = [0, 0], sizes = [8, 128], strides = [1, 1]} : vector<8x256xbf16> to vector<8x128xbf16>
    %cst_24 = arith.constant 0.000000e+00 : bf16
    %49 = vector.broadcast %cst_24 : bf16 to vector<8x128xbf16>
    %50 = tpu.concatenate %26, %33, %40, %48, %49 in 1 : vector<8x256xbf16>, vector<8x256xbf16>, vector<8x256xbf16>, vector<8x128xbf16>, vector<8x128xbf16> -> vector<8x1024xbf16>
    %c0_25 = arith.constant 0 : index
    %c0_26 = arith.constant 0 : index
    %51 = vector.load %arg8[%c0_25, %c0_26] : memref<256x256xbf16, #tpu.memory_space<vmem>>, vector<256x256xbf16>
    %c0_27 = arith.constant 0 : index
    %c0_28 = arith.constant 0 : index
    %52 = vector.load %arg9[%c0_27, %c0_28] : memref<1x256xf32, #tpu.memory_space<vmem>>, vector<1x256xf32>
    %53 = vector.extract_strided_slice %50 {offsets = [0, 0], sizes = [8, 256], strides = [1, 1]} : vector<8x1024xbf16> to vector<8x256xbf16>
    %cst_29 = arith.constant dense<0.000000e+00> : vector<8x256xf32>
    %54 = tpu.matmul %53, %51, %cst_29 {dimension_numbers = #tpu.dot_dimension_numbers<[1], [0], [0], [1], [0, 0, 1, 1], [], []>} : vector<8x256xbf16>, vector<256x256xbf16>, vector<8x256xf32> -> vector<8x256xf32>
    %55 = vector.broadcast %52 : vector<1x256xf32> to vector<8x256xf32>
    %56 = arith.addf %54, %55 : vector<8x256xf32>
    %cst_30 = arith.constant 0.000000e+00 : f32
    %57 = vector.broadcast %cst_30 : f32 to vector<8x256xf32>
    %58 = arith.maximumf %56, %57 : vector<8x256xf32>
    %59 = arith.truncf %58 : vector<8x256xf32> to vector<8x256xbf16>
    %60 = vector.extract_strided_slice %50 {offsets = [0, 128], sizes = [8, 256], strides = [1, 1]} : vector<8x1024xbf16> to vector<8x256xbf16>
    %cst_31 = arith.constant dense<0.000000e+00> : vector<8x256xf32>
    %61 = tpu.matmul %60, %51, %cst_31 {dimension_numbers = #tpu.dot_dimension_numbers<[1], [0], [0], [1], [0, 0, 1, 1], [], []>} : vector<8x256xbf16>, vector<256x256xbf16>, vector<8x256xf32> -> vector<8x256xf32>
    %62 = vector.broadcast %52 : vector<1x256xf32> to vector<8x256xf32>
    %63 = arith.addf %61, %62 : vector<8x256xf32>
    %cst_32 = arith.constant 0.000000e+00 : f32
    %64 = vector.broadcast %cst_32 : f32 to vector<8x256xf32>
    %65 = arith.maximumf %63, %64 : vector<8x256xf32>
    %66 = arith.truncf %65 : vector<8x256xf32> to vector<8x256xbf16>
    %67 = vector.extract_strided_slice %50 {offsets = [0, 256], sizes = [8, 256], strides = [1, 1]} : vector<8x1024xbf16> to vector<8x256xbf16>
    %cst_33 = arith.constant dense<0.000000e+00> : vector<8x256xf32>
    %68 = tpu.matmul %67, %51, %cst_33 {dimension_numbers = #tpu.dot_dimension_numbers<[1], [0], [0], [1], [0, 0, 1, 1], [], []>} : vector<8x256xbf16>, vector<256x256xbf16>, vector<8x256xf32> -> vector<8x256xf32>
    %69 = vector.broadcast %52 : vector<1x256xf32> to vector<8x256xf32>
    %70 = arith.addf %68, %69 : vector<8x256xf32>
    %cst_34 = arith.constant 0.000000e+00 : f32
    %71 = vector.broadcast %cst_34 : f32 to vector<8x256xf32>
    %72 = arith.maximumf %70, %71 : vector<8x256xf32>
    %73 = arith.truncf %72 : vector<8x256xf32> to vector<8x256xbf16>
    %74 = vector.extract_strided_slice %50 {offsets = [0, 384], sizes = [8, 256], strides = [1, 1]} : vector<8x1024xbf16> to vector<8x256xbf16>
    %cst_35 = arith.constant dense<0.000000e+00> : vector<8x256xf32>
    %75 = tpu.matmul %74, %51, %cst_35 {dimension_numbers = #tpu.dot_dimension_numbers<[1], [0], [0], [1], [0, 0, 1, 1], [], []>} : vector<8x256xbf16>, vector<256x256xbf16>, vector<8x256xf32> -> vector<8x256xf32>
    %76 = vector.broadcast %52 : vector<1x256xf32> to vector<8x256xf32>
    %77 = arith.addf %75, %76 : vector<8x256xf32>
    %cst_36 = arith.constant 0.000000e+00 : f32
    %78 = vector.broadcast %cst_36 : f32 to vector<8x256xf32>
    %79 = arith.maximumf %77, %78 : vector<8x256xf32>
    %80 = arith.truncf %79 : vector<8x256xf32> to vector<8x256xbf16>
    %81 = vector.extract_strided_slice %50 {offsets = [0, 512], sizes = [8, 256], strides = [1, 1]} : vector<8x1024xbf16> to vector<8x256xbf16>
    %cst_37 = arith.constant dense<0.000000e+00> : vector<8x256xf32>
    %82 = tpu.matmul %81, %51, %cst_37 {dimension_numbers = #tpu.dot_dimension_numbers<[1], [0], [0], [1], [0, 0, 1, 1], [], []>} : vector<8x256xbf16>, vector<256x256xbf16>, vector<8x256xf32> -> vector<8x256xf32>
    %83 = vector.broadcast %52 : vector<1x256xf32> to vector<8x256xf32>
    %84 = arith.addf %82, %83 : vector<8x256xf32>
    %cst_38 = arith.constant 0.000000e+00 : f32
    %85 = vector.broadcast %cst_38 : f32 to vector<8x256xf32>
    %86 = arith.maximumf %84, %85 : vector<8x256xf32>
    %87 = arith.truncf %86 : vector<8x256xf32> to vector<8x256xbf16>
    %88 = vector.extract_strided_slice %50 {offsets = [0, 640], sizes = [8, 256], strides = [1, 1]} : vector<8x1024xbf16> to vector<8x256xbf16>
    %cst_39 = arith.constant dense<0.000000e+00> : vector<8x256xf32>
    %89 = tpu.matmul %88, %51, %cst_39 {dimension_numbers = #tpu.dot_dimension_numbers<[1], [0], [0], [1], [0, 0, 1, 1], [], []>} : vector<8x256xbf16>, vector<256x256xbf16>, vector<8x256xf32> -> vector<8x256xf32>
    %90 = vector.broadcast %52 : vector<1x256xf32> to vector<8x256xf32>
    %91 = arith.addf %89, %90 : vector<8x256xf32>
    %cst_40 = arith.constant 0.000000e+00 : f32
    %92 = vector.broadcast %cst_40 : f32 to vector<8x256xf32>
    %93 = arith.maximumf %91, %92 : vector<8x256xf32>
    %94 = arith.truncf %93 : vector<8x256xf32> to vector<8x256xbf16>
    %95 = vector.extract_strided_slice %50 {offsets = [0, 768], sizes = [8, 256], strides = [1, 1]} : vector<8x1024xbf16> to vector<8x256xbf16>
    %cst_41 = arith.constant dense<0.000000e+00> : vector<8x256xf32>
    %96 = tpu.matmul %95, %51, %cst_41 {dimension_numbers = #tpu.dot_dimension_numbers<[1], [0], [0], [1], [0, 0, 1, 1], [], []>} : vector<8x256xbf16>, vector<256x256xbf16>, vector<8x256xf32> -> vector<8x256xf32>
    %97 = vector.broadcast %52 : vector<1x256xf32> to vector<8x256xf32>
    %98 = arith.addf %96, %97 : vector<8x256xf32>
    %cst_42 = arith.constant 0.000000e+00 : f32
    %99 = vector.broadcast %cst_42 : f32 to vector<8x256xf32>
    %100 = arith.maximumf %98, %99 : vector<8x256xf32>
    %101 = arith.truncf %100 : vector<8x256xf32> to vector<8x256xbf16>
    %cst_43 = arith.constant 0.000000e+00 : bf16
    %102 = vector.broadcast %cst_43 : bf16 to vector<8x128xbf16>
    %103 = tpu.concatenate %59, %66, %73, %80, %87, %94, %101, %102 in 1 : vector<8x256xbf16>, vector<8x256xbf16>, vector<8x256xbf16>, vector<8x256xbf16>, vector<8x256xbf16>, vector<8x256xbf16>, vector<8x256xbf16>, vector<8x128xbf16> -> vector<8x1920xbf16>
    %c0_44 = arith.constant 0 : index
    %c0_45 = arith.constant 0 : index
    %104 = vector.load %arg10[%c0_44, %c0_45] : memref<256x256xbf16, #tpu.memory_space<vmem>>, vector<256x256xbf16>
    %c0_46 = arith.constant 0 : index
    %c0_47 = arith.constant 0 : index
    %105 = vector.load %arg11[%c0_46, %c0_47] : memref<1x256xf32, #tpu.memory_space<vmem>>, vector<1x256xf32>
    %106 = vector.extract_strided_slice %103 {offsets = [0, 0], sizes = [8, 256], strides = [1, 1]} : vector<8x1920xbf16> to vector<8x256xbf16>
    %cst_48 = arith.constant dense<0.000000e+00> : vector<8x256xf32>
    %107 = tpu.matmul %106, %104, %cst_48 {dimension_numbers = #tpu.dot_dimension_numbers<[1], [0], [0], [1], [0, 0, 1, 1], [], []>} : vector<8x256xbf16>, vector<256x256xbf16>, vector<8x256xf32> -> vector<8x256xf32>
    %108 = vector.broadcast %105 : vector<1x256xf32> to vector<8x256xf32>
    %109 = arith.addf %107, %108 : vector<8x256xf32>
    %cst_49 = arith.constant 5.000000e-01 : f32
    %110 = vector.broadcast %cst_49 : f32 to vector<8x256xf32>
    %111 = arith.mulf %110, %109 : vector<8x256xf32>
    %112 = math.tanh %111 : vector<8x256xf32>
    %cst_50 = arith.constant 1.000000e+00 : f32
    %113 = vector.broadcast %cst_50 : f32 to vector<8x256xf32>
    %114 = arith.addf %112, %113 : vector<8x256xf32>
    %cst_51 = arith.constant 5.000000e-01 : f32
    %115 = vector.broadcast %cst_51 : f32 to vector<8x256xf32>
    %116 = arith.mulf %115, %114 : vector<8x256xf32>
    %117 = arith.truncf %116 : vector<8x256xf32> to vector<8x256xbf16>
    %c0_52 = arith.constant 0 : index
    %c0_53 = arith.constant 0 : index
    %118 = vector.load %arg12[%c0_52, %c0_53] : memref<8x3584xbf16, #tpu.memory_space<vmem>>, vector<8x256xbf16>
    tpu.vector_store %arg12[%c0_52, %c0_53], %117 {strides = array<i32>} : memref<8x3584xbf16, #tpu.memory_space<vmem>>, vector<8x256xbf16>,
    %119 = vector.extract_strided_slice %103 {offsets = [0, 128], sizes = [8, 256], strides = [1, 1]} : vector<8x1920xbf16> to vector<8x256xbf16>
    %cst_54 = arith.constant dense<0.000000e+00> : vector<8x256xf32>
    %120 = tpu.matmul %119, %104, %cst_54 {dimension_numbers = #tpu.dot_dimension_numbers<[1], [0], [0], [1], [0, 0, 1, 1], [], []>} : vector<8x256xbf16>, vector<256x256xbf16>, vector<8x256xf32> -> vector<8x256xf32>
    %121 = vector.broadcast %105 : vector<1x256xf32> to vector<8x256xf32>
    %122 = arith.addf %120, %121 : vector<8x256xf32>
    %cst_55 = arith.constant 5.000000e-01 : f32
    %123 = vector.broadcast %cst_55 : f32 to vector<8x256xf32>
    %124 = arith.mulf %123, %122 : vector<8x256xf32>
    %125 = math.tanh %124 : vector<8x256xf32>
    %cst_56 = arith.constant 1.000000e+00 : f32
    %126 = vector.broadcast %cst_56 : f32 to vector<8x256xf32>
    %127 = arith.addf %125, %126 : vector<8x256xf32>
    %cst_57 = arith.constant 5.000000e-01 : f32
    %128 = vector.broadcast %cst_57 : f32 to vector<8x256xf32>
    %129 = arith.mulf %128, %127 : vector<8x256xf32>
    %130 = arith.truncf %129 : vector<8x256xf32> to vector<8x256xbf16>
    %c0_58 = arith.constant 0 : index
    %c256 = arith.constant 256 : index
    %131 = vector.load %arg12[%c0_58, %c256] : memref<8x3584xbf16, #tpu.memory_space<vmem>>, vector<8x256xbf16>
    tpu.vector_store %arg12[%c0_58, %c256], %130 {strides = array<i32>} : memref<8x3584xbf16, #tpu.memory_space<vmem>>, vector<8x256xbf16>,
    %132 = vector.extract_strided_slice %103 {offsets = [0, 256], sizes = [8, 256], strides = [1, 1]} : vector<8x1920xbf16> to vector<8x256xbf16>
    %cst_59 = arith.constant dense<0.000000e+00> : vector<8x256xf32>
    %133 = tpu.matmul %132, %104, %cst_59 {dimension_numbers = #tpu.dot_dimension_numbers<[1], [0], [0], [1], [0, 0, 1, 1], [], []>} : vector<8x256xbf16>, vector<256x256xbf16>, vector<8x256xf32> -> vector<8x256xf32>
    %134 = vector.broadcast %105 : vector<1x256xf32> to vector<8x256xf32>
    %135 = arith.addf %133, %134 : vector<8x256xf32>
    %cst_60 = arith.constant 5.000000e-01 : f32
    %136 = vector.broadcast %cst_60 : f32 to vector<8x256xf32>
    %137 = arith.mulf %136, %135 : vector<8x256xf32>
    %138 = math.tanh %137 : vector<8x256xf32>
    %cst_61 = arith.constant 1.000000e+00 : f32
    %139 = vector.broadcast %cst_61 : f32 to vector<8x256xf32>
    %140 = arith.addf %138, %139 : vector<8x256xf32>
    %cst_62 = arith.constant 5.000000e-01 : f32
    %141 = vector.broadcast %cst_62 : f32 to vector<8x256xf32>
    %142 = arith.mulf %141, %140 : vector<8x256xf32>
    %143 = arith.truncf %142 : vector<8x256xf32> to vector<8x256xbf16>
    %c0_63 = arith.constant 0 : index
    %c512 = arith.constant 512 : index
    %144 = vector.load %arg12[%c0_63, %c512] : memref<8x3584xbf16, #tpu.memory_space<vmem>>, vector<8x256xbf16>
    tpu.vector_store %arg12[%c0_63, %c512], %143 {strides = array<i32>} : memref<8x3584xbf16, #tpu.memory_space<vmem>>, vector<8x256xbf16>,
    %145 = vector.extract_strided_slice %103 {offsets = [0, 384], sizes = [8, 256], strides = [1, 1]} : vector<8x1920xbf16> to vector<8x256xbf16>
    %cst_64 = arith.constant dense<0.000000e+00> : vector<8x256xf32>
    %146 = tpu.matmul %145, %104, %cst_64 {dimension_numbers = #tpu.dot_dimension_numbers<[1], [0], [0], [1], [0, 0, 1, 1], [], []>} : vector<8x256xbf16>, vector<256x256xbf16>, vector<8x256xf32> -> vector<8x256xf32>
    %147 = vector.broadcast %105 : vector<1x256xf32> to vector<8x256xf32>
    %148 = arith.addf %146, %147 : vector<8x256xf32>
    %cst_65 = arith.constant 5.000000e-01 : f32
    %149 = vector.broadcast %cst_65 : f32 to vector<8x256xf32>
    %150 = arith.mulf %149, %148 : vector<8x256xf32>
    %151 = math.tanh %150 : vector<8x256xf32>
    %cst_66 = arith.constant 1.000000e+00 : f32
    %152 = vector.broadcast %cst_66 : f32 to vector<8x256xf32>
    %153 = arith.addf %151, %152 : vector<8x256xf32>
    %cst_67 = arith.constant 5.000000e-01 : f32
    %154 = vector.broadcast %cst_67 : f32 to vector<8x256xf32>
    %155 = arith.mulf %154, %153 : vector<8x256xf32>
    %156 = arith.truncf %155 : vector<8x256xf32> to vector<8x256xbf16>
    %c0_68 = arith.constant 0 : index
    %c768 = arith.constant 768 : index
    %157 = vector.load %arg12[%c0_68, %c768] : memref<8x3584xbf16, #tpu.memory_space<vmem>>, vector<8x256xbf16>
    tpu.vector_store %arg12[%c0_68, %c768], %156 {strides = array<i32>} : memref<8x3584xbf16, #tpu.memory_space<vmem>>, vector<8x256xbf16>,
    %158 = vector.extract_strided_slice %103 {offsets = [0, 512], sizes = [8, 256], strides = [1, 1]} : vector<8x1920xbf16> to vector<8x256xbf16>
    %cst_69 = arith.constant dense<0.000000e+00> : vector<8x256xf32>
    %159 = tpu.matmul %158, %104, %cst_69 {dimension_numbers = #tpu.dot_dimension_numbers<[1], [0], [0], [1], [0, 0, 1, 1], [], []>} : vector<8x256xbf16>, vector<256x256xbf16>, vector<8x256xf32> -> vector<8x256xf32>
    %160 = vector.broadcast %105 : vector<1x256xf32> to vector<8x256xf32>
    %161 = arith.addf %159, %160 : vector<8x256xf32>
    %cst_70 = arith.constant 5.000000e-01 : f32
    %162 = vector.broadcast %cst_70 : f32 to vector<8x256xf32>
    %163 = arith.mulf %162, %161 : vector<8x256xf32>
    %164 = math.tanh %163 : vector<8x256xf32>
    %cst_71 = arith.constant 1.000000e+00 : f32
    %165 = vector.broadcast %cst_71 : f32 to vector<8x256xf32>
    %166 = arith.addf %164, %165 : vector<8x256xf32>
    %cst_72 = arith.constant 5.000000e-01 : f32
    %167 = vector.broadcast %cst_72 : f32 to vector<8x256xf32>
    %168 = arith.mulf %167, %166 : vector<8x256xf32>
    %169 = arith.truncf %168 : vector<8x256xf32> to vector<8x256xbf16>
    %c0_73 = arith.constant 0 : index
    %c1024 = arith.constant 1024 : index
    %170 = vector.load %arg12[%c0_73, %c1024] : memref<8x3584xbf16, #tpu.memory_space<vmem>>, vector<8x256xbf16>
    tpu.vector_store %arg12[%c0_73, %c1024], %169 {strides = array<i32>} : memref<8x3584xbf16, #tpu.memory_space<vmem>>, vector<8x256xbf16>,
    %171 = vector.extract_strided_slice %103 {offsets = [0, 640], sizes = [8, 256], strides = [1, 1]} : vector<8x1920xbf16> to vector<8x256xbf16>
    %cst_74 = arith.constant dense<0.000000e+00> : vector<8x256xf32>
    %172 = tpu.matmul %171, %104, %cst_74 {dimension_numbers = #tpu.dot_dimension_numbers<[1], [0], [0], [1], [0, 0, 1, 1], [], []>} : vector<8x256xbf16>, vector<256x256xbf16>, vector<8x256xf32> -> vector<8x256xf32>
    %173 = vector.broadcast %105 : vector<1x256xf32> to vector<8x256xf32>
    %174 = arith.addf %172, %173 : vector<8x256xf32>
    %cst_75 = arith.constant 5.000000e-01 : f32
    %175 = vector.broadcast %cst_75 : f32 to vector<8x256xf32>
    %176 = arith.mulf %175, %174 : vector<8x256xf32>
    %177 = math.tanh %176 : vector<8x256xf32>
    %cst_76 = arith.constant 1.000000e+00 : f32
    %178 = vector.broadcast %cst_76 : f32 to vector<8x256xf32>
    %179 = arith.addf %177, %178 : vector<8x256xf32>
    %cst_77 = arith.constant 5.000000e-01 : f32
    %180 = vector.broadcast %cst_77 : f32 to vector<8x256xf32>
    %181 = arith.mulf %180, %179 : vector<8x256xf32>
    %182 = arith.truncf %181 : vector<8x256xf32> to vector<8x256xbf16>
    %c0_78 = arith.constant 0 : index
    %c1280 = arith.constant 1280 : index
    %183 = vector.load %arg12[%c0_78, %c1280] : memref<8x3584xbf16, #tpu.memory_space<vmem>>, vector<8x256xbf16>
    tpu.vector_store %arg12[%c0_78, %c1280], %182 {strides = array<i32>} : memref<8x3584xbf16, #tpu.memory_space<vmem>>, vector<8x256xbf16>,
    %184 = vector.extract_strided_slice %103 {offsets = [0, 768], sizes = [8, 256], strides = [1, 1]} : vector<8x1920xbf16> to vector<8x256xbf16>
    %cst_79 = arith.constant dense<0.000000e+00> : vector<8x256xf32>
    %185 = tpu.matmul %184, %104, %cst_79 {dimension_numbers = #tpu.dot_dimension_numbers<[1], [0], [0], [1], [0, 0, 1, 1], [], []>} : vector<8x256xbf16>, vector<256x256xbf16>, vector<8x256xf32> -> vector<8x256xf32>
    %186 = vector.broadcast %105 : vector<1x256xf32> to vector<8x256xf32>
    %187 = arith.addf %185, %186 : vector<8x256xf32>
    %cst_80 = arith.constant 5.000000e-01 : f32
    %188 = vector.broadcast %cst_80 : f32 to vector<8x256xf32>
    %189 = arith.mulf %188, %187 : vector<8x256xf32>
    %190 = math.tanh %189 : vector<8x256xf32>
    %cst_81 = arith.constant 1.000000e+00 : f32
    %191 = vector.broadcast %cst_81 : f32 to vector<8x256xf32>
    %192 = arith.addf %190, %191 : vector<8x256xf32>
    %cst_82 = arith.constant 5.000000e-01 : f32
    %193 = vector.broadcast %cst_82 : f32 to vector<8x256xf32>
    %194 = arith.mulf %193, %192 : vector<8x256xf32>
    %195 = arith.truncf %194 : vector<8x256xf32> to vector<8x256xbf16>
    %c0_83 = arith.constant 0 : index
    %c1536 = arith.constant 1536 : index
    %196 = vector.load %arg12[%c0_83, %c1536] : memref<8x3584xbf16, #tpu.memory_space<vmem>>, vector<8x256xbf16>
    tpu.vector_store %arg12[%c0_83, %c1536], %195 {strides = array<i32>} : memref<8x3584xbf16, #tpu.memory_space<vmem>>, vector<8x256xbf16>,
    %197 = vector.extract_strided_slice %103 {offsets = [0, 896], sizes = [8, 256], strides = [1, 1]} : vector<8x1920xbf16> to vector<8x256xbf16>
    %cst_84 = arith.constant dense<0.000000e+00> : vector<8x256xf32>
    %198 = tpu.matmul %197, %104, %cst_84 {dimension_numbers = #tpu.dot_dimension_numbers<[1], [0], [0], [1], [0, 0, 1, 1], [], []>} : vector<8x256xbf16>, vector<256x256xbf16>, vector<8x256xf32> -> vector<8x256xf32>
    %199 = vector.broadcast %105 : vector<1x256xf32> to vector<8x256xf32>
    %200 = arith.addf %198, %199 : vector<8x256xf32>
    %cst_85 = arith.constant 5.000000e-01 : f32
    %201 = vector.broadcast %cst_85 : f32 to vector<8x256xf32>
    %202 = arith.mulf %201, %200 : vector<8x256xf32>
    %203 = math.tanh %202 : vector<8x256xf32>
    %cst_86 = arith.constant 1.000000e+00 : f32
    %204 = vector.broadcast %cst_86 : f32 to vector<8x256xf32>
    %205 = arith.addf %203, %204 : vector<8x256xf32>
    %cst_87 = arith.constant 5.000000e-01 : f32
    %206 = vector.broadcast %cst_87 : f32 to vector<8x256xf32>
    %207 = arith.mulf %206, %205 : vector<8x256xf32>
    %208 = arith.truncf %207 : vector<8x256xf32> to vector<8x256xbf16>
    %c0_88 = arith.constant 0 : index
    %c1792 = arith.constant 1792 : index
    %209 = vector.load %arg12[%c0_88, %c1792] : memref<8x3584xbf16, #tpu.memory_space<vmem>>, vector<8x256xbf16>
    tpu.vector_store %arg12[%c0_88, %c1792], %208 {strides = array<i32>} : memref<8x3584xbf16, #tpu.memory_space<vmem>>, vector<8x256xbf16>,
    %210 = vector.extract_strided_slice %103 {offsets = [0, 1024], sizes = [8, 256], strides = [1, 1]} : vector<8x1920xbf16> to vector<8x256xbf16>
    %cst_89 = arith.constant dense<0.000000e+00> : vector<8x256xf32>
    %211 = tpu.matmul %210, %104, %cst_89 {dimension_numbers = #tpu.dot_dimension_numbers<[1], [0], [0], [1], [0, 0, 1, 1], [], []>} : vector<8x256xbf16>, vector<256x256xbf16>, vector<8x256xf32> -> vector<8x256xf32>
    %212 = vector.broadcast %105 : vector<1x256xf32> to vector<8x256xf32>
    %213 = arith.addf %211, %212 : vector<8x256xf32>
    %cst_90 = arith.constant 5.000000e-01 : f32
    %214 = vector.broadcast %cst_90 : f32 to vector<8x256xf32>
    %215 = arith.mulf %214, %213 : vector<8x256xf32>
    %216 = math.tanh %215 : vector<8x256xf32>
    %cst_91 = arith.constant 1.000000e+00 : f32
    %217 = vector.broadcast %cst_91 : f32 to vector<8x256xf32>
    %218 = arith.addf %216, %217 : vector<8x256xf32>
    %cst_92 = arith.constant 5.000000e-01 : f32
    %219 = vector.broadcast %cst_92 : f32 to vector<8x256xf32>
    %220 = arith.mulf %219, %218 : vector<8x256xf32>
    %221 = arith.truncf %220 : vector<8x256xf32> to vector<8x256xbf16>
    %c0_93 = arith.constant 0 : index
    %c2048 = arith.constant 2048 : index
    %222 = vector.load %arg12[%c0_93, %c2048] : memref<8x3584xbf16, #tpu.memory_space<vmem>>, vector<8x256xbf16>
    tpu.vector_store %arg12[%c0_93, %c2048], %221 {strides = array<i32>} : memref<8x3584xbf16, #tpu.memory_space<vmem>>, vector<8x256xbf16>,
    %223 = vector.extract_strided_slice %103 {offsets = [0, 1152], sizes = [8, 256], strides = [1, 1]} : vector<8x1920xbf16> to vector<8x256xbf16>
    %cst_94 = arith.constant dense<0.000000e+00> : vector<8x256xf32>
    %224 = tpu.matmul %223, %104, %cst_94 {dimension_numbers = #tpu.dot_dimension_numbers<[1], [0], [0], [1], [0, 0, 1, 1], [], []>} : vector<8x256xbf16>, vector<256x256xbf16>, vector<8x256xf32> -> vector<8x256xf32>
    %225 = vector.broadcast %105 : vector<1x256xf32> to vector<8x256xf32>
    %226 = arith.addf %224, %225 : vector<8x256xf32>
    %cst_95 = arith.constant 5.000000e-01 : f32
    %227 = vector.broadcast %cst_95 : f32 to vector<8x256xf32>
    %228 = arith.mulf %227, %226 : vector<8x256xf32>
    %229 = math.tanh %228 : vector<8x256xf32>
    %cst_96 = arith.constant 1.000000e+00 : f32
    %230 = vector.broadcast %cst_96 : f32 to vector<8x256xf32>
    %231 = arith.addf %229, %230 : vector<8x256xf32>
    %cst_97 = arith.constant 5.000000e-01 : f32
    %232 = vector.broadcast %cst_97 : f32 to vector<8x256xf32>
    %233 = arith.mulf %232, %231 : vector<8x256xf32>
    %234 = arith.truncf %233 : vector<8x256xf32> to vector<8x256xbf16>
    %c0_98 = arith.constant 0 : index
    %c2304 = arith.constant 2304 : index
    %235 = vector.load %arg12[%c0_98, %c2304] : memref<8x3584xbf16, #tpu.memory_space<vmem>>, vector<8x256xbf16>
    tpu.vector_store %arg12[%c0_98, %c2304], %234 {strides = array<i32>} : memref<8x3584xbf16, #tpu.memory_space<vmem>>, vector<8x256xbf16>,
    %236 = vector.extract_strided_slice %103 {offsets = [0, 1280], sizes = [8, 256], strides = [1, 1]} : vector<8x1920xbf16> to vector<8x256xbf16>
    %cst_99 = arith.constant dense<0.000000e+00> : vector<8x256xf32>
    %237 = tpu.matmul %236, %104, %cst_99 {dimension_numbers = #tpu.dot_dimension_numbers<[1], [0], [0], [1], [0, 0, 1, 1], [], []>} : vector<8x256xbf16>, vector<256x256xbf16>, vector<8x256xf32> -> vector<8x256xf32>
    %238 = vector.broadcast %105 : vector<1x256xf32> to vector<8x256xf32>
    %239 = arith.addf %237, %238 : vector<8x256xf32>
    %cst_100 = arith.constant 5.000000e-01 : f32
    %240 = vector.broadcast %cst_100 : f32 to vector<8x256xf32>
    %241 = arith.mulf %240, %239 : vector<8x256xf32>
    %242 = math.tanh %241 : vector<8x256xf32>
    %cst_101 = arith.constant 1.000000e+00 : f32
    %243 = vector.broadcast %cst_101 : f32 to vector<8x256xf32>
    %244 = arith.addf %242, %243 : vector<8x256xf32>
    %cst_102 = arith.constant 5.000000e-01 : f32
    %245 = vector.broadcast %cst_102 : f32 to vector<8x256xf32>
    %246 = arith.mulf %245, %244 : vector<8x256xf32>
    %247 = arith.truncf %246 : vector<8x256xf32> to vector<8x256xbf16>
    %c0_103 = arith.constant 0 : index
    %c2560 = arith.constant 2560 : index
    %248 = vector.load %arg12[%c0_103, %c2560] : memref<8x3584xbf16, #tpu.memory_space<vmem>>, vector<8x256xbf16>
    tpu.vector_store %arg12[%c0_103, %c2560], %247 {strides = array<i32>} : memref<8x3584xbf16, #tpu.memory_space<vmem>>, vector<8x256xbf16>,
    %249 = vector.extract_strided_slice %103 {offsets = [0, 1408], sizes = [8, 256], strides = [1, 1]} : vector<8x1920xbf16> to vector<8x256xbf16>
    %cst_104 = arith.constant dense<0.000000e+00> : vector<8x256xf32>
    %250 = tpu.matmul %249, %104, %cst_104 {dimension_numbers = #tpu.dot_dimension_numbers<[1], [0], [0], [1], [0, 0, 1, 1], [], []>} : vector<8x256xbf16>, vector<256x256xbf16>, vector<8x256xf32> -> vector<8x256xf32>
    %251 = vector.broadcast %105 : vector<1x256xf32> to vector<8x256xf32>
    %252 = arith.addf %250, %251 : vector<8x256xf32>
    %cst_105 = arith.constant 5.000000e-01 : f32
    %253 = vector.broadcast %cst_105 : f32 to vector<8x256xf32>
    %254 = arith.mulf %253, %252 : vector<8x256xf32>
    %255 = math.tanh %254 : vector<8x256xf32>
    %cst_106 = arith.constant 1.000000e+00 : f32
    %256 = vector.broadcast %cst_106 : f32 to vector<8x256xf32>
    %257 = arith.addf %255, %256 : vector<8x256xf32>
    %cst_107 = arith.constant 5.000000e-01 : f32
    %258 = vector.broadcast %cst_107 : f32 to vector<8x256xf32>
    %259 = arith.mulf %258, %257 : vector<8x256xf32>
    %260 = arith.truncf %259 : vector<8x256xf32> to vector<8x256xbf16>
    %c0_108 = arith.constant 0 : index
    %c2816 = arith.constant 2816 : index
    %261 = vector.load %arg12[%c0_108, %c2816] : memref<8x3584xbf16, #tpu.memory_space<vmem>>, vector<8x256xbf16>
    tpu.vector_store %arg12[%c0_108, %c2816], %260 {strides = array<i32>} : memref<8x3584xbf16, #tpu.memory_space<vmem>>, vector<8x256xbf16>,
    %262 = vector.extract_strided_slice %103 {offsets = [0, 1536], sizes = [8, 256], strides = [1, 1]} : vector<8x1920xbf16> to vector<8x256xbf16>
    %cst_109 = arith.constant dense<0.000000e+00> : vector<8x256xf32>
    %263 = tpu.matmul %262, %104, %cst_109 {dimension_numbers = #tpu.dot_dimension_numbers<[1], [0], [0], [1], [0, 0, 1, 1], [], []>} : vector<8x256xbf16>, vector<256x256xbf16>, vector<8x256xf32> -> vector<8x256xf32>
    %264 = vector.broadcast %105 : vector<1x256xf32> to vector<8x256xf32>
    %265 = arith.addf %263, %264 : vector<8x256xf32>
    %cst_110 = arith.constant 5.000000e-01 : f32
    %266 = vector.broadcast %cst_110 : f32 to vector<8x256xf32>
    %267 = arith.mulf %266, %265 : vector<8x256xf32>
    %268 = math.tanh %267 : vector<8x256xf32>
    %cst_111 = arith.constant 1.000000e+00 : f32
    %269 = vector.broadcast %cst_111 : f32 to vector<8x256xf32>
    %270 = arith.addf %268, %269 : vector<8x256xf32>
    %cst_112 = arith.constant 5.000000e-01 : f32
    %271 = vector.broadcast %cst_112 : f32 to vector<8x256xf32>
    %272 = arith.mulf %271, %270 : vector<8x256xf32>
    %273 = arith.truncf %272 : vector<8x256xf32> to vector<8x256xbf16>
    %c0_113 = arith.constant 0 : index
    %c3072 = arith.constant 3072 : index
    %274 = vector.load %arg12[%c0_113, %c3072] : memref<8x3584xbf16, #tpu.memory_space<vmem>>, vector<8x256xbf16>
    tpu.vector_store %arg12[%c0_113, %c3072], %273 {strides = array<i32>} : memref<8x3584xbf16, #tpu.memory_space<vmem>>, vector<8x256xbf16>,
    %275 = vector.extract_strided_slice %103 {offsets = [0, 1664], sizes = [8, 256], strides = [1, 1]} : vector<8x1920xbf16> to vector<8x256xbf16>
    %cst_114 = arith.constant dense<0.000000e+00> : vector<8x256xf32>
    %276 = tpu.matmul %275, %104, %cst_114 {dimension_numbers = #tpu.dot_dimension_numbers<[1], [0], [0], [1], [0, 0, 1, 1], [], []>} : vector<8x256xbf16>, vector<256x256xbf16>, vector<8x256xf32> -> vector<8x256xf32>
    %277 = vector.broadcast %105 : vector<1x256xf32> to vector<8x256xf32>
    %278 = arith.addf %276, %277 : vector<8x256xf32>
    %cst_115 = arith.constant 5.000000e-01 : f32
    %279 = vector.broadcast %cst_115 : f32 to vector<8x256xf32>
    %280 = arith.mulf %279, %278 : vector<8x256xf32>
    %281 = math.tanh %280 : vector<8x256xf32>
    %cst_116 = arith.constant 1.000000e+00 : f32
    %282 = vector.broadcast %cst_116 : f32 to vector<8x256xf32>
    %283 = arith.addf %281, %282 : vector<8x256xf32>
    %cst_117 = arith.constant 5.000000e-01 : f32
    %284 = vector.broadcast %cst_117 : f32 to vector<8x256xf32>
    %285 = arith.mulf %284, %283 : vector<8x256xf32>
    %286 = arith.truncf %285 : vector<8x256xf32> to vector<8x256xbf16>
    %c0_118 = arith.constant 0 : index
    %c3328 = arith.constant 3328 : index
    %287 = vector.load %arg12[%c0_118, %c3328] : memref<8x3584xbf16, #tpu.memory_space<vmem>>, vector<8x256xbf16>
    tpu.vector_store %arg12[%c0_118, %c3328], %286 {strides = array<i32>} : memref<8x3584xbf16, #tpu.memory_space<vmem>>, vector<8x256xbf16>,
    return
  }
  func.func @transform_0(%arg0: i32) -> (i32, i32) {
    %c0_i32 = arith.constant 0 : i32
    %c0_i32_0 = arith.constant 0 : i32
    return %arg0, %c0_i32 : i32, i32
  }
  func.func @transform_1(%arg0: i32) -> (i32, i32) {
    %c0_i32 = arith.constant 0 : i32
    %c0_i32_0 = arith.constant 0 : i32
    %c0_i32_1 = arith.constant 0 : i32
    return %c0_i32, %c0_i32_0 : i32, i32
  }
  func.func @transform_2(%arg0: i32) -> (i32, i32) {
    %c0_i32 = arith.constant 0 : i32
    %c0_i32_0 = arith.constant 0 : i32
    %c0_i32_1 = arith.constant 0 : i32
    return %c0_i32, %c0_i32_0 : i32, i32
  }
  func.func @transform_3(%arg0: i32) -> (i32, i32) {
    %c0_i32 = arith.constant 0 : i32
    %c0_i32_0 = arith.constant 0 : i32
    %c0_i32_1 = arith.constant 0 : i32
    return %c0_i32, %c0_i32_0 : i32, i32
  }
  func.func @transform_4(%arg0: i32) -> (i32, i32) {
    %c0_i32 = arith.constant 0 : i32
    %c0_i32_0 = arith.constant 0 : i32
    %c0_i32_1 = arith.constant 0 : i32
    return %c0_i32, %c0_i32_0 : i32, i32
  }
  func.func @transform_5(%arg0: i32) -> (i32, i32) {
    %c0_i32 = arith.constant 0 : i32
    %c0_i32_0 = arith.constant 0 : i32
    %c0_i32_1 = arith.constant 0 : i32
    return %c0_i32, %c0_i32_0 : i32, i32
  }
  func.func @transform_6(%arg0: i32) -> (i32, i32) {
    %c0_i32 = arith.constant 0 : i32
    %c0_i32_0 = arith.constant 0 : i32
    %c0_i32_1 = arith.constant 0 : i32
    return %c0_i32, %c0_i32_0 : i32, i32
  }
  func.func @transform_7(%arg0: i32) -> (i32, i32) {
    %c0_i32 = arith.constant 0 : i32
    %c0_i32_0 = arith.constant 0 : i32
    %c0_i32_1 = arith.constant 0 : i32
    return %c0_i32, %c0_i32_0 : i32, i32
  }
  func.func @transform_8(%arg0: i32) -> (i32, i32) {
    %c0_i32 = arith.constant 0 : i32
    %c0_i32_0 = arith.constant 0 : i32
    %c0_i32_1 = arith.constant 0 : i32
    return %c0_i32, %c0_i32_0 : i32, i32
  }
  func.func @transform_9(%arg0: i32) -> (i32, i32) {
    %c0_i32 = arith.constant 0 : i32
    %c0_i32_0 = arith.constant 0 : i32
    %c0_i32_1 = arith.constant 0 : i32
    return %c0_i32, %c0_i32_0 : i32, i32
  }
  func.func @transform_10(%arg0: i32) -> (i32, i32) {
    %c0_i32 = arith.constant 0 : i32
    %c0_i32_0 = arith.constant 0 : i32
    %c0_i32_1 = arith.constant 0 : i32
    return %c0_i32, %c0_i32_0 : i32, i32
  }
  func.func @transform_11(%arg0: i32) -> (i32, i32) {
    %c0_i32 = arith.constant 0 : i32
    %c0_i32_0 = arith.constant 0 : i32
    return %arg0, %c0_i32 : i32, i32
  }
}

</mosaic_0001>

<llo_original>
// kernel: tpu_custom_call.1
$region0: #{tpu_custom_call.1}
  #allocation0 [shape = 'u32[]', space=smem, size = 0x4, offset = 0x4, fixed_abs, tag = 'smem constant byte address 0x4 - core index']
  #allocation1 [shape = 'u32[144,128]{1,0:T(1,128)}', space=vmem, size = 0x12000, scoped, tag = 'internal scratch']
  %s0 = inlined_call_operand.hbm [shape: f32[8,32], index: 0, kind: input, shape index: {}]
  %s1 = inlined_call_operand.hbm [shape: bf16[32,128], index: 1, kind: input, shape index: {}]
  %s2 = inlined_call_operand.hbm [shape: f32[1,128], index: 2, kind: input, shape index: {}]
  %s3 = inlined_call_operand.hbm [shape: bf16[128,640], index: 3, kind: input, shape index: {}]
  %s4 = inlined_call_operand.vmem [shape: f32[1,640], index: 4, kind: input, shape index: {}]
  %s5 = inlined_call_operand.hbm [shape: bf16[256,256], index: 5, kind: input, shape index: {}]
  %s6 = inlined_call_operand.vmem [shape: f32[1,256], index: 6, kind: input, shape index: {}]
  %s7 = inlined_call_operand.hbm [shape: bf16[256,256], index: 7, kind: input, shape index: {}]
  %s8 = inlined_call_operand.vmem [shape: f32[1,256], index: 8, kind: input, shape index: {}]
  %s9 = inlined_call_operand.hbm [shape: bf16[256,256], index: 9, kind: input, shape index: {}]
  %s10 = inlined_call_operand.vmem [shape: f32[1,256], index: 10, kind: input, shape index: {}]
  %s11 = inlined_call_operand.hbm [shape: bf16[8,3584], index: 11, kind: output, shape index: {}]
  %s12 = sld [smem:[#allocation0]]
  $region82: #{tpu_custom_call.1} parent=0
    _
  %s14 = ssub.s32 1, %s12
  %s15 = scalar_select 0, %s14, %s12
  $region1: #{tpu_custom_call.1} parent=0
    #allocation2 [shape = 'u8[4096]{0}', space=vmem, size = 0x1000, scoped, tag = 'input window, operand 0, single buffered']
    #allocation3 [shape = 's32[1]{0}', space=sflag, size = 0x4, scoped, tag = 'scoped memory for tpu_custom_call.1']
    #allocation4 [shape = 's32[1]{0}', space=sflag, size = 0x4, scoped, tag = 'scoped memory for tpu_custom_call.1']
    #allocation5 [shape = 'u8[8192]{0}', space=vmem, size = 0x2000, scoped, tag = 'input window, operand 1, single buffered']
    #allocation6 [shape = 's32[1]{0}', space=sflag, size = 0x4, scoped, tag = 'scoped memory for tpu_custom_call.1']
    #allocation7 [shape = 'u8[512]{0}', space=vmem, size = 0x400, scoped, tag = 'input window, operand 2, single buffered']
    #allocation8 [shape = 'u8[163840]{0}', space=vmem, size = 0x28000, scoped, tag = 'input window, operand 3, single buffered']
    #allocation9 [shape = 's32[1]{0}', space=sflag, size = 0x4, scoped, tag = 'scoped memory for tpu_custom_call.1']
    #allocation10 [shape = 'u8[131072]{0}', space=vmem, size = 0x20000, scoped, tag = 'input window, operand 5, single buffered']
    #allocation11 [shape = 'u8[131072]{0}', space=vmem, size = 0x20000, scoped, tag = 'input window, operand 7, single buffered']
    #allocation12 [shape = 's32[1]{0}', space=sflag, size = 0x4, scoped, tag = 'scoped memory for tpu_custom_call.1']
    #allocation13 [shape = 'u8[131072]{0}', space=vmem, size = 0x20000, scoped, tag = 'input window, operand 9, single buffered']
    #allocation14 [shape = 'u8[57344]{0}', space=vmem, size = 0xe000, scoped, tag = 'output window, operand 0, single buffered']
    %16 = vsyncpa [#allocation3], 0
    %17 = vsyncpa [#allocation6], 0
    %18 = vsyncpa [#allocation9], 0
    %19 = vsyncpa [#allocation12], 0
    %20 = vsyncpa [#allocation4], 0
    // Predicated region
    $region2: #{tpu_custom_call.1} parent=1 // pred_check
      _
    $region3: #{tpu_custom_call.1} parent=1 // pred_check_branch
      %22 = sbr.rel (0) target = $region5
    $region4: #{tpu_custom_call.1} parent=1 // pred_region
      %s24 = ssub.s32 128, 128
      %25 = vsyncadd [#allocation3], %s24
      %s27 = sshll.u32 [#allocation2], 4
      %s28 = int_to_ptr.vmem [resolvable:$true] %s27
      %30 = dma.hbm_to_vmem [thread:$0]  %s0, 128, %s28, [#allocation3]
    $region5: #{tpu_custom_call.1} parent=1 // pred_fallthru
      _
    // Predicated region
    $region6: #{tpu_custom_call.1} parent=1 // pred_check
      _
    $region7: #{tpu_custom_call.1} parent=1 // pred_check_branch
      %32 = sbr.rel (0) target = $region9
    $region8: #{tpu_custom_call.1} parent=1 // pred_region
      %s34 = ssub.s32 256, 256
      %35 = vsyncadd [#allocation6], %s34
      %s36 = sshll.u32 [#allocation5], 4
      %s37 = int_to_ptr.vmem [resolvable:$true] %s36
      %42 = dma.hbm_to_vmem [thread:$0]  %s1, 256, %s37, [#allocation6], 64, 64, 4
    $region9: #{tpu_custom_call.1} parent=1 // pred_fallthru
      _
    // Predicated region
    $region10: #{tpu_custom_call.1} parent=1 // pred_check
      _
    $region11: #{tpu_custom_call.1} parent=1 // pred_check_branch
      %44 = sbr.rel (0) target = $region13
    $region12: #{tpu_custom_call.1} parent=1 // pred_region
      %s46 = ssub.s32 16, 16
      %47 = vsyncadd [#allocation6], %s46
      %s49 = sshll.u32 [#allocation7], 4
      %s50 = int_to_ptr.vmem [resolvable:$true] %s49
      %52 = dma.hbm_to_vmem [thread:$0]  %s2, 16, %s50, [#allocation6]
    $region13: #{tpu_custom_call.1} parent=1 // pred_fallthru
      _
    // Predicated region
    $region14: #{tpu_custom_call.1} parent=1 // pred_check
      _
    $region15: #{tpu_custom_call.1} parent=1 // pred_check_branch
      %54 = sbr.rel (0) target = $region17
    $region16: #{tpu_custom_call.1} parent=1 // pred_region
      %s56 = ssub.s32 5120, 5120
      %57 = vsyncadd [#allocation9], %s56
      %s58 = sshll.u32 [#allocation8], 4
      %s59 = int_to_ptr.vmem [resolvable:$true] %s58
      %64 = dma.hbm_to_vmem [thread:$0]  %s3, 5120, %s59, [#allocation9], 320, 320, 20
    $region17: #{tpu_custom_call.1} parent=1 // pred_fallthru
      _
    // Predicated region
    $region18: #{tpu_custom_call.1} parent=1 // pred_check
      _
    $region19: #{tpu_custom_call.1} parent=1 // pred_check_branch
      %66 = sbr.rel (0) target = $region21
    $region20: #{tpu_custom_call.1} parent=1 // pred_region
      _
    $region21: #{tpu_custom_call.1} parent=1 // pred_fallthru
      _
    // Predicated region
    $region22: #{tpu_custom_call.1} parent=1 // pred_check
      _
    $region23: #{tpu_custom_call.1} parent=1 // pred_check_branch
      %68 = sbr.rel (0) target = $region25
    $region24: #{tpu_custom_call.1} parent=1 // pred_region
      %s70 = ssub.s32 4096, 4096
      %71 = vsyncadd [#allocation9], %s70
      %s72 = sshll.u32 [#allocation10], 4
      %s73 = int_to_ptr.vmem [resolvable:$true] %s72
      %78 = dma.hbm_to_vmem [thread:$0]  %s5, 4096, %s73, [#allocation9], 128, 128, 8
    $region25: #{tpu_custom_call.1} parent=1 // pred_fallthru
      _
    // Predicated region
    $region26: #{tpu_custom_call.1} parent=1 // pred_check
      _
    $region27: #{tpu_custom_call.1} parent=1 // pred_check_branch
      %80 = sbr.rel (0) target = $region29
    $region28: #{tpu_custom_call.1} parent=1 // pred_region
      _
    $region29: #{tpu_custom_call.1} parent=1 // pred_fallthru
      _
    // Predicated region
    $region30: #{tpu_custom_call.1} parent=1 // pred_check
      _
    $region31: #{tpu_custom_call.1} parent=1 // pred_check_branch
      %82 = sbr.rel (0) target = $region33
    $region32: #{tpu_custom_call.1} parent=1 // pred_region
      %s84 = ssub.s32 4096, 4096
      %85 = vsyncadd [#allocation12], %s84
      %s86 = sshll.u32 [#allocation11], 4
      %s87 = int_to_ptr.vmem [resolvable:$true] %s86
      %92 = dma.hbm_to_vmem [thread:$0]  %s7, 4096, %s87, [#allocation12], 128, 128, 8
    $region33: #{tpu_custom_call.1} parent=1 // pred_fallthru
      _
    // Predicated region
    $region34: #{tpu_custom_call.1} parent=1 // pred_check
      _
    $region35: #{tpu_custom_call.1} parent=1 // pred_check_branch
      %94 = sbr.rel (0) target = $region37
    $region36: #{tpu_custom_call.1} parent=1 // pred_region
      _
    $region37: #{tpu_custom_call.1} parent=1 // pred_fallthru
      _
    // Predicated region
    $region38: #{tpu_custom_call.1} parent=1 // pred_check
      _
    $region39: #{tpu_custom_call.1} parent=1 // pred_check_branch
      %96 = sbr.rel (0) target = $region41
    $region40: #{tpu_custom_call.1} parent=1 // pred_region
      %s98 = ssub.s32 4096, 4096
      %99 = vsyncadd [#allocation12], %s98
      %s100 = sshll.u32 [#allocation13], 4
      %s101 = int_to_ptr.vmem [resolvable:$true] %s100
      %106 = dma.hbm_to_vmem [thread:$0]  %s9, 4096, %s101, [#allocation12], 128, 128, 8
    $region41: #{tpu_custom_call.1} parent=1 // pred_fallthru
      _
    // Predicated region
    $region42: #{tpu_custom_call.1} parent=1 // pred_check
      _
    $region43: #{tpu_custom_call.1} parent=1 // pred_check_branch
      %108 = sbr.rel (0) target = $region45
    $region44: #{tpu_custom_call.1} parent=1 // pred_region
      _
    $region45: #{tpu_custom_call.1} parent=1 // pred_fallthru
      _
    // Predicated region
    $region46: #{tpu_custom_call.1} parent=1 // pred_check
      _
    $region47: #{tpu_custom_call.1} parent=1 // pred_check_branch
      %110 = sbr.rel (0) target = $region49
    $region48: #{tpu_custom_call.1} parent=1 // pred_region
      %111 = dma.done [#allocation3], 128
    $region49: #{tpu_custom_call.1} parent=1 // pred_fallthru
      _
    // Predicated region
    $region50: #{tpu_custom_call.1} parent=1 // pred_check
      _
    $region51: #{tpu_custom_call.1} parent=1 // pred_check_branch
      %113 = sbr.rel (0) target = $region53
    $region52: #{tpu_custom_call.1} parent=1 // pred_region
      %114 = dma.done [#allocation6], 256
    $region53: #{tpu_custom_call.1} parent=1 // pred_fallthru
      _
    // Predicated region
    $region54: #{tpu_custom_call.1} parent=1 // pred_check
      _
    $region55: #{tpu_custom_call.1} parent=1 // pred_check_branch
      %116 = sbr.rel (0) target = $region57
    $region56: #{tpu_custom_call.1} parent=1 // pred_region
      %117 = dma.done [#allocation6], 16
    $region57: #{tpu_custom_call.1} parent=1 // pred_fallthru
      _
    // Predicated region
    $region58: #{tpu_custom_call.1} parent=1 // pred_check
      _
    $region59: #{tpu_custom_call.1} parent=1 // pred_check_branch
      %119 = sbr.rel (0) target = $region61
    $region60: #{tpu_custom_call.1} parent=1 // pred_region
      %120 = dma.done [#allocation9], 5120
    $region61: #{tpu_custom_call.1} parent=1 // pred_fallthru
      _
    // Predicated region
    $region62: #{tpu_custom_call.1} parent=1 // pred_check
      _
    $region63: #{tpu_custom_call.1} parent=1 // pred_check_branch
      %122 = sbr.rel (0) target = $region65
    $region64: #{tpu_custom_call.1} parent=1 // pred_region
      %123 = dma.done [#allocation9], 4096
    $region65: #{tpu_custom_call.1} parent=1 // pred_fallthru
      _
    // Predicated region
    $region66: #{tpu_custom_call.1} parent=1 // pred_check
      _
    $region67: #{tpu_custom_call.1} parent=1 // pred_check_branch
      %125 = sbr.rel (0) target = $region69
    $region68: #{tpu_custom_call.1} parent=1 // pred_region
      %126 = dma.done [#allocation12], 4096
    $region69: #{tpu_custom_call.1} parent=1 // pred_fallthru
      _
    // Predicated region
    $region70: #{tpu_custom_call.1} parent=1 // pred_check
      _
    $region71: #{tpu_custom_call.1} parent=1 // pred_check_branch
      %128 = sbr.rel (0) target = $region73
    $region72: #{tpu_custom_call.1} parent=1 // pred_region
      %129 = dma.done [#allocation12], 4096
    $region73: #{tpu_custom_call.1} parent=1 // pred_fallthru
      _
    %v131 = vld [vmem:[#allocation2] sm:$0xff]
    %v132 = vpack.c.bf16 %v131, %v131
    %v133 = vld [vmem:[#allocation5] sm:$0xf]
    %v134 = vld [vmem:[#allocation5 + $0x4] sm:$0xf]
    %v135 = vld [vmem:[#allocation5 + $0x8] sm:$0xf]
    %v136 = vld [vmem:[#allocation5 + $0xc] sm:$0xf]
    %v137 = vld [vmem:[#allocation7] sm:$0x1]
    %v139 = vlaneseq
    %v140 = vshrl.u32 %v139, 7
    %v141 = vsub.s32 0, %v140
    %v142 = vrot.slane %v137, %v141
    %v148 = vunpack.c.l.b16 %v133
    %v149 = vunpack.c.l.b16 %v134
    %v150 = vunpack.c.l.b16 %v135
    %v151 = vunpack.c.l.b16 %v136
    %v152 = vpack.c.b16 %v149, %v148
    %v153 = vpack.c.b16 %v151, %v150
    %vm156 = vcmask 261120
    %v158 = vsel %vm156, %v132, 0
    %160 = vmatprep.subr.bf16.mxu0 0
    %161 = vmatpush1.bf16.msra.mxu0 0
    %162 = vmatprep.subr.bf16.mxu0 0
    %163 = vmatpush1.bf16.msra.mxu0 0
    %164 = vmatprep.subr.bf16.mxu0 0
    %165 = vmatpush1.bf16.msra.mxu0 0
    %166 = vmatprep.subr.bf16.mxu0 0
    %167 = vmatpush1.bf16.msra.mxu0 0
    %168 = vmatprep.subr.bf16.mxu0 0
    %169 = vmatpush1.bf16.msra.mxu0 0
    %170 = vmatprep.subr.bf16.mxu0 0
    %171 = vmatpush1.bf16.msra.mxu0 0
    %172 = vmatprep.subr.bf16.mxu0 0
    %173 = vmatpush1.bf16.msra.mxu0 %v153
    %174 = vmatprep.subr.bf16.mxu0 0
    %175 = vmatpush1.bf16.msra.mxu0 %v152
    %176 = vmatprep.subr.bf16.mxu0 0
    %177 = vmatpush2.bf16.msra.mxu0 0
    %178 = vmatprep.subr.bf16.mxu0 0
    %179 = vmatpush2.bf16.msra.mxu0 0
    %180 = vmatprep.subr.bf16.mxu0 0
    %181 = vmatpush2.bf16.msra.mxu0 0
    %182 = vmatprep.subr.bf16.mxu0 0
    %183 = vmatpush2.bf16.msra.mxu0 0
    %184 = vmatprep.subr.bf16.mxu0 0
    %185 = vmatpush2.bf16.msra.mxu0 0
    %186 = vmatprep.subr.bf16.mxu0 0
    %187 = vmatpush2.bf16.msra.mxu0 0
    %188 = vmatprep.subr.bf16.mxu0 0
    %189 = vmatpush2.bf16.msra.mxu0 0
    %190 = vmatprep.subr.bf16.mxu0 0
    %191 = vmatpush2.bf16.msra.mxu0 0
    %192 = vmatprep.mubr.bf16.mxu0 0
    %193 = vmatmul.mubr.bf16.gmra.mxu0 %v158
    %v194 = vpop.f32.mrf.mxu0
    %v195 = vadd.f32 %v142, %v194
    %v196 = vpop.f32.mrf.mxu0
    %v197 = vpop.f32.mrf.mxu0
    %v198 = vpop.f32.mrf.mxu0
    %199 = vdwg.mxu0
    %v200 = vmax.f32 %v195, 0.0
    %v201 = vpack.c.bf16 %v200, %v200
    %v202 = vld [vmem:[#allocation8] sm:$0xff]
    %v203 = vld [vmem:[#allocation8 + $0x8] sm:$0xff]
    %v204 = vld [vmem:[#allocation8 + $0x10] sm:$0xf]
    %v205 = vld [vmem:[#allocation8 + $0x14] sm:$0xff]
    %v206 = vld [vmem:[#allocation8 + $0x1c] sm:$0xff]
    %v207 = vld [vmem:[#allocation8 + $0x24] sm:$0xf]
    %v208 = vld [vmem:[#allocation8 + $0x28] sm:$0xff]
    %v209 = vld [vmem:[#allocation8 + $0x30] sm:$0xff]
    %v210 = vld [vmem:[#allocation8 + $0x38] sm:$0xf]
    %v211 = vld [vmem:[#allocation8 + $0x3c] sm:$0xff]
    %v212 = vld [vmem:[#allocation8 + $0x44] sm:$0xff]
    %v213 = vld [vmem:[#allocation8 + $0x4c] sm:$0xf]
    %v214 = vld [vmem:[#allocation8 + $0x50] sm:$0xff]
    %v215 = vld [vmem:[#allocation8 + $0x58] sm:$0xff]
    %v216 = vld [vmem:[#allocation8 + $0x60] sm:$0xf]
    %v217 = vld [vmem:[#allocation8 + $0x64] sm:$0xff]
    %v218 = vld [vmem:[#allocation8 + $0x6c] sm:$0xff]
    %v219 = vld [vmem:[#allocation8 + $0x74] sm:$0xf]
    %v220 = vld [vmem:[#allocation8 + $0x78] sm:$0xff]
    %v221 = vld [vmem:[#allocation8 + $0x80] sm:$0xff]
    %v222 = vld [vmem:[#allocation8 + $0x88] sm:$0xf]
    %v223 = vld [vmem:[#allocation8 + $0x8c] sm:$0xff]
    %v224 = vld [vmem:[#allocation8 + $0x94] sm:$0xff]
    %v225 = vld [vmem:[#allocation8 + $0x9c] sm:$0xf]
    %v226 = vld [vmem:[#allocation8 + $0xa0] sm:$0xff]
    %v227 = vld [vmem:[#allocation8 + $0xa8] sm:$0xff]
    %v228 = vld [vmem:[#allocation8 + $0xb0] sm:$0xf]
    %v229 = vld [vmem:[#allocation8 + $0xb4] sm:$0xff]
    %v230 = vld [vmem:[#allocation8 + $0xbc] sm:$0xff]
    %v231 = vld [vmem:[#allocation8 + $0xc4] sm:$0xf]
    %v232 = vld [vmem:[#allocation8 + $0xc8] sm:$0xff]
    %v233 = vld [vmem:[#allocation8 + $0xd0] sm:$0xff]
    %v234 = vld [vmem:[#allocation8 + $0xd8] sm:$0xf]
    %v235 = vld [vmem:[#allocation8 + $0xdc] sm:$0xff]
    %v236 = vld [vmem:[#allocation8 + $0xe4] sm:$0xff]
    %v237 = vld [vmem:[#allocation8 + $0xec] sm:$0xf]
    %v238 = vld [vmem:[#allocation8 + $0xf0] sm:$0xff]
    %v239 = vld [vmem:[#allocation8 + $0xf8] sm:$0xff]
    %v240 = vld [vmem:[#allocation8 + $0x100] sm:$0xf]
    %v241 = vld [vmem:[#allocation8 + $0x104] sm:$0xff]
    %v242 = vld [vmem:[#allocation8 + $0x10c] sm:$0xff]
    %v243 = vld [vmem:[#allocation8 + $0x114] sm:$0xf]
    %v244 = vld [vmem:[#allocation8 + $0x118] sm:$0xff]
    %v245 = vld [vmem:[#allocation8 + $0x120] sm:$0xff]
    %v246 = vld [vmem:[#allocation8 + $0x128] sm:$0xf]
    %v247 = vld [vmem:[#allocation8 + $0x12c] sm:$0xff]
    %v248 = vld [vmem:[#allocation8 + $0x134] sm:$0xff]
    %v249 = vld [vmem:[#allocation8 + $0x13c] sm:$0xf]
    %v250 = vld [vmem:[%s4] sm:$0x1f]
    %v252 = vlaneseq
    %v253 = vshrl.u32 %v252, 7
    %v254 = vsub.s32 0, %v253
    %v255 = vrot.slane %v250, %v254
    %v256 = vlaneseq
    %v257 = vshrl.u32 %v256, 7
    %v258 = vsub.s32 1, %v257
    %v259 = vrot.slane %v250, %v258
    %v260 = vlaneseq
    %v261 = vshrl.u32 %v260, 7
    %v262 = vsub.s32 2, %v261
    %v263 = vrot.slane %v250, %v262
    %v264 = vlaneseq
    %v265 = vshrl.u32 %v264, 7
    %v266 = vsub.s32 3, %v265
    %v267 = vrot.slane %v250, %v266
    %v268 = vlaneseq
    %v269 = vshrl.u32 %v268, 7
    %v270 = vsub.s32 4, %v269
    %v271 = vrot.slane %v250, %v270
    %v325 = vunpack.c.l.b16 %v202
    %v326 = vunpack.c.h.b16 %v202
    %v327 = vunpack.c.l.b16 %v203
    %v328 = vunpack.c.h.b16 %v203
    %v329 = vunpack.c.l.b16 %v204
    %v330 = vunpack.c.l.b16 %v205
    %v331 = vunpack.c.h.b16 %v205
    %v332 = vunpack.c.l.b16 %v206
    %v333 = vunpack.c.h.b16 %v206
    %v334 = vunpack.c.l.b16 %v207
    %v335 = vunpack.c.l.b16 %v208
    %v336 = vunpack.c.h.b16 %v208
    %v337 = vunpack.c.l.b16 %v209
    %v338 = vunpack.c.h.b16 %v209
    %v339 = vunpack.c.l.b16 %v210
    %v340 = vunpack.c.l.b16 %v211
    %v341 = vunpack.c.h.b16 %v211
    %v342 = vunpack.c.l.b16 %v212
    %v343 = vunpack.c.h.b16 %v212
    %v344 = vunpack.c.l.b16 %v213
    %v345 = vunpack.c.l.b16 %v214
    %v346 = vunpack.c.h.b16 %v214
    %v347 = vunpack.c.l.b16 %v215
    %v348 = vunpack.c.h.b16 %v215
    %v349 = vunpack.c.l.b16 %v216
    %v350 = vunpack.c.l.b16 %v217
    %v351 = vunpack.c.h.b16 %v217
    %v352 = vunpack.c.l.b16 %v218
    %v353 = vunpack.c.h.b16 %v218
    %v354 = vunpack.c.l.b16 %v219
    %v355 = vunpack.c.l.b16 %v220
    %v356 = vunpack.c.h.b16 %v220
    %v357 = vunpack.c.l.b16 %v221
    %v358 = vunpack.c.h.b16 %v221
    %v359 = vunpack.c.l.b16 %v222
    %v360 = vunpack.c.l.b16 %v223
    %v361 = vunpack.c.h.b16 %v223
    %v362 = vunpack.c.l.b16 %v224
    %v363 = vunpack.c.h.b16 %v224
    %v364 = vunpack.c.l.b16 %v225
    %v365 = vunpack.c.l.b16 %v226
    %v366 = vunpack.c.h.b16 %v226
    %v367 = vunpack.c.l.b16 %v227
    %v368 = vunpack.c.h.b16 %v227
    %v369 = vunpack.c.l.b16 %v228
    %v370 = vunpack.c.l.b16 %v229
    %v371 = vunpack.c.h.b16 %v229
    %v372 = vunpack.c.l.b16 %v230
    %v373 = vunpack.c.h.b16 %v230
    %v374 = vunpack.c.l.b16 %v231
    %v375 = vunpack.c.l.b16 %v232
    %v376 = vunpack.c.h.b16 %v232
    %v377 = vunpack.c.l.b16 %v233
    %v378 = vunpack.c.h.b16 %v233
    %v379 = vunpack.c.l.b16 %v234
    %v380 = vunpack.c.l.b16 %v235
    %v381 = vunpack.c.h.b16 %v235
    %v382 = vunpack.c.l.b16 %v236
    %v383 = vunpack.c.h.b16 %v236
    %v384 = vunpack.c.l.b16 %v237
    %v385 = vunpack.c.l.b16 %v238
    %v386 = vunpack.c.h.b16 %v238
    %v387 = vunpack.c.l.b16 %v239
    %v388 = vunpack.c.h.b16 %v239
    %v389 = vunpack.c.l.b16 %v240
    %v390 = vunpack.c.l.b16 %v241
    %v391 = vunpack.c.h.b16 %v241
    %v392 = vunpack.c.l.b16 %v242
    %v393 = vunpack.c.h.b16 %v242
    %v394 = vunpack.c.l.b16 %v243
    %v395 = vunpack.c.l.b16 %v244
    %v396 = vunpack.c.h.b16 %v244
    %v397 = vunpack.c.l.b16 %v245
    %v398 = vunpack.c.h.b16 %v245
    %v399 = vunpack.c.l.b16 %v246
    %v400 = vunpack.c.l.b16 %v247
    %v401 = vunpack.c.h.b16 %v247
    %v402 = vunpack.c.l.b16 %v248
    %v403 = vunpack.c.h.b16 %v248
    %v404 = vunpack.c.l.b16 %v249
    %v405 = vpack.c.b16 %v330, %v325
    %v406 = vpack.c.b16 %v331, %v326
    %v407 = vpack.c.b16 %v332, %v327
    %v408 = vpack.c.b16 %v333, %v328
    %v409 = vpack.c.b16 %v334, %v329
    %v410 = vpack.c.b16 %v340, %v335
    %v411 = vpack.c.b16 %v341, %v336
    %v412 = vpack.c.b16 %v342, %v337
    %v413 = vpack.c.b16 %v343, %v338
    %v414 = vpack.c.b16 %v344, %v339
    %v415 = vpack.c.b16 %v350, %v345
    %v416 = vpack.c.b16 %v351, %v346
    %v417 = vpack.c.b16 %v352, %v347
    %v418 = vpack.c.b16 %v353, %v348
    %v419 = vpack.c.b16 %v354, %v349
    %v420 = vpack.c.b16 %v360, %v355
    %v421 = vpack.c.b16 %v361, %v356
    %v422 = vpack.c.b16 %v362, %v357
    %v423 = vpack.c.b16 %v363, %v358
    %v424 = vpack.c.b16 %v364, %v359
    %v425 = vpack.c.b16 %v370, %v365
    %v426 = vpack.c.b16 %v371, %v366
    %v427 = vpack.c.b16 %v372, %v367
    %v428 = vpack.c.b16 %v373, %v368
    %v429 = vpack.c.b16 %v374, %v369
    %v430 = vpack.c.b16 %v380, %v375
    %v431 = vpack.c.b16 %v381, %v376
    %v432 = vpack.c.b16 %v382, %v377
    %v433 = vpack.c.b16 %v383, %v378
    %v434 = vpack.c.b16 %v384, %v379
    %v435 = vpack.c.b16 %v390, %v385
    %v436 = vpack.c.b16 %v391, %v386
    %v437 = vpack.c.b16 %v392, %v387
    %v438 = vpack.c.b16 %v393, %v388
    %v439 = vpack.c.b16 %v394, %v389
    %v440 = vpack.c.b16 %v400, %v395
    %v441 = vpack.c.b16 %v401, %v396
    %v442 = vpack.c.b16 %v402, %v397
    %v443 = vpack.c.b16 %v403, %v398
    %v444 = vpack.c.b16 %v404, %v399
    %485 = vmatprep.subr.bf16.mxu0 %v441
    %486 = vmatpush1.bf16.msra.mxu0 %v440
    %487 = vmatprep.subr.bf16.mxu0 %v436
    %488 = vmatpush1.bf16.msra.mxu0 %v435
    %489 = vmatprep.subr.bf16.mxu0 %v431
    %490 = vmatpush1.bf16.msra.mxu0 %v430
    %491 = vmatprep.subr.bf16.mxu0 %v426
    %492 = vmatpush1.bf16.msra.mxu0 %v425
    %493 = vmatprep.subr.bf16.mxu0 %v421
    %494 = vmatpush1.bf16.msra.mxu0 %v420
    %495 = vmatprep.subr.bf16.mxu0 %v416
    %496 = vmatpush1.bf16.msra.mxu0 %v415
    %497 = vmatprep.subr.bf16.mxu0 %v411
    %498 = vmatpush1.bf16.msra.mxu0 %v410
    %499 = vmatprep.subr.bf16.mxu0 %v406
    %500 = vmatpush1.bf16.msra.mxu0 %v405
    %501 = vmatprep.subr.bf16.mxu0 0
    %502 = vmatpush2.bf16.msra.mxu0 0
    %503 = vmatprep.subr.bf16.mxu0 0
    %504 = vmatpush2.bf16.msra.mxu0 0
    %505 = vmatprep.subr.bf16.mxu0 0
    %506 = vmatpush2.bf16.msra.mxu0 0
    %507 = vmatprep.subr.bf16.mxu0 0
    %508 = vmatpush2.bf16.msra.mxu0 0
    %509 = vmatprep.subr.bf16.mxu0 0
    %510 = vmatpush2.bf16.msra.mxu0 0
    %511 = vmatprep.subr.bf16.mxu0 0
    %512 = vmatpush2.bf16.msra.mxu0 0
    %513 = vmatprep.subr.bf16.mxu0 0
    %514 = vmatpush2.bf16.msra.mxu0 0
    %515 = vmatprep.subr.bf16.mxu0 0
    %516 = vmatpush2.bf16.msra.mxu0 0
    %517 = vmatprep.mubr.bf16.mxu0 0
    %518 = vmatmul.mubr.bf16.gmra.mxu0 %v201
    %v519 = vpop.f32.mrf.mxu0
    %v520 = vadd.f32 %v255, %v519
    %v521 = vpop.f32.mrf.mxu0
    %v522 = vadd.f32 %v259, %v521
    %v523 = vpop.f32.mrf.mxu0
    %v524 = vpop.f32.mrf.mxu0
    %525 = vdwg.mxu0
    %526 = vmatprep.subr.bf16.mxu0 %v443
    %527 = vmatpush1.bf16.msra.mxu0 %v442
    %528 = vmatprep.subr.bf16.mxu0 %v438
    %529 = vmatpush1.bf16.msra.mxu0 %v437
    %530 = vmatprep.subr.bf16.mxu0 %v433
    %531 = vmatpush1.bf16.msra.mxu0 %v432
    %532 = vmatprep.subr.bf16.mxu0 %v428
    %533 = vmatpush1.bf16.msra.mxu0 %v427
    %534 = vmatprep.subr.bf16.mxu0 %v423
    %535 = vmatpush1.bf16.msra.mxu0 %v422
    %536 = vmatprep.subr.bf16.mxu0 %v418
    %537 = vmatpush1.bf16.msra.mxu0 %v417
    %538 = vmatprep.subr.bf16.mxu0 %v413
    %539 = vmatpush1.bf16.msra.mxu0 %v412
    %540 = vmatprep.subr.bf16.mxu0 %v408
    %541 = vmatpush1.bf16.msra.mxu0 %v407
    %542 = vmatprep.subr.bf16.mxu0 0
    %543 = vmatpush2.bf16.msra.mxu0 0
    %544 = vmatprep.subr.bf16.mxu0 0
    %545 = vmatpush2.bf16.msra.mxu0 0
    %546 = vmatprep.subr.bf16.mxu0 0
    %547 = vmatpush2.bf16.msra.mxu0 0
    %548 = vmatprep.subr.bf16.mxu0 0
    %549 = vmatpush2.bf16.msra.mxu0 0
    %550 = vmatprep.subr.bf16.mxu0 0
    %551 = vmatpush2.bf16.msra.mxu0 0
    %552 = vmatprep.subr.bf16.mxu0 0
    %553 = vmatpush2.bf16.msra.mxu0 0
    %554 = vmatprep.subr.bf16.mxu0 0
    %555 = vmatpush2.bf16.msra.mxu0 0
    %556 = vmatprep.subr.bf16.mxu0 0
    %557 = vmatpush2.bf16.msra.mxu0 0
    %558 = vmatprep.mubr.bf16.mxu0 0
    %559 = vmatmul.mubr.bf16.gmra.mxu0 %v201
    %v560 = vpop.f32.mrf.mxu0
    %v561 = vadd.f32 %v263, %v560
    %v562 = vpop.f32.mrf.mxu0
    %v563 = vadd.f32 %v267, %v562
    %v564 = vpop.f32.mrf.mxu0
    %v565 = vpop.f32.mrf.mxu0
    %566 = vdwg.mxu0
    %567 = vmatprep.subr.bf16.mxu0 0
    %568 = vmatpush1.bf16.msra.mxu0 %v444
    %569 = vmatprep.subr.bf16.mxu0 0
    %570 = vmatpush1.bf16.msra.mxu0 %v439
    %571 = vmatprep.subr.bf16.mxu0 0
    %572 = vmatpush1.bf16.msra.mxu0 %v434
    %573 = vmatprep.subr.bf16.mxu0 0
    %574 = vmatpush1.bf16.msra.mxu0 %v429
    %575 = vmatprep.subr.bf16.mxu0 0
    %576 = vmatpush1.bf16.msra.mxu0 %v424
    %577 = vmatprep.subr.bf16.mxu0 0
    %578 = vmatpush1.bf16.msra.mxu0 %v419
    %579 = vmatprep.subr.bf16.mxu0 0
    %580 = vmatpush1.bf16.msra.mxu0 %v414
    %581 = vmatprep.subr.bf16.mxu0 0
    %582 = vmatpush1.bf16.msra.mxu0 %v409
    %583 = vmatprep.subr.bf16.mxu0 0
    %584 = vmatpush2.bf16.msra.mxu0 0
    %585 = vmatprep.subr.bf16.mxu0 0
    %586 = vmatpush2.bf16.msra.mxu0 0
    %587 = vmatprep.subr.bf16.mxu0 0
    %588 = vmatpush2.bf16.msra.mxu0 0
    %589 = vmatprep.subr.bf16.mxu0 0
    %590 = vmatpush2.bf16.msra.mxu0 0
    %591 = vmatprep.subr.bf16.mxu0 0
    %592 = vmatpush2.bf16.msra.mxu0 0
    %593 = vmatprep.subr.bf16.mxu0 0
    %594 = vmatpush2.bf16.msra.mxu0 0
    %595 = vmatprep.subr.bf16.mxu0 0
    %596 = vmatpush2.bf16.msra.mxu0 0
    %597 = vmatprep.subr.bf16.mxu0 0
    %598 = vmatpush2.bf16.msra.mxu0 0
    %599 = vmatprep.mubr.bf16.mxu0 0
    %600 = vmatmul.mubr.bf16.gmra.mxu0 %v201
    %v601 = vpop.f32.mrf.mxu0
    %v602 = vadd.f32 %v271, %v601
    %v603 = vpop.f32.mrf.mxu0
    %v604 = vpop.f32.mrf.mxu0
    %v605 = vpop.f32.mrf.mxu0
    %606 = vdwg.mxu0
    %v607 = vmax.f32 %v520, 0.0
    %v608 = vmax.f32 %v522, 0.0
    %v609 = vmax.f32 %v561, 0.0
    %v610 = vmax.f32 %v563, 0.0
    %v611 = vmax.f32 %v602, 0.0
    %v612 = vpack.c.bf16 %v607, %v607
    %v613 = vpack.c.bf16 %v608, %v608
    %v614 = vpack.c.bf16 %v609, %v609
    %v615 = vpack.c.bf16 %v610, %v610
    %v616 = vpack.c.bf16 %v611, %v611
    %v617 = vld [vmem:[#allocation10] sm:$0xff]
    %v618 = vld [vmem:[#allocation10 + $0x8] sm:$0xff]
    %v619 = vld [vmem:[#allocation10 + $0x10] sm:$0xff]
    %v620 = vld [vmem:[#allocation10 + $0x18] sm:$0xff]
    %v621 = vld [vmem:[#allocation10 + $0x20] sm:$0xff]
    %v622 = vld [vmem:[#allocation10 + $0x28] sm:$0xff]
    %v623 = vld [vmem:[#allocation10 + $0x30] sm:$0xff]
    %v624 = vld [vmem:[#allocation10 + $0x38] sm:$0xff]
    %v625 = vld [vmem:[#allocation10 + $0x40] sm:$0xff]
    %v626 = vld [vmem:[#allocation10 + $0x48] sm:$0xff]
    %v627 = vld [vmem:[#allocation10 + $0x50] sm:$0xff]
    %v628 = vld [vmem:[#allocation10 + $0x58] sm:$0xff]
    %v629 = vld [vmem:[#allocation10 + $0x60] sm:$0xff]
    %v630 = vld [vmem:[#allocation10 + $0x68] sm:$0xff]
    %v631 = vld [vmem:[#allocation10 + $0x70] sm:$0xff]
    %v632 = vld [vmem:[#allocation10 + $0x78] sm:$0xff]
    %v633 = vld [vmem:[#allocation10 + $0x80] sm:$0xff]
    %v634 = vld [vmem:[#allocation10 + $0x88] sm:$0xff]
    %v635 = vld [vmem:[#allocation10 + $0x90] sm:$0xff]
    %v636 = vld [vmem:[#allocation10 + $0x98] sm:$0xff]
    %v637 = vld [vmem:[#allocation10 + $0xa0] sm:$0xff]
    %v638 = vld [vmem:[#allocation10 + $0xa8] sm:$0xff]
    %v639 = vld [vmem:[#allocation10 + $0xb0] sm:$0xff]
    %v640 = vld [vmem:[#allocation10 + $0xb8] sm:$0xff]
    %v641 = vld [vmem:[#allocation10 + $0xc0] sm:$0xff]
    %v642 = vld [vmem:[#allocation10 + $0xc8] sm:$0xff]
    %v643 = vld [vmem:[#allocation10 + $0xd0] sm:$0xff]
    %v644 = vld [vmem:[#allocation10 + $0xd8] sm:$0xff]
    %v645 = vld [vmem:[#allocation10 + $0xe0] sm:$0xff]
    %v646 = vld [vmem:[#allocation10 + $0xe8] sm:$0xff]
    %v647 = vld [vmem:[#allocation10 + $0xf0] sm:$0xff]
    %v648 = vld [vmem:[#allocation10 + $0xf8] sm:$0xff]
    %v649 = vld [vmem:[%s6] sm:$0x3]
    %v651 = vlaneseq
    %v652 = vshrl.u32 %v651, 7
    %v653 = vsub.s32 0, %v652
    %v654 = vrot.slane %v649, %v653
    %v655 = vlaneseq
    %v656 = vshrl.u32 %v655, 7
    %v657 = vsub.s32 1, %v656
    %v658 = vrot.slane %v649, %v657
    %v693 = vunpack.c.l.b16 %v617
    %v694 = vunpack.c.h.b16 %v617
    %v695 = vunpack.c.l.b16 %v618
    %v696 = vunpack.c.h.b16 %v618
    %v697 = vunpack.c.l.b16 %v619
    %v698 = vunpack.c.h.b16 %v619
    %v699 = vunpack.c.l.b16 %v620
    %v700 = vunpack.c.h.b16 %v620
    %v701 = vunpack.c.l.b16 %v621
    %v702 = vunpack.c.h.b16 %v621
    %v703 = vunpack.c.l.b16 %v622
    %v704 = vunpack.c.h.b16 %v622
    %v705 = vunpack.c.l.b16 %v623
    %v706 = vunpack.c.h.b16 %v623
    %v707 = vunpack.c.l.b16 %v624
    %v708 = vunpack.c.h.b16 %v624
    %v709 = vunpack.c.l.b16 %v625
    %v710 = vunpack.c.h.b16 %v625
    %v711 = vunpack.c.l.b16 %v626
    %v712 = vunpack.c.h.b16 %v626
    %v713 = vunpack.c.l.b16 %v627
    %v714 = vunpack.c.h.b16 %v627
    %v715 = vunpack.c.l.b16 %v628
    %v716 = vunpack.c.h.b16 %v628
    %v717 = vunpack.c.l.b16 %v629
    %v718 = vunpack.c.h.b16 %v629
    %v719 = vunpack.c.l.b16 %v630
    %v720 = vunpack.c.h.b16 %v630
    %v721 = vunpack.c.l.b16 %v631
    %v722 = vunpack.c.h.b16 %v631
    %v723 = vunpack.c.l.b16 %v632
    %v724 = vunpack.c.h.b16 %v632
    %v725 = vunpack.c.l.b16 %v633
    %v726 = vunpack.c.h.b16 %v633
    %v727 = vunpack.c.l.b16 %v634
    %v728 = vunpack.c.h.b16 %v634
    %v729 = vunpack.c.l.b16 %v635
    %v730 = vunpack.c.h.b16 %v635
    %v731 = vunpack.c.l.b16 %v636
    %v732 = vunpack.c.h.b16 %v636
    %v733 = vunpack.c.l.b16 %v637
    %v734 = vunpack.c.h.b16 %v637
    %v735 = vunpack.c.l.b16 %v638
    %v736 = vunpack.c.h.b16 %v638
    %v737 = vunpack.c.l.b16 %v639
    %v738 = vunpack.c.h.b16 %v639
    %v739 = vunpack.c.l.b16 %v640
    %v740 = vunpack.c.h.b16 %v640
    %v741 = vunpack.c.l.b16 %v641
    %v742 = vunpack.c.h.b16 %v641
    %v743 = vunpack.c.l.b16 %v642
    %v744 = vunpack.c.h.b16 %v642
    %v745 = vunpack.c.l.b16 %v643
    %v746 = vunpack.c.h.b16 %v643
    %v747 = vunpack.c.l.b16 %v644
    %v748 = vunpack.c.h.b16 %v644
    %v749 = vunpack.c.l.b16 %v645
    %v750 = vunpack.c.h.b16 %v645
    %v751 = vunpack.c.l.b16 %v646
    %v752 = vunpack.c.h.b16 %v646
    %v753 = vunpack.c.l.b16 %v647
    %v754 = vunpack.c.h.b16 %v647
    %v755 = vunpack.c.l.b16 %v648
    %v756 = vunpack.c.h.b16 %v648
    %v757 = vpack.c.b16 %v695, %v693
    %v758 = vpack.c.b16 %v696, %v694
    %v759 = vpack.c.b16 %v699, %v697
    %v760 = vpack.c.b16 %v700, %v698
    %v761 = vpack.c.b16 %v703, %v701
    %v762 = vpack.c.b16 %v704, %v702
    %v763 = vpack.c.b16 %v707, %v705
    %v764 = vpack.c.b16 %v708, %v706
    %v765 = vpack.c.b16 %v711, %v709
    %v766 = vpack.c.b16 %v712, %v710
    %v767 = vpack.c.b16 %v715, %v713
    %v768 = vpack.c.b16 %v716, %v714
    %v769 = vpack.c.b16 %v719, %v717
    %v770 = vpack.c.b16 %v720, %v718
    %v771 = vpack.c.b16 %v723, %v721
    %v772 = vpack.c.b16 %v724, %v722
    %v773 = vpack.c.b16 %v727, %v725
    %v774 = vpack.c.b16 %v728, %v726
    %v775 = vpack.c.b16 %v731, %v729
    %v776 = vpack.c.b16 %v732, %v730
    %v777 = vpack.c.b16 %v735, %v733
    %v778 = vpack.c.b16 %v736, %v734
    %v779 = vpack.c.b16 %v739, %v737
    %v780 = vpack.c.b16 %v740, %v738
    %v781 = vpack.c.b16 %v743, %v741
    %v782 = vpack.c.b16 %v744, %v742
    %v783 = vpack.c.b16 %v747, %v745
    %v784 = vpack.c.b16 %v748, %v746
    %v785 = vpack.c.b16 %v751, %v749
    %v786 = vpack.c.b16 %v752, %v750
    %v787 = vpack.c.b16 %v755, %v753
    %v788 = vpack.c.b16 %v756, %v754
    %821 = vmatprep.subr.bf16.mxu0 %v772
    %822 = vmatpush1.bf16.msra.mxu0 %v771
    %823 = vmatprep.subr.bf16.mxu0 %v770
    %824 = vmatpush1.bf16.msra.mxu0 %v769
    %825 = vmatprep.subr.bf16.mxu0 %v768
    %826 = vmatpush1.bf16.msra.mxu0 %v767
    %827 = vmatprep.subr.bf16.mxu0 %v766
    %828 = vmatpush1.bf16.msra.mxu0 %v765
    %829 = vmatprep.subr.bf16.mxu0 %v764
    %830 = vmatpush1.bf16.msra.mxu0 %v763
    %831 = vmatprep.subr.bf16.mxu0 %v762
    %832 = vmatpush1.bf16.msra.mxu0 %v761
    %833 = vmatprep.subr.bf16.mxu0 %v760
    %834 = vmatpush1.bf16.msra.mxu0 %v759
    %835 = vmatprep.subr.bf16.mxu0 %v758
    %836 = vmatpush1.bf16.msra.mxu0 %v757
    %837 = vmatprep.subr.bf16.mxu0 %v788
    %838 = vmatpush2.bf16.msra.mxu0 %v787
    %839 = vmatprep.subr.bf16.mxu0 %v786
    %840 = vmatpush2.bf16.msra.mxu0 %v785
    %841 = vmatprep.subr.bf16.mxu0 %v784
    %842 = vmatpush2.bf16.msra.mxu0 %v783
    %843 = vmatprep.subr.bf16.mxu0 %v782
    %844 = vmatpush2.bf16.msra.mxu0 %v781
    %845 = vmatprep.subr.bf16.mxu0 %v780
    %846 = vmatpush2.bf16.msra.mxu0 %v779
    %847 = vmatprep.subr.bf16.mxu0 %v778
    %848 = vmatpush2.bf16.msra.mxu0 %v777
    %849 = vmatprep.subr.bf16.mxu0 %v776
    %850 = vmatpush2.bf16.msra.mxu0 %v775
    %851 = vmatprep.subr.bf16.mxu0 %v774
    %852 = vmatpush2.bf16.msra.mxu0 %v773
    %853 = vmatprep.mubr.bf16.mxu0 %v613
    %854 = vmatmul.mubr.bf16.gmra.mxu0 %v612
    %v855 = vpop.f32.mrf.mxu0
    %v856 = vadd.f32 %v654, %v855
    %v857 = vpop.f32.mrf.mxu0
    %v858 = vadd.f32 %v658, %v857
    %v859 = vpop.f32.mrf.mxu0
    %v860 = vpop.f32.mrf.mxu0
    %861 = vdwg.mxu0
    %v862 = vmax.f32 %v856, 0.0
    %v863 = vmax.f32 %v858, 0.0
    %v864 = vpack.c.bf16 %v862, %v862
    %v865 = vpack.c.bf16 %v863, %v863
    %866 = vmatprep.subr.bf16.mxu0 %v772
    %867 = vmatpush1.bf16.msra.mxu0 %v771
    %868 = vmatprep.subr.bf16.mxu0 %v770
    %869 = vmatpush1.bf16.msra.mxu0 %v769
    %870 = vmatprep.subr.bf16.mxu0 %v768
    %871 = vmatpush1.bf16.msra.mxu0 %v767
    %872 = vmatprep.subr.bf16.mxu0 %v766
    %873 = vmatpush1.bf16.msra.mxu0 %v765
    %874 = vmatprep.subr.bf16.mxu0 %v764
    %875 = vmatpush1.bf16.msra.mxu0 %v763
    %876 = vmatprep.subr.bf16.mxu0 %v762
    %877 = vmatpush1.bf16.msra.mxu0 %v761
    %878 = vmatprep.subr.bf16.mxu0 %v760
    %879 = vmatpush1.bf16.msra.mxu0 %v759
    %880 = vmatprep.subr.bf16.mxu0 %v758
    %881 = vmatpush1.bf16.msra.mxu0 %v757
    %882 = vmatprep.subr.bf16.mxu0 %v788
    %883 = vmatpush2.bf16.msra.mxu0 %v787
    %884 = vmatprep.subr.bf16.mxu0 %v786
    %885 = vmatpush2.bf16.msra.mxu0 %v785
    %886 = vmatprep.subr.bf16.mxu0 %v784
    %887 = vmatpush2.bf16.msra.mxu0 %v783
    %888 = vmatprep.subr.bf16.mxu0 %v782
    %889 = vmatpush2.bf16.msra.mxu0 %v781
    %890 = vmatprep.subr.bf16.mxu0 %v780
    %891 = vmatpush2.bf16.msra.mxu0 %v779
    %892 = vmatprep.subr.bf16.mxu0 %v778
    %893 = vmatpush2.bf16.msra.mxu0 %v777
    %894 = vmatprep.subr.bf16.mxu0 %v776
    %895 = vmatpush2.bf16.msra.mxu0 %v775
    %896 = vmatprep.subr.bf16.mxu0 %v774
    %897 = vmatpush2.bf16.msra.mxu0 %v773
    %898 = vmatprep.mubr.bf16.mxu0 %v614
    %899 = vmatmul.mubr.bf16.gmra.mxu0 %v613
    %v900 = vpop.f32.mrf.mxu0
    %v901 = vadd.f32 %v654, %v900
    %v902 = vpop.f32.mrf.mxu0
    %v903 = vadd.f32 %v658, %v902
    %v904 = vpop.f32.mrf.mxu0
    %v905 = vpop.f32.mrf.mxu0
    %906 = vdwg.mxu0
    %v907 = vmax.f32 %v901, 0.0
    %v908 = vmax.f32 %v903, 0.0
    %v909 = vpack.c.bf16 %v907, %v907
    %v910 = vpack.c.bf16 %v908, %v908
    %911 = vmatprep.subr.bf16.mxu0 %v772
    %912 = vmatpush1.bf16.msra.mxu0 %v771
    %913 = vmatprep.subr.bf16.mxu0 %v770
    %914 = vmatpush1.bf16.msra.mxu0 %v769
    %915 = vmatprep.subr.bf16.mxu0 %v768
    %916 = vmatpush1.bf16.msra.mxu0 %v767
    %917 = vmatprep.subr.bf16.mxu0 %v766
    %918 = vmatpush1.bf16.msra.mxu0 %v765
    %919 = vmatprep.subr.bf16.mxu0 %v764
    %920 = vmatpush1.bf16.msra.mxu0 %v763
    %921 = vmatprep.subr.bf16.mxu0 %v762
    %922 = vmatpush1.bf16.msra.mxu0 %v761
    %923 = vmatprep.subr.bf16.mxu0 %v760
    %924 = vmatpush1.bf16.msra.mxu0 %v759
    %925 = vmatprep.subr.bf16.mxu0 %v758
    %926 = vmatpush1.bf16.msra.mxu0 %v757
    %927 = vmatprep.subr.bf16.mxu0 %v788
    %928 = vmatpush2.bf16.msra.mxu0 %v787
    %929 = vmatprep.subr.bf16.mxu0 %v786
    %930 = vmatpush2.bf16.msra.mxu0 %v785
    %931 = vmatprep.subr.bf16.mxu0 %v784
    %932 = vmatpush2.bf16.msra.mxu0 %v783
    %933 = vmatprep.subr.bf16.mxu0 %v782
    %934 = vmatpush2.bf16.msra.mxu0 %v781
    %935 = vmatprep.subr.bf16.mxu0 %v780
    %936 = vmatpush2.bf16.msra.mxu0 %v779
    %937 = vmatprep.subr.bf16.mxu0 %v778
    %938 = vmatpush2.bf16.msra.mxu0 %v777
    %939 = vmatprep.subr.bf16.mxu0 %v776
    %940 = vmatpush2.bf16.msra.mxu0 %v775
    %941 = vmatprep.subr.bf16.mxu0 %v774
    %942 = vmatpush2.bf16.msra.mxu0 %v773
    %943 = vmatprep.mubr.bf16.mxu0 %v615
    %944 = vmatmul.mubr.bf16.gmra.mxu0 %v614
    %v945 = vpop.f32.mrf.mxu0
    %v946 = vadd.f32 %v654, %v945
    %v947 = vpop.f32.mrf.mxu0
    %v948 = vadd.f32 %v658, %v947
    %v949 = vpop.f32.mrf.mxu0
    %v950 = vpop.f32.mrf.mxu0
    %951 = vdwg.mxu0
    %v952 = vmax.f32 %v946, 0.0
    %v953 = vmax.f32 %v948, 0.0
    %v954 = vpack.c.bf16 %v952, %v952
    %v955 = vpack.c.bf16 %v953, %v953
    %956 = vmatprep.subr.bf16.mxu0 %v772
    %957 = vmatpush1.bf16.msra.mxu0 %v771
    %958 = vmatprep.subr.bf16.mxu0 %v770
    %959 = vmatpush1.bf16.msra.mxu0 %v769
    %960 = vmatprep.subr.bf16.mxu0 %v768
    %961 = vmatpush1.bf16.msra.mxu0 %v767
    %962 = vmatprep.subr.bf16.mxu0 %v766
    %963 = vmatpush1.bf16.msra.mxu0 %v765
    %964 = vmatprep.subr.bf16.mxu0 %v764
    %965 = vmatpush1.bf16.msra.mxu0 %v763
    %966 = vmatprep.subr.bf16.mxu0 %v762
    %967 = vmatpush1.bf16.msra.mxu0 %v761
    %968 = vmatprep.subr.bf16.mxu0 %v760
    %969 = vmatpush1.bf16.msra.mxu0 %v759
    %970 = vmatprep.subr.bf16.mxu0 %v758
    %971 = vmatpush1.bf16.msra.mxu0 %v757
    %972 = vmatprep.subr.bf16.mxu0 %v788
    %973 = vmatpush2.bf16.msra.mxu0 %v787
    %974 = vmatprep.subr.bf16.mxu0 %v786
    %975 = vmatpush2.bf16.msra.mxu0 %v785
    %976 = vmatprep.subr.bf16.mxu0 %v784
    %977 = vmatpush2.bf16.msra.mxu0 %v783
    %978 = vmatprep.subr.bf16.mxu0 %v782
    %979 = vmatpush2.bf16.msra.mxu0 %v781
    %980 = vmatprep.subr.bf16.mxu0 %v780
    %981 = vmatpush2.bf16.msra.mxu0 %v779
    %982 = vmatprep.subr.bf16.mxu0 %v778
    %983 = vmatpush2.bf16.msra.mxu0 %v777
    %984 = vmatprep.subr.bf16.mxu0 %v776
    %985 = vmatpush2.bf16.msra.mxu0 %v775
    %986 = vmatprep.subr.bf16.mxu0 %v774
    %987 = vmatpush2.bf16.msra.mxu0 %v773
    %988 = vmatprep.mubr.bf16.mxu0 %v616
    %989 = vmatmul.mubr.bf16.gmra.mxu0 %v615
    %v990 = vpop.f32.mrf.mxu0
    %v991 = vadd.f32 %v654, %v990
    %v992 = vpop.f32.mrf.mxu0
    %v993 = vpop.f32.mrf.mxu0
    %v994 = vpop.f32.mrf.mxu0
    %995 = vdwg.mxu0
    %v996 = vmax.f32 %v991, 0.0
    %v997 = vpack.c.bf16 %v996, %v996
    %v998 = vld [vmem:[#allocation11] sm:$0xff]
    %v999 = vld [vmem:[#allocation11 + $0x8] sm:$0xff]
    %v1000 = vld [vmem:[#allocation11 + $0x10] sm:$0xff]
    %v1001 = vld [vmem:[#allocation11 + $0x18] sm:$0xff]
    %v1002 = vld [vmem:[#allocation11 + $0x20] sm:$0xff]
    %v1003 = vld [vmem:[#allocation11 + $0x28] sm:$0xff]
    %v1004 = vld [vmem:[#allocation11 + $0x30] sm:$0xff]
    %v1005 = vld [vmem:[#allocation11 + $0x38] sm:$0xff]
    %v1006 = vld [vmem:[#allocation11 + $0x40] sm:$0xff]
    %v1007 = vld [vmem:[#allocation11 + $0x48] sm:$0xff]
    %v1008 = vld [vmem:[#allocation11 + $0x50] sm:$0xff]
    %v1009 = vld [vmem:[#allocation11 + $0x58] sm:$0xff]
    %v1010 = vld [vmem:[#allocation11 + $0x60] sm:$0xff]
    %v1011 = vld [vmem:[#allocation11 + $0x68] sm:$0xff]
    %v1012 = vld [vmem:[#allocation11 + $0x70] sm:$0xff]
    %v1013 = vld [vmem:[#allocation11 + $0x78] sm:$0xff]
    %v1014 = vld [vmem:[#allocation11 + $0x80] sm:$0xff]
    %v1015 = vld [vmem:[#allocation11 + $0x88] sm:$0xff]
    %v1016 = vld [vmem:[#allocation11 + $0x90] sm:$0xff]
    %v1017 = vld [vmem:[#allocation11 + $0x98] sm:$0xff]
    %v1018 = vld [vmem:[#allocation11 + $0xa0] sm:$0xff]
    %v1019 = vld [vmem:[#allocation11 + $0xa8] sm:$0xff]
    %v1020 = vld [vmem:[#allocation11 + $0xb0] sm:$0xff]
    %v1021 = vld [vmem:[#allocation11 + $0xb8] sm:$0xff]
    %v1022 = vld [vmem:[#allocation11 + $0xc0] sm:$0xff]
    %v1023 = vld [vmem:[#allocation11 + $0xc8] sm:$0xff]
    %v1024 = vld [vmem:[#allocation11 + $0xd0] sm:$0xff]
    %v1025 = vld [vmem:[#allocation11 + $0xd8] sm:$0xff]
    %v1026 = vld [vmem:[#allocation11 + $0xe0] sm:$0xff]
    %v1027 = vld [vmem:[#allocation11 + $0xe8] sm:$0xff]
    %v1028 = vld [vmem:[#allocation11 + $0xf0] sm:$0xff]
    %v1029 = vld [vmem:[#allocation11 + $0xf8] sm:$0xff]
    %v1030 = vld [vmem:[%s8] sm:$0x3]
    %v1032 = vlaneseq
    %v1033 = vshrl.u32 %v1032, 7
    %v1034 = vsub.s32 0, %v1033
    %v1035 = vrot.slane %v1030, %v1034
    %v1036 = vlaneseq
    %v1037 = vshrl.u32 %v1036, 7
    %v1038 = vsub.s32 1, %v1037
    %v1039 = vrot.slane %v1030, %v1038
    %v1074 = vunpack.c.l.b16 %v998
    %v1075 = vunpack.c.h.b16 %v998
    %v1076 = vunpack.c.l.b16 %v999
    %v1077 = vunpack.c.h.b16 %v999
    %v1078 = vunpack.c.l.b16 %v1000
    %v1079 = vunpack.c.h.b16 %v1000
    %v1080 = vunpack.c.l.b16 %v1001
    %v1081 = vunpack.c.h.b16 %v1001
    %v1082 = vunpack.c.l.b16 %v1002
    %v1083 = vunpack.c.h.b16 %v1002
    %v1084 = vunpack.c.l.b16 %v1003
    %v1085 = vunpack.c.h.b16 %v1003
    %v1086 = vunpack.c.l.b16 %v1004
    %v1087 = vunpack.c.h.b16 %v1004
    %v1088 = vunpack.c.l.b16 %v1005
    %v1089 = vunpack.c.h.b16 %v1005
    %v1090 = vunpack.c.l.b16 %v1006
    %v1091 = vunpack.c.h.b16 %v1006
    %v1092 = vunpack.c.l.b16 %v1007
    %v1093 = vunpack.c.h.b16 %v1007
    %v1094 = vunpack.c.l.b16 %v1008
    %v1095 = vunpack.c.h.b16 %v1008
    %v1096 = vunpack.c.l.b16 %v1009
    %v1097 = vunpack.c.h.b16 %v1009
    %v1098 = vunpack.c.l.b16 %v1010
    %v1099 = vunpack.c.h.b16 %v1010
    %v1100 = vunpack.c.l.b16 %v1011
    %v1101 = vunpack.c.h.b16 %v1011
    %v1102 = vunpack.c.l.b16 %v1012
    %v1103 = vunpack.c.h.b16 %v1012
    %v1104 = vunpack.c.l.b16 %v1013
    %v1105 = vunpack.c.h.b16 %v1013
    %v1106 = vunpack.c.l.b16 %v1014
    %v1107 = vunpack.c.h.b16 %v1014
    %v1108 = vunpack.c.l.b16 %v1015
    %v1109 = vunpack.c.h.b16 %v1015
    %v1110 = vunpack.c.l.b16 %v1016
    %v1111 = vunpack.c.h.b16 %v1016
    %v1112 = vunpack.c.l.b16 %v1017
    %v1113 = vunpack.c.h.b16 %v1017
    %v1114 = vunpack.c.l.b16 %v1018
    %v1115 = vunpack.c.h.b16 %v1018
    %v1116 = vunpack.c.l.b16 %v1019
    %v1117 = vunpack.c.h.b16 %v1019
    %v1118 = vunpack.c.l.b16 %v1020
    %v1119 = vunpack.c.h.b16 %v1020
    %v1120 = vunpack.c.l.b16 %v1021
    %v1121 = vunpack.c.h.b16 %v1021
    %v1122 = vunpack.c.l.b16 %v1022
    %v1123 = vunpack.c.h.b16 %v1022
    %v1124 = vunpack.c.l.b16 %v1023
    %v1125 = vunpack.c.h.b16 %v1023
    %v1126 = vunpack.c.l.b16 %v1024
    %v1127 = vunpack.c.h.b16 %v1024
    %v1128 = vunpack.c.l.b16 %v1025
    %v1129 = vunpack.c.h.b16 %v1025
    %v1130 = vunpack.c.l.b16 %v1026
    %v1131 = vunpack.c.h.b16 %v1026
    %v1132 = vunpack.c.l.b16 %v1027
    %v1133 = vunpack.c.h.b16 %v1027
    %v1134 = vunpack.c.l.b16 %v1028
    %v1135 = vunpack.c.h.b16 %v1028
    %v1136 = vunpack.c.l.b16 %v1029
    %v1137 = vunpack.c.h.b16 %v1029
    %v1138 = vpack.c.b16 %v1076, %v1074
    %v1139 = vpack.c.b16 %v1077, %v1075
    %v1140 = vpack.c.b16 %v1080, %v1078
    %v1141 = vpack.c.b16 %v1081, %v1079
    %v1142 = vpack.c.b16 %v1084, %v1082
    %v1143 = vpack.c.b16 %v1085, %v1083
    %v1144 = vpack.c.b16 %v1088, %v1086
    %v1145 = vpack.c.b16 %v1089, %v1087
    %v1146 = vpack.c.b16 %v1092, %v1090
    %v1147 = vpack.c.b16 %v1093, %v1091
    %v1148 = vpack.c.b16 %v1096, %v1094
    %v1149 = vpack.c.b16 %v1097, %v1095
    %v1150 = vpack.c.b16 %v1100, %v1098
    %v1151 = vpack.c.b16 %v1101, %v1099
    %v1152 = vpack.c.b16 %v1104, %v1102
    %v1153 = vpack.c.b16 %v1105, %v1103
    %v1154 = vpack.c.b16 %v1108, %v1106
    %v1155 = vpack.c.b16 %v1109, %v1107
    %v1156 = vpack.c.b16 %v1112, %v1110
    %v1157 = vpack.c.b16 %v1113, %v1111
    %v1158 = vpack.c.b16 %v1116, %v1114
    %v1159 = vpack.c.b16 %v1117, %v1115
    %v1160 = vpack.c.b16 %v1120, %v1118
    %v1161 = vpack.c.b16 %v1121, %v1119
    %v1162 = vpack.c.b16 %v1124, %v1122
    %v1163 = vpack.c.b16 %v1125, %v1123
    %v1164 = vpack.c.b16 %v1128, %v1126
    %v1165 = vpack.c.b16 %v1129, %v1127
    %v1166 = vpack.c.b16 %v1132, %v1130
    %v1167 = vpack.c.b16 %v1133, %v1131
    %v1168 = vpack.c.b16 %v1136, %v1134
    %v1169 = vpack.c.b16 %v1137, %v1135
    %1202 = vmatprep.subr.bf16.mxu0 %v1153
    %1203 = vmatpush1.bf16.msra.mxu0 %v1152
    %1204 = vmatprep.subr.bf16.mxu0 %v1151
    %1205 = vmatpush1.bf16.msra.mxu0 %v1150
    %1206 = vmatprep.subr.bf16.mxu0 %v1149
    %1207 = vmatpush1.bf16.msra.mxu0 %v1148
    %1208 = vmatprep.subr.bf16.mxu0 %v1147
    %1209 = vmatpush1.bf16.msra.mxu0 %v1146
    %1210 = vmatprep.subr.bf16.mxu0 %v1145
    %1211 = vmatpush1.bf16.msra.mxu0 %v1144
    %1212 = vmatprep.subr.bf16.mxu0 %v1143
    %1213 = vmatpush1.bf16.msra.mxu0 %v1142
    %1214 = vmatprep.subr.bf16.mxu0 %v1141
    %1215 = vmatpush1.bf16.msra.mxu0 %v1140
    %1216 = vmatprep.subr.bf16.mxu0 %v1139
    %1217 = vmatpush1.bf16.msra.mxu0 %v1138
    %1218 = vmatprep.subr.bf16.mxu0 %v1169
    %1219 = vmatpush2.bf16.msra.mxu0 %v1168
    %1220 = vmatprep.subr.bf16.mxu0 %v1167
    %1221 = vmatpush2.bf16.msra.mxu0 %v1166
    %1222 = vmatprep.subr.bf16.mxu0 %v1165
    %1223 = vmatpush2.bf16.msra.mxu0 %v1164
    %1224 = vmatprep.subr.bf16.mxu0 %v1163
    %1225 = vmatpush2.bf16.msra.mxu0 %v1162
    %1226 = vmatprep.subr.bf16.mxu0 %v1161
    %1227 = vmatpush2.bf16.msra.mxu0 %v1160
    %1228 = vmatprep.subr.bf16.mxu0 %v1159
    %1229 = vmatpush2.bf16.msra.mxu0 %v1158
    %1230 = vmatprep.subr.bf16.mxu0 %v1157
    %1231 = vmatpush2.bf16.msra.mxu0 %v1156
    %1232 = vmatprep.subr.bf16.mxu0 %v1155
    %1233 = vmatpush2.bf16.msra.mxu0 %v1154
    %1234 = vmatprep.mubr.bf16.mxu0 %v865
    %1235 = vmatmul.mubr.bf16.gmra.mxu0 %v864
    %v1236 = vpop.f32.mrf.mxu0
    %v1237 = vadd.f32 %v1035, %v1236
    %v1238 = vpop.f32.mrf.mxu0
    %v1239 = vadd.f32 %v1039, %v1238
    %v1240 = vpop.f32.mrf.mxu0
    %v1241 = vpop.f32.mrf.mxu0
    %1242 = vdwg.mxu0
    %v1243 = vmax.f32 %v1237, 0.0
    %v1244 = vmax.f32 %v1239, 0.0
    %v1245 = vpack.c.bf16 %v1243, %v1243
    %v1246 = vpack.c.bf16 %v1244, %v1244
    %1247 = vmatprep.subr.bf16.mxu0 %v1153
    %1248 = vmatpush1.bf16.msra.mxu0 %v1152
    %1249 = vmatprep.subr.bf16.mxu0 %v1151
    %1250 = vmatpush1.bf16.msra.mxu0 %v1150
    %1251 = vmatprep.subr.bf16.mxu0 %v1149
    %1252 = vmatpush1.bf16.msra.mxu0 %v1148
    %1253 = vmatprep.subr.bf16.mxu0 %v1147
    %1254 = vmatpush1.bf16.msra.mxu0 %v1146
    %1255 = vmatprep.subr.bf16.mxu0 %v1145
    %1256 = vmatpush1.bf16.msra.mxu0 %v1144
    %1257 = vmatprep.subr.bf16.mxu0 %v1143
    %1258 = vmatpush1.bf16.msra.mxu0 %v1142
    %1259 = vmatprep.subr.bf16.mxu0 %v1141
    %1260 = vmatpush1.bf16.msra.mxu0 %v1140
    %1261 = vmatprep.subr.bf16.mxu0 %v1139
    %1262 = vmatpush1.bf16.msra.mxu0 %v1138
    %1263 = vmatprep.subr.bf16.mxu0 %v1169
    %1264 = vmatpush2.bf16.msra.mxu0 %v1168
    %1265 = vmatprep.subr.bf16.mxu0 %v1167
    %1266 = vmatpush2.bf16.msra.mxu0 %v1166
    %1267 = vmatprep.subr.bf16.mxu0 %v1165
    %1268 = vmatpush2.bf16.msra.mxu0 %v1164
    %1269 = vmatprep.subr.bf16.mxu0 %v1163
    %1270 = vmatpush2.bf16.msra.mxu0 %v1162
    %1271 = vmatprep.subr.bf16.mxu0 %v1161
    %1272 = vmatpush2.bf16.msra.mxu0 %v1160
    %1273 = vmatprep.subr.bf16.mxu0 %v1159
    %1274 = vmatpush2.bf16.msra.mxu0 %v1158
    %1275 = vmatprep.subr.bf16.mxu0 %v1157
    %1276 = vmatpush2.bf16.msra.mxu0 %v1156
    %1277 = vmatprep.subr.bf16.mxu0 %v1155
    %1278 = vmatpush2.bf16.msra.mxu0 %v1154
    %1279 = vmatprep.mubr.bf16.mxu0 %v909
    %1280 = vmatmul.mubr.bf16.gmra.mxu0 %v865
    %v1281 = vpop.f32.mrf.mxu0
    %v1282 = vadd.f32 %v1035, %v1281
    %v1283 = vpop.f32.mrf.mxu0
    %v1284 = vadd.f32 %v1039, %v1283
    %v1285 = vpop.f32.mrf.mxu0
    %v1286 = vpop.f32.mrf.mxu0
    %1287 = vdwg.mxu0
    %v1288 = vmax.f32 %v1282, 0.0
    %v1289 = vmax.f32 %v1284, 0.0
    %v1290 = vpack.c.bf16 %v1288, %v1288
    %v1291 = vpack.c.bf16 %v1289, %v1289
    %1292 = vmatprep.subr.bf16.mxu0 %v1153
    %1293 = vmatpush1.bf16.msra.mxu0 %v1152
    %1294 = vmatprep.subr.bf16.mxu0 %v1151
    %1295 = vmatpush1.bf16.msra.mxu0 %v1150
    %1296 = vmatprep.subr.bf16.mxu0 %v1149
    %1297 = vmatpush1.bf16.msra.mxu0 %v1148
    %1298 = vmatprep.subr.bf16.mxu0 %v1147
    %1299 = vmatpush1.bf16.msra.mxu0 %v1146
    %1300 = vmatprep.subr.bf16.mxu0 %v1145
    %1301 = vmatpush1.bf16.msra.mxu0 %v1144
    %1302 = vmatprep.subr.bf16.mxu0 %v1143
    %1303 = vmatpush1.bf16.msra.mxu0 %v1142
    %1304 = vmatprep.subr.bf16.mxu0 %v1141
    %1305 = vmatpush1.bf16.msra.mxu0 %v1140
    %1306 = vmatprep.subr.bf16.mxu0 %v1139
    %1307 = vmatpush1.bf16.msra.mxu0 %v1138
    %1308 = vmatprep.subr.bf16.mxu0 %v1169
    %1309 = vmatpush2.bf16.msra.mxu0 %v1168
    %1310 = vmatprep.subr.bf16.mxu0 %v1167
    %1311 = vmatpush2.bf16.msra.mxu0 %v1166
    %1312 = vmatprep.subr.bf16.mxu0 %v1165
    %1313 = vmatpush2.bf16.msra.mxu0 %v1164
    %1314 = vmatprep.subr.bf16.mxu0 %v1163
    %1315 = vmatpush2.bf16.msra.mxu0 %v1162
    %1316 = vmatprep.subr.bf16.mxu0 %v1161
    %1317 = vmatpush2.bf16.msra.mxu0 %v1160
    %1318 = vmatprep.subr.bf16.mxu0 %v1159
    %1319 = vmatpush2.bf16.msra.mxu0 %v1158
    %1320 = vmatprep.subr.bf16.mxu0 %v1157
    %1321 = vmatpush2.bf16.msra.mxu0 %v1156
    %1322 = vmatprep.subr.bf16.mxu0 %v1155
    %1323 = vmatpush2.bf16.msra.mxu0 %v1154
    %1324 = vmatprep.mubr.bf16.mxu0 %v910
    %1325 = vmatmul.mubr.bf16.gmra.mxu0 %v909
    %v1326 = vpop.f32.mrf.mxu0
    %v1327 = vadd.f32 %v1035, %v1326
    %v1328 = vpop.f32.mrf.mxu0
    %v1329 = vadd.f32 %v1039, %v1328
    %v1330 = vpop.f32.mrf.mxu0
    %v1331 = vpop.f32.mrf.mxu0
    %1332 = vdwg.mxu0
    %v1333 = vmax.f32 %v1327, 0.0
    %v1334 = vmax.f32 %v1329, 0.0
    %v1335 = vpack.c.bf16 %v1333, %v1333
    %v1336 = vpack.c.bf16 %v1334, %v1334
    %1337 = vmatprep.subr.bf16.mxu0 %v1153
    %1338 = vmatpush1.bf16.msra.mxu0 %v1152
    %1339 = vmatprep.subr.bf16.mxu0 %v1151
    %1340 = vmatpush1.bf16.msra.mxu0 %v1150
    %1341 = vmatprep.subr.bf16.mxu0 %v1149
    %1342 = vmatpush1.bf16.msra.mxu0 %v1148
    %1343 = vmatprep.subr.bf16.mxu0 %v1147
    %1344 = vmatpush1.bf16.msra.mxu0 %v1146
    %1345 = vmatprep.subr.bf16.mxu0 %v1145
    %1346 = vmatpush1.bf16.msra.mxu0 %v1144
    %1347 = vmatprep.subr.bf16.mxu0 %v1143
    %1348 = vmatpush1.bf16.msra.mxu0 %v1142
    %1349 = vmatprep.subr.bf16.mxu0 %v1141
    %1350 = vmatpush1.bf16.msra.mxu0 %v1140
    %1351 = vmatprep.subr.bf16.mxu0 %v1139
    %1352 = vmatpush1.bf16.msra.mxu0 %v1138
    %1353 = vmatprep.subr.bf16.mxu0 %v1169
    %1354 = vmatpush2.bf16.msra.mxu0 %v1168
    %1355 = vmatprep.subr.bf16.mxu0 %v1167
    %1356 = vmatpush2.bf16.msra.mxu0 %v1166
    %1357 = vmatprep.subr.bf16.mxu0 %v1165
    %1358 = vmatpush2.bf16.msra.mxu0 %v1164
    %1359 = vmatprep.subr.bf16.mxu0 %v1163
    %1360 = vmatpush2.bf16.msra.mxu0 %v1162
    %1361 = vmatprep.subr.bf16.mxu0 %v1161
    %1362 = vmatpush2.bf16.msra.mxu0 %v1160
    %1363 = vmatprep.subr.bf16.mxu0 %v1159
    %1364 = vmatpush2.bf16.msra.mxu0 %v1158
    %1365 = vmatprep.subr.bf16.mxu0 %v1157
    %1366 = vmatpush2.bf16.msra.mxu0 %v1156
    %1367 = vmatprep.subr.bf16.mxu0 %v1155
    %1368 = vmatpush2.bf16.msra.mxu0 %v1154
    %1369 = vmatprep.mubr.bf16.mxu0 %v954
    %1370 = vmatmul.mubr.bf16.gmra.mxu0 %v910
    %v1371 = vpop.f32.mrf.mxu0
    %v1372 = vadd.f32 %v1035, %v1371
    %v1373 = vpop.f32.mrf.mxu0
    %v1374 = vadd.f32 %v1039, %v1373
    %v1375 = vpop.f32.mrf.mxu0
    %v1376 = vpop.f32.mrf.mxu0
    %1377 = vdwg.mxu0
    %v1378 = vmax.f32 %v1372, 0.0
    %v1379 = vmax.f32 %v1374, 0.0
    %v1380 = vpack.c.bf16 %v1378, %v1378
    %v1381 = vpack.c.bf16 %v1379, %v1379
    %1382 = vmatprep.subr.bf16.mxu0 %v1153
    %1383 = vmatpush1.bf16.msra.mxu0 %v1152
    %1384 = vmatprep.subr.bf16.mxu0 %v1151
    %1385 = vmatpush1.bf16.msra.mxu0 %v1150
    %1386 = vmatprep.subr.bf16.mxu0 %v1149
    %1387 = vmatpush1.bf16.msra.mxu0 %v1148
    %1388 = vmatprep.subr.bf16.mxu0 %v1147
    %1389 = vmatpush1.bf16.msra.mxu0 %v1146
    %1390 = vmatprep.subr.bf16.mxu0 %v1145
    %1391 = vmatpush1.bf16.msra.mxu0 %v1144
    %1392 = vmatprep.subr.bf16.mxu0 %v1143
    %1393 = vmatpush1.bf16.msra.mxu0 %v1142
    %1394 = vmatprep.subr.bf16.mxu0 %v1141
    %1395 = vmatpush1.bf16.msra.mxu0 %v1140
    %1396 = vmatprep.subr.bf16.mxu0 %v1139
    %1397 = vmatpush1.bf16.msra.mxu0 %v1138
    %1398 = vmatprep.subr.bf16.mxu0 %v1169
    %1399 = vmatpush2.bf16.msra.mxu0 %v1168
    %1400 = vmatprep.subr.bf16.mxu0 %v1167
    %1401 = vmatpush2.bf16.msra.mxu0 %v1166
    %1402 = vmatprep.subr.bf16.mxu0 %v1165
    %1403 = vmatpush2.bf16.msra.mxu0 %v1164
    %1404 = vmatprep.subr.bf16.mxu0 %v1163
    %1405 = vmatpush2.bf16.msra.mxu0 %v1162
    %1406 = vmatprep.subr.bf16.mxu0 %v1161
    %1407 = vmatpush2.bf16.msra.mxu0 %v1160
    %1408 = vmatprep.subr.bf16.mxu0 %v1159
    %1409 = vmatpush2.bf16.msra.mxu0 %v1158
    %1410 = vmatprep.subr.bf16.mxu0 %v1157
    %1411 = vmatpush2.bf16.msra.mxu0 %v1156
    %1412 = vmatprep.subr.bf16.mxu0 %v1155
    %1413 = vmatpush2.bf16.msra.mxu0 %v1154
    %1414 = vmatprep.mubr.bf16.mxu0 %v955
    %1415 = vmatmul.mubr.bf16.gmra.mxu0 %v954
    %v1416 = vpop.f32.mrf.mxu0
    %v1417 = vadd.f32 %v1035, %v1416
    %v1418 = vpop.f32.mrf.mxu0
    %v1419 = vadd.f32 %v1039, %v1418
    %v1420 = vpop.f32.mrf.mxu0
    %v1421 = vpop.f32.mrf.mxu0
    %1422 = vdwg.mxu0
    %v1423 = vmax.f32 %v1417, 0.0
    %v1424 = vmax.f32 %v1419, 0.0
    %v1425 = vpack.c.bf16 %v1423, %v1423
    %v1426 = vpack.c.bf16 %v1424, %v1424
    %1427 = vmatprep.subr.bf16.mxu0 %v1153
    %1428 = vmatpush1.bf16.msra.mxu0 %v1152
    %1429 = vmatprep.subr.bf16.mxu0 %v1151
    %1430 = vmatpush1.bf16.msra.mxu0 %v1150
    %1431 = vmatprep.subr.bf16.mxu0 %v1149
    %1432 = vmatpush1.bf16.msra.mxu0 %v1148
    %1433 = vmatprep.subr.bf16.mxu0 %v1147
    %1434 = vmatpush1.bf16.msra.mxu0 %v1146
    %1435 = vmatprep.subr.bf16.mxu0 %v1145
    %1436 = vmatpush1.bf16.msra.mxu0 %v1144
    %1437 = vmatprep.subr.bf16.mxu0 %v1143
    %1438 = vmatpush1.bf16.msra.mxu0 %v1142
    %1439 = vmatprep.subr.bf16.mxu0 %v1141
    %1440 = vmatpush1.bf16.msra.mxu0 %v1140
    %1441 = vmatprep.subr.bf16.mxu0 %v1139
    %1442 = vmatpush1.bf16.msra.mxu0 %v1138
    %1443 = vmatprep.subr.bf16.mxu0 %v1169
    %1444 = vmatpush2.bf16.msra.mxu0 %v1168
    %1445 = vmatprep.subr.bf16.mxu0 %v1167
    %1446 = vmatpush2.bf16.msra.mxu0 %v1166
    %1447 = vmatprep.subr.bf16.mxu0 %v1165
    %1448 = vmatpush2.bf16.msra.mxu0 %v1164
    %1449 = vmatprep.subr.bf16.mxu0 %v1163
    %1450 = vmatpush2.bf16.msra.mxu0 %v1162
    %1451 = vmatprep.subr.bf16.mxu0 %v1161
    %1452 = vmatpush2.bf16.msra.mxu0 %v1160
    %1453 = vmatprep.subr.bf16.mxu0 %v1159
    %1454 = vmatpush2.bf16.msra.mxu0 %v1158
    %1455 = vmatprep.subr.bf16.mxu0 %v1157
    %1456 = vmatpush2.bf16.msra.mxu0 %v1156
    %1457 = vmatprep.subr.bf16.mxu0 %v1155
    %1458 = vmatpush2.bf16.msra.mxu0 %v1154
    %1459 = vmatprep.mubr.bf16.mxu0 %v997
    %1460 = vmatmul.mubr.bf16.gmra.mxu0 %v955
    %v1461 = vpop.f32.mrf.mxu0
    %v1462 = vadd.f32 %v1035, %v1461
    %v1463 = vpop.f32.mrf.mxu0
    %v1464 = vadd.f32 %v1039, %v1463
    %v1465 = vpop.f32.mrf.mxu0
    %v1466 = vpop.f32.mrf.mxu0
    %1467 = vdwg.mxu0
    %v1468 = vmax.f32 %v1462, 0.0
    %v1469 = vmax.f32 %v1464, 0.0
    %v1470 = vpack.c.bf16 %v1468, %v1468
    %v1471 = vpack.c.bf16 %v1469, %v1469
    %1472 = vmatprep.subr.bf16.mxu0 %v1153
    %1473 = vmatpush1.bf16.msra.mxu0 %v1152
    %1474 = vmatprep.subr.bf16.mxu0 %v1151
    %1475 = vmatpush1.bf16.msra.mxu0 %v1150
    %1476 = vmatprep.subr.bf16.mxu0 %v1149
    %1477 = vmatpush1.bf16.msra.mxu0 %v1148
    %1478 = vmatprep.subr.bf16.mxu0 %v1147
    %1479 = vmatpush1.bf16.msra.mxu0 %v1146
    %1480 = vmatprep.subr.bf16.mxu0 %v1145
    %1481 = vmatpush1.bf16.msra.mxu0 %v1144
    %1482 = vmatprep.subr.bf16.mxu0 %v1143
    %1483 = vmatpush1.bf16.msra.mxu0 %v1142
    %1484 = vmatprep.subr.bf16.mxu0 %v1141
    %1485 = vmatpush1.bf16.msra.mxu0 %v1140
    %1486 = vmatprep.subr.bf16.mxu0 %v1139
    %1487 = vmatpush1.bf16.msra.mxu0 %v1138
    %1488 = vmatprep.subr.bf16.mxu0 %v1169
    %1489 = vmatpush2.bf16.msra.mxu0 %v1168
    %1490 = vmatprep.subr.bf16.mxu0 %v1167
    %1491 = vmatpush2.bf16.msra.mxu0 %v1166
    %1492 = vmatprep.subr.bf16.mxu0 %v1165
    %1493 = vmatpush2.bf16.msra.mxu0 %v1164
    %1494 = vmatprep.subr.bf16.mxu0 %v1163
    %1495 = vmatpush2.bf16.msra.mxu0 %v1162
    %1496 = vmatprep.subr.bf16.mxu0 %v1161
    %1497 = vmatpush2.bf16.msra.mxu0 %v1160
    %1498 = vmatprep.subr.bf16.mxu0 %v1159
    %1499 = vmatpush2.bf16.msra.mxu0 %v1158
    %1500 = vmatprep.subr.bf16.mxu0 %v1157
    %1501 = vmatpush2.bf16.msra.mxu0 %v1156
    %1502 = vmatprep.subr.bf16.mxu0 %v1155
    %1503 = vmatpush2.bf16.msra.mxu0 %v1154
    %1504 = vmatprep.mubr.bf16.mxu0 0
    %1505 = vmatmul.mubr.bf16.gmra.mxu0 %v997
    %v1506 = vpop.f32.mrf.mxu0
    %v1507 = vadd.f32 %v1035, %v1506
    %v1508 = vpop.f32.mrf.mxu0
    %v1509 = vadd.f32 %v1039, %v1508
    %v1510 = vpop.f32.mrf.mxu0
    %v1511 = vpop.f32.mrf.mxu0
    %1512 = vdwg.mxu0
    %v1513 = vmax.f32 %v1507, 0.0
    %v1514 = vmax.f32 %v1509, 0.0
    %v1515 = vpack.c.bf16 %v1513, %v1513
    %v1516 = vpack.c.bf16 %v1514, %v1514
    %v1517 = vld [vmem:[#allocation13] sm:$0xff]
    %v1518 = vld [vmem:[#allocation13 + $0x8] sm:$0xff]
    %v1519 = vld [vmem:[#allocation13 + $0x10] sm:$0xff]
    %v1520 = vld [vmem:[#allocation13 + $0x18] sm:$0xff]
    %v1521 = vld [vmem:[#allocation13 + $0x20] sm:$0xff]
    %v1522 = vld [vmem:[#allocation13 + $0x28] sm:$0xff]
    %v1523 = vld [vmem:[#allocation13 + $0x30] sm:$0xff]
    %v1524 = vld [vmem:[#allocation13 + $0x38] sm:$0xff]
    %v1525 = vld [vmem:[#allocation13 + $0x40] sm:$0xff]
    %v1526 = vld [vmem:[#allocation13 + $0x48] sm:$0xff]
    %v1527 = vld [vmem:[#allocation13 + $0x50] sm:$0xff]
    %v1528 = vld [vmem:[#allocation13 + $0x58] sm:$0xff]
    %v1529 = vld [vmem:[#allocation13 + $0x60] sm:$0xff]
    %v1530 = vld [vmem:[#allocation13 + $0x68] sm:$0xff]
    %v1531 = vld [vmem:[#allocation13 + $0x70] sm:$0xff]
    %v1532 = vld [vmem:[#allocation13 + $0x78] sm:$0xff]
    %v1533 = vld [vmem:[#allocation13 + $0x80] sm:$0xff]
    %v1534 = vld [vmem:[#allocation13 + $0x88] sm:$0xff]
    %v1535 = vld [vmem:[#allocation13 + $0x90] sm:$0xff]
    %v1536 = vld [vmem:[#allocation13 + $0x98] sm:$0xff]
    %v1537 = vld [vmem:[#allocation13 + $0xa0] sm:$0xff]
    %v1538 = vld [vmem:[#allocation13 + $0xa8] sm:$0xff]
    %v1539 = vld [vmem:[#allocation13 + $0xb0] sm:$0xff]
    %v1540 = vld [vmem:[#allocation13 + $0xb8] sm:$0xff]
    %v1541 = vld [vmem:[#allocation13 + $0xc0] sm:$0xff]
    %v1542 = vld [vmem:[#allocation13 + $0xc8] sm:$0xff]
    %v1543 = vld [vmem:[#allocation13 + $0xd0] sm:$0xff]
    %v1544 = vld [vmem:[#allocation13 + $0xd8] sm:$0xff]
    %v1545 = vld [vmem:[#allocation13 + $0xe0] sm:$0xff]
    %v1546 = vld [vmem:[#allocation13 + $0xe8] sm:$0xff]
    %v1547 = vld [vmem:[#allocation13 + $0xf0] sm:$0xff]
    %v1548 = vld [vmem:[#allocation13 + $0xf8] sm:$0xff]
    %v1549 = vld [vmem:[%s10] sm:$0x3]
    %v1551 = vlaneseq
    %v1552 = vshrl.u32 %v1551, 7
    %v1553 = vsub.s32 0, %v1552
    %v1554 = vrot.slane %v1549, %v1553
    %v1555 = vlaneseq
    %v1556 = vshrl.u32 %v1555, 7
    %v1557 = vsub.s32 1, %v1556
    %v1558 = vrot.slane %v1549, %v1557
    %v1593 = vunpack.c.l.b16 %v1517
    %v1594 = vunpack.c.h.b16 %v1517
    %v1595 = vunpack.c.l.b16 %v1518
    %v1596 = vunpack.c.h.b16 %v1518
    %v1597 = vunpack.c.l.b16 %v1519
    %v1598 = vunpack.c.h.b16 %v1519
    %v1599 = vunpack.c.l.b16 %v1520
    %v1600 = vunpack.c.h.b16 %v1520
    %v1601 = vunpack.c.l.b16 %v1521
    %v1602 = vunpack.c.h.b16 %v1521
    %v1603 = vunpack.c.l.b16 %v1522
    %v1604 = vunpack.c.h.b16 %v1522
    %v1605 = vunpack.c.l.b16 %v1523
    %v1606 = vunpack.c.h.b16 %v1523
    %v1607 = vunpack.c.l.b16 %v1524
    %v1608 = vunpack.c.h.b16 %v1524
    %v1609 = vunpack.c.l.b16 %v1525
    %v1610 = vunpack.c.h.b16 %v1525
    %v1611 = vunpack.c.l.b16 %v1526
    %v1612 = vunpack.c.h.b16 %v1526
    %v1613 = vunpack.c.l.b16 %v1527
    %v1614 = vunpack.c.h.b16 %v1527
    %v1615 = vunpack.c.l.b16 %v1528
    %v1616 = vunpack.c.h.b16 %v1528
    %v1617 = vunpack.c.l.b16 %v1529
    %v1618 = vunpack.c.h.b16 %v1529
    %v1619 = vunpack.c.l.b16 %v1530
    %v1620 = vunpack.c.h.b16 %v1530
    %v1621 = vunpack.c.l.b16 %v1531
    %v1622 = vunpack.c.h.b16 %v1531
    %v1623 = vunpack.c.l.b16 %v1532
    %v1624 = vunpack.c.h.b16 %v1532
    %v1625 = vunpack.c.l.b16 %v1533
    %v1626 = vunpack.c.h.b16 %v1533
    %v1627 = vunpack.c.l.b16 %v1534
    %v1628 = vunpack.c.h.b16 %v1534
    %v1629 = vunpack.c.l.b16 %v1535
    %v1630 = vunpack.c.h.b16 %v1535
    %v1631 = vunpack.c.l.b16 %v1536
    %v1632 = vunpack.c.h.b16 %v1536
    %v1633 = vunpack.c.l.b16 %v1537
    %v1634 = vunpack.c.h.b16 %v1537
    %v1635 = vunpack.c.l.b16 %v1538
    %v1636 = vunpack.c.h.b16 %v1538
    %v1637 = vunpack.c.l.b16 %v1539
    %v1638 = vunpack.c.h.b16 %v1539
    %v1639 = vunpack.c.l.b16 %v1540
    %v1640 = vunpack.c.h.b16 %v1540
    %v1641 = vunpack.c.l.b16 %v1541
    %v1642 = vunpack.c.h.b16 %v1541
    %v1643 = vunpack.c.l.b16 %v1542
    %v1644 = vunpack.c.h.b16 %v1542
    %v1645 = vunpack.c.l.b16 %v1543
    %v1646 = vunpack.c.h.b16 %v1543
    %v1647 = vunpack.c.l.b16 %v1544
    %v1648 = vunpack.c.h.b16 %v1544
    %v1649 = vunpack.c.l.b16 %v1545
    %v1650 = vunpack.c.h.b16 %v1545
    %v1651 = vunpack.c.l.b16 %v1546
    %v1652 = vunpack.c.h.b16 %v1546
    %v1653 = vunpack.c.l.b16 %v1547
    %v1654 = vunpack.c.h.b16 %v1547
    %v1655 = vunpack.c.l.b16 %v1548
    %v1656 = vunpack.c.h.b16 %v1548
    %v1657 = vpack.c.b16 %v1595, %v1593
    %v1658 = vpack.c.b16 %v1596, %v1594
    %v1659 = vpack.c.b16 %v1599, %v1597
    %v1660 = vpack.c.b16 %v1600, %v1598
    %v1661 = vpack.c.b16 %v1603, %v1601
    %v1662 = vpack.c.b16 %v1604, %v1602
    %v1663 = vpack.c.b16 %v1607, %v1605
    %v1664 = vpack.c.b16 %v1608, %v1606
    %v1665 = vpack.c.b16 %v1611, %v1609
    %v1666 = vpack.c.b16 %v1612, %v1610
    %v1667 = vpack.c.b16 %v1615, %v1613
    %v1668 = vpack.c.b16 %v1616, %v1614
    %v1669 = vpack.c.b16 %v1619, %v1617
    %v1670 = vpack.c.b16 %v1620, %v1618
    %v1671 = vpack.c.b16 %v1623, %v1621
    %v1672 = vpack.c.b16 %v1624, %v1622
    %v1673 = vpack.c.b16 %v1627, %v1625
    %v1674 = vpack.c.b16 %v1628, %v1626
    %v1675 = vpack.c.b16 %v1631, %v1629
    %v1676 = vpack.c.b16 %v1632, %v1630
    %v1677 = vpack.c.b16 %v1635, %v1633
    %v1678 = vpack.c.b16 %v1636, %v1634
    %v1679 = vpack.c.b16 %v1639, %v1637
    %v1680 = vpack.c.b16 %v1640, %v1638
    %v1681 = vpack.c.b16 %v1643, %v1641
    %v1682 = vpack.c.b16 %v1644, %v1642
    %v1683 = vpack.c.b16 %v1647, %v1645
    %v1684 = vpack.c.b16 %v1648, %v1646
    %v1685 = vpack.c.b16 %v1651, %v1649
    %v1686 = vpack.c.b16 %v1652, %v1650
    %v1687 = vpack.c.b16 %v1655, %v1653
    %v1688 = vpack.c.b16 %v1656, %v1654
    %1721 = vmatprep.subr.bf16.mxu0 %v1672
    %1722 = vmatpush1.bf16.msra.mxu0 %v1671
    %1723 = vmatprep.subr.bf16.mxu0 %v1670
    %1724 = vmatpush1.bf16.msra.mxu0 %v1669
    %1725 = vmatprep.subr.bf16.mxu0 %v1668
    %1726 = vmatpush1.bf16.msra.mxu0 %v1667
    %1727 = vmatprep.subr.bf16.mxu0 %v1666
    %1728 = vmatpush1.bf16.msra.mxu0 %v1665
    %1729 = vmatprep.subr.bf16.mxu0 %v1664
    %1730 = vmatpush1.bf16.msra.mxu0 %v1663
    %1731 = vmatprep.subr.bf16.mxu0 %v1662
    %1732 = vmatpush1.bf16.msra.mxu0 %v1661
    %1733 = vmatprep.subr.bf16.mxu0 %v1660
    %1734 = vmatpush1.bf16.msra.mxu0 %v1659
    %1735 = vmatprep.subr.bf16.mxu0 %v1658
    %1736 = vmatpush1.bf16.msra.mxu0 %v1657
    %1737 = vmatprep.subr.bf16.mxu0 %v1688
    %1738 = vmatpush2.bf16.msra.mxu0 %v1687
    %1739 = vmatprep.subr.bf16.mxu0 %v1686
    %1740 = vmatpush2.bf16.msra.mxu0 %v1685
    %1741 = vmatprep.subr.bf16.mxu0 %v1684
    %1742 = vmatpush2.bf16.msra.mxu0 %v1683
    %1743 = vmatprep.subr.bf16.mxu0 %v1682
    %1744 = vmatpush2.bf16.msra.mxu0 %v1681
    %1745 = vmatprep.subr.bf16.mxu0 %v1680
    %1746 = vmatpush2.bf16.msra.mxu0 %v1679
    %1747 = vmatprep.subr.bf16.mxu0 %v1678
    %1748 = vmatpush2.bf16.msra.mxu0 %v1677
    %1749 = vmatprep.subr.bf16.mxu0 %v1676
    %1750 = vmatpush2.bf16.msra.mxu0 %v1675
    %1751 = vmatprep.subr.bf16.mxu0 %v1674
    %1752 = vmatpush2.bf16.msra.mxu0 %v1673
    %1753 = vmatprep.mubr.bf16.mxu0 %v1246
    %1754 = vmatmul.mubr.bf16.gmra.mxu0 %v1245
    %v1755 = vpop.f32.mrf.mxu0
    %v1756 = vadd.f32 %v1554, %v1755
    %v1757 = vpop.f32.mrf.mxu0
    %v1758 = vadd.f32 %v1558, %v1757
    %v1759 = vpop.f32.mrf.mxu0
    %v1760 = vpop.f32.mrf.mxu0
    %1761 = vdwg.mxu0
    %v1762 = vmul.f32 %v1756, 0.5
    %v1763 = vmul.f32 %v1758, 0.5
    %v1764 = vtanh.pop %v1762
    %v1765 = vtanh.pop %v1763
    %v1766 = vadd.f32 %v1764, 1.0
    %v1767 = vadd.f32 %v1765, 1.0
    %v1768 = vmul.f32 %v1766, 0.5
    %v1769 = vmul.f32 %v1767, 0.5
    %v1770 = vpack.c.bf16 %v1768, %v1768
    %v1771 = vpack.c.bf16 %v1769, %v1769
    %v1774 = vunpack.c.l.b16 %v1770
    %v1775 = vunpack.c.l.b16 %v1771
    %v1776 = vpack.c.b16 %v1775, %v1774
    %1778 = vst [vmem:[#allocation14] sm:$0xff] %v1776
    %1779 = vmatprep.subr.bf16.mxu0 %v1672
    %1780 = vmatpush1.bf16.msra.mxu0 %v1671
    %1781 = vmatprep.subr.bf16.mxu0 %v1670
    %1782 = vmatpush1.bf16.msra.mxu0 %v1669
    %1783 = vmatprep.subr.bf16.mxu0 %v1668
    %1784 = vmatpush1.bf16.msra.mxu0 %v1667
    %1785 = vmatprep.subr.bf16.mxu0 %v1666
    %1786 = vmatpush1.bf16.msra.mxu0 %v1665
    %1787 = vmatprep.subr.bf16.mxu0 %v1664
    %1788 = vmatpush1.bf16.msra.mxu0 %v1663
    %1789 = vmatprep.subr.bf16.mxu0 %v1662
    %1790 = vmatpush1.bf16.msra.mxu0 %v1661
    %1791 = vmatprep.subr.bf16.mxu0 %v1660
    %1792 = vmatpush1.bf16.msra.mxu0 %v1659
    %1793 = vmatprep.subr.bf16.mxu0 %v1658
    %1794 = vmatpush1.bf16.msra.mxu0 %v1657
    %1795 = vmatprep.subr.bf16.mxu0 %v1688
    %1796 = vmatpush2.bf16.msra.mxu0 %v1687
    %1797 = vmatprep.subr.bf16.mxu0 %v1686
    %1798 = vmatpush2.bf16.msra.mxu0 %v1685
    %1799 = vmatprep.subr.bf16.mxu0 %v1684
    %1800 = vmatpush2.bf16.msra.mxu0 %v1683
    %1801 = vmatprep.subr.bf16.mxu0 %v1682
    %1802 = vmatpush2.bf16.msra.mxu0 %v1681
    %1803 = vmatprep.subr.bf16.mxu0 %v1680
    %1804 = vmatpush2.bf16.msra.mxu0 %v1679
    %1805 = vmatprep.subr.bf16.mxu0 %v1678
    %1806 = vmatpush2.bf16.msra.mxu0 %v1677
    %1807 = vmatprep.subr.bf16.mxu0 %v1676
    %1808 = vmatpush2.bf16.msra.mxu0 %v1675
    %1809 = vmatprep.subr.bf16.mxu0 %v1674
    %1810 = vmatpush2.bf16.msra.mxu0 %v1673
    %1811 = vmatprep.mubr.bf16.mxu0 %v1290
    %1812 = vmatmul.mubr.bf16.gmra.mxu0 %v1246
    %v1813 = vpop.f32.mrf.mxu0
    %v1814 = vadd.f32 %v1554, %v1813
    %v1815 = vpop.f32.mrf.mxu0
    %v1816 = vadd.f32 %v1558, %v1815
    %v1817 = vpop.f32.mrf.mxu0
    %v1818 = vpop.f32.mrf.mxu0
    %1819 = vdwg.mxu0
    %v1820 = vmul.f32 %v1814, 0.5
    %v1821 = vmul.f32 %v1816, 0.5
    %v1822 = vtanh.pop %v1820
    %v1823 = vtanh.pop %v1821
    %v1824 = vadd.f32 %v1822, 1.0
    %v1825 = vadd.f32 %v1823, 1.0
    %v1826 = vmul.f32 %v1824, 0.5
    %v1827 = vmul.f32 %v1825, 0.5
    %v1828 = vpack.c.bf16 %v1826, %v1826
    %v1829 = vpack.c.bf16 %v1827, %v1827
    %v1832 = vunpack.c.l.b16 %v1828
    %v1833 = vunpack.c.l.b16 %v1829
    %v1834 = vpack.c.b16 %v1833, %v1832
    %1836 = vst [vmem:[#allocation14 + $0x8] sm:$0xff] %v1834
    %1837 = vmatprep.subr.bf16.mxu0 %v1672
    %1838 = vmatpush1.bf16.msra.mxu0 %v1671
    %1839 = vmatprep.subr.bf16.mxu0 %v1670
    %1840 = vmatpush1.bf16.msra.mxu0 %v1669
    %1841 = vmatprep.subr.bf16.mxu0 %v1668
    %1842 = vmatpush1.bf16.msra.mxu0 %v1667
    %1843 = vmatprep.subr.bf16.mxu0 %v1666
    %1844 = vmatpush1.bf16.msra.mxu0 %v1665
    %1845 = vmatprep.subr.bf16.mxu0 %v1664
    %1846 = vmatpush1.bf16.msra.mxu0 %v1663
    %1847 = vmatprep.subr.bf16.mxu0 %v1662
    %1848 = vmatpush1.bf16.msra.mxu0 %v1661
    %1849 = vmatprep.subr.bf16.mxu0 %v1660
    %1850 = vmatpush1.bf16.msra.mxu0 %v1659
    %1851 = vmatprep.subr.bf16.mxu0 %v1658
    %1852 = vmatpush1.bf16.msra.mxu0 %v1657
    %1853 = vmatprep.subr.bf16.mxu0 %v1688
    %1854 = vmatpush2.bf16.msra.mxu0 %v1687
    %1855 = vmatprep.subr.bf16.mxu0 %v1686
    %1856 = vmatpush2.bf16.msra.mxu0 %v1685
    %1857 = vmatprep.subr.bf16.mxu0 %v1684
    %1858 = vmatpush2.bf16.msra.mxu0 %v1683
    %1859 = vmatprep.subr.bf16.mxu0 %v1682
    %1860 = vmatpush2.bf16.msra.mxu0 %v1681
    %1861 = vmatprep.subr.bf16.mxu0 %v1680
    %1862 = vmatpush2.bf16.msra.mxu0 %v1679
    %1863 = vmatprep.subr.bf16.mxu0 %v1678
    %1864 = vmatpush2.bf16.msra.mxu0 %v1677
    %1865 = vmatprep.subr.bf16.mxu0 %v1676
    %1866 = vmatpush2.bf16.msra.mxu0 %v1675
    %1867 = vmatprep.subr.bf16.mxu0 %v1674
    %1868 = vmatpush2.bf16.msra.mxu0 %v1673
    %1869 = vmatprep.mubr.bf16.mxu0 %v1291
    %1870 = vmatmul.mubr.bf16.gmra.mxu0 %v1290
    %v1871 = vpop.f32.mrf.mxu0
    %v1872 = vadd.f32 %v1554, %v1871
    %v1873 = vpop.f32.mrf.mxu0
    %v1874 = vadd.f32 %v1558, %v1873
    %v1875 = vpop.f32.mrf.mxu0
    %v1876 = vpop.f32.mrf.mxu0
    %1877 = vdwg.mxu0
    %v1878 = vmul.f32 %v1872, 0.5
    %v1879 = vmul.f32 %v1874, 0.5
    %v1880 = vtanh.pop %v1878
    %v1881 = vtanh.pop %v1879
    %v1882 = vadd.f32 %v1880, 1.0
    %v1883 = vadd.f32 %v1881, 1.0
    %v1884 = vmul.f32 %v1882, 0.5
    %v1885 = vmul.f32 %v1883, 0.5
    %v1886 = vpack.c.bf16 %v1884, %v1884
    %v1887 = vpack.c.bf16 %v1885, %v1885
    %v1890 = vunpack.c.l.b16 %v1886
    %v1891 = vunpack.c.l.b16 %v1887
    %v1892 = vpack.c.b16 %v1891, %v1890
    %1894 = vst [vmem:[#allocation14 + $0x10] sm:$0xff] %v1892
    %1895 = vmatprep.subr.bf16.mxu0 %v1672
    %1896 = vmatpush1.bf16.msra.mxu0 %v1671
    %1897 = vmatprep.subr.bf16.mxu0 %v1670
    %1898 = vmatpush1.bf16.msra.mxu0 %v1669
    %1899 = vmatprep.subr.bf16.mxu0 %v1668
    %1900 = vmatpush1.bf16.msra.mxu0 %v1667
    %1901 = vmatprep.subr.bf16.mxu0 %v1666
    %1902 = vmatpush1.bf16.msra.mxu0 %v1665
    %1903 = vmatprep.subr.bf16.mxu0 %v1664
    %1904 = vmatpush1.bf16.msra.mxu0 %v1663
    %1905 = vmatprep.subr.bf16.mxu0 %v1662
    %1906 = vmatpush1.bf16.msra.mxu0 %v1661
    %1907 = vmatprep.subr.bf16.mxu0 %v1660
    %1908 = vmatpush1.bf16.msra.mxu0 %v1659
    %1909 = vmatprep.subr.bf16.mxu0 %v1658
    %1910 = vmatpush1.bf16.msra.mxu0 %v1657
    %1911 = vmatprep.subr.bf16.mxu0 %v1688
    %1912 = vmatpush2.bf16.msra.mxu0 %v1687
    %1913 = vmatprep.subr.bf16.mxu0 %v1686
    %1914 = vmatpush2.bf16.msra.mxu0 %v1685
    %1915 = vmatprep.subr.bf16.mxu0 %v1684
    %1916 = vmatpush2.bf16.msra.mxu0 %v1683
    %1917 = vmatprep.subr.bf16.mxu0 %v1682
    %1918 = vmatpush2.bf16.msra.mxu0 %v1681
    %1919 = vmatprep.subr.bf16.mxu0 %v1680
    %1920 = vmatpush2.bf16.msra.mxu0 %v1679
    %1921 = vmatprep.subr.bf16.mxu0 %v1678
    %1922 = vmatpush2.bf16.msra.mxu0 %v1677
    %1923 = vmatprep.subr.bf16.mxu0 %v1676
    %1924 = vmatpush2.bf16.msra.mxu0 %v1675
    %1925 = vmatprep.subr.bf16.mxu0 %v1674
    %1926 = vmatpush2.bf16.msra.mxu0 %v1673
    %1927 = vmatprep.mubr.bf16.mxu0 %v1335
    %1928 = vmatmul.mubr.bf16.gmra.mxu0 %v1291
    %v1929 = vpop.f32.mrf.mxu0
    %v1930 = vadd.f32 %v1554, %v1929
    %v1931 = vpop.f32.mrf.mxu0
    %v1932 = vadd.f32 %v1558, %v1931
    %v1933 = vpop.f32.mrf.mxu0
    %v1934 = vpop.f32.mrf.mxu0
    %1935 = vdwg.mxu0
    %v1936 = vmul.f32 %v1930, 0.5
    %v1937 = vmul.f32 %v1932, 0.5
    %v1938 = vtanh.pop %v1936
    %v1939 = vtanh.pop %v1937
    %v1940 = vadd.f32 %v1938, 1.0
    %v1941 = vadd.f32 %v1939, 1.0
    %v1942 = vmul.f32 %v1940, 0.5
    %v1943 = vmul.f32 %v1941, 0.5
    %v1944 = vpack.c.bf16 %v1942, %v1942
    %v1945 = vpack.c.bf16 %v1943, %v1943
    %v1948 = vunpack.c.l.b16 %v1944
    %v1949 = vunpack.c.l.b16 %v1945
    %v1950 = vpack.c.b16 %v1949, %v1948
    %1952 = vst [vmem:[#allocation14 + $0x18] sm:$0xff] %v1950
    %1953 = vmatprep.subr.bf16.mxu0 %v1672
    %1954 = vmatpush1.bf16.msra.mxu0 %v1671
    %1955 = vmatprep.subr.bf16.mxu0 %v1670
    %1956 = vmatpush1.bf16.msra.mxu0 %v1669
    %1957 = vmatprep.subr.bf16.mxu0 %v1668
    %1958 = vmatpush1.bf16.msra.mxu0 %v1667
    %1959 = vmatprep.subr.bf16.mxu0 %v1666
    %1960 = vmatpush1.bf16.msra.mxu0 %v1665
    %1961 = vmatprep.subr.bf16.mxu0 %v1664
    %1962 = vmatpush1.bf16.msra.mxu0 %v1663
    %1963 = vmatprep.subr.bf16.mxu0 %v1662
    %1964 = vmatpush1.bf16.msra.mxu0 %v1661
    %1965 = vmatprep.subr.bf16.mxu0 %v1660
    %1966 = vmatpush1.bf16.msra.mxu0 %v1659
    %1967 = vmatprep.subr.bf16.mxu0 %v1658
    %1968 = vmatpush1.bf16.msra.mxu0 %v1657
    %1969 = vmatprep.subr.bf16.mxu0 %v1688
    %1970 = vmatpush2.bf16.msra.mxu0 %v1687
    %1971 = vmatprep.subr.bf16.mxu0 %v1686
    %1972 = vmatpush2.bf16.msra.mxu0 %v1685
    %1973 = vmatprep.subr.bf16.mxu0 %v1684
    %1974 = vmatpush2.bf16.msra.mxu0 %v1683
    %1975 = vmatprep.subr.bf16.mxu0 %v1682
    %1976 = vmatpush2.bf16.msra.mxu0 %v1681
    %1977 = vmatprep.subr.bf16.mxu0 %v1680
    %1978 = vmatpush2.bf16.msra.mxu0 %v1679
    %1979 = vmatprep.subr.bf16.mxu0 %v1678
    %1980 = vmatpush2.bf16.msra.mxu0 %v1677
    %1981 = vmatprep.subr.bf16.mxu0 %v1676
    %1982 = vmatpush2.bf16.msra.mxu0 %v1675
    %1983 = vmatprep.subr.bf16.mxu0 %v1674
    %1984 = vmatpush2.bf16.msra.mxu0 %v1673
    %1985 = vmatprep.mubr.bf16.mxu0 %v1336
    %1986 = vmatmul.mubr.bf16.gmra.mxu0 %v1335
    %v1987 = vpop.f32.mrf.mxu0
    %v1988 = vadd.f32 %v1554, %v1987
    %v1989 = vpop.f32.mrf.mxu0
    %v1990 = vadd.f32 %v1558, %v1989
    %v1991 = vpop.f32.mrf.mxu0
    %v1992 = vpop.f32.mrf.mxu0
    %1993 = vdwg.mxu0
    %v1994 = vmul.f32 %v1988, 0.5
    %v1995 = vmul.f32 %v1990, 0.5
    %v1996 = vtanh.pop %v1994
    %v1997 = vtanh.pop %v1995
    %v1998 = vadd.f32 %v1996, 1.0
    %v1999 = vadd.f32 %v1997, 1.0
    %v2000 = vmul.f32 %v1998, 0.5
    %v2001 = vmul.f32 %v1999, 0.5
    %v2002 = vpack.c.bf16 %v2000, %v2000
    %v2003 = vpack.c.bf16 %v2001, %v2001
    %v2006 = vunpack.c.l.b16 %v2002
    %v2007 = vunpack.c.l.b16 %v2003
    %v2008 = vpack.c.b16 %v2007, %v2006
    %2010 = vst [vmem:[#allocation14 + $0x20] sm:$0xff] %v2008
    %2011 = vmatprep.subr.bf16.mxu0 %v1672
    %2012 = vmatpush1.bf16.msra.mxu0 %v1671
    %2013 = vmatprep.subr.bf16.mxu0 %v1670
    %2014 = vmatpush1.bf16.msra.mxu0 %v1669
    %2015 = vmatprep.subr.bf16.mxu0 %v1668
    %2016 = vmatpush1.bf16.msra.mxu0 %v1667
    %2017 = vmatprep.subr.bf16.mxu0 %v1666
    %2018 = vmatpush1.bf16.msra.mxu0 %v1665
    %2019 = vmatprep.subr.bf16.mxu0 %v1664
    %2020 = vmatpush1.bf16.msra.mxu0 %v1663
    %2021 = vmatprep.subr.bf16.mxu0 %v1662
    %2022 = vmatpush1.bf16.msra.mxu0 %v1661
    %2023 = vmatprep.subr.bf16.mxu0 %v1660
    %2024 = vmatpush1.bf16.msra.mxu0 %v1659
    %2025 = vmatprep.subr.bf16.mxu0 %v1658
    %2026 = vmatpush1.bf16.msra.mxu0 %v1657
    %2027 = vmatprep.subr.bf16.mxu0 %v1688
    %2028 = vmatpush2.bf16.msra.mxu0 %v1687
    %2029 = vmatprep.subr.bf16.mxu0 %v1686
    %2030 = vmatpush2.bf16.msra.mxu0 %v1685
    %2031 = vmatprep.subr.bf16.mxu0 %v1684
    %2032 = vmatpush2.bf16.msra.mxu0 %v1683
    %2033 = vmatprep.subr.bf16.mxu0 %v1682
    %2034 = vmatpush2.bf16.msra.mxu0 %v1681
    %2035 = vmatprep.subr.bf16.mxu0 %v1680
    %2036 = vmatpush2.bf16.msra.mxu0 %v1679
    %2037 = vmatprep.subr.bf16.mxu0 %v1678
    %2038 = vmatpush2.bf16.msra.mxu0 %v1677
    %2039 = vmatprep.subr.bf16.mxu0 %v1676
    %2040 = vmatpush2.bf16.msra.mxu0 %v1675
    %2041 = vmatprep.subr.bf16.mxu0 %v1674
    %2042 = vmatpush2.bf16.msra.mxu0 %v1673
    %2043 = vmatprep.mubr.bf16.mxu0 %v1380
    %2044 = vmatmul.mubr.bf16.gmra.mxu0 %v1336
    %v2045 = vpop.f32.mrf.mxu0
    %v2046 = vadd.f32 %v1554, %v2045
    %v2047 = vpop.f32.mrf.mxu0
    %v2048 = vadd.f32 %v1558, %v2047
    %v2049 = vpop.f32.mrf.mxu0
    %v2050 = vpop.f32.mrf.mxu0
    %2051 = vdwg.mxu0
    %v2052 = vmul.f32 %v2046, 0.5
    %v2053 = vmul.f32 %v2048, 0.5
    %v2054 = vtanh.pop %v2052
    %v2055 = vtanh.pop %v2053
    %v2056 = vadd.f32 %v2054, 1.0
    %v2057 = vadd.f32 %v2055, 1.0
    %v2058 = vmul.f32 %v2056, 0.5
    %v2059 = vmul.f32 %v2057, 0.5
    %v2060 = vpack.c.bf16 %v2058, %v2058
    %v2061 = vpack.c.bf16 %v2059, %v2059
    %v2064 = vunpack.c.l.b16 %v2060
    %v2065 = vunpack.c.l.b16 %v2061
    %v2066 = vpack.c.b16 %v2065, %v2064
    %2068 = vst [vmem:[#allocation14 + $0x28] sm:$0xff] %v2066
    %2069 = vmatprep.subr.bf16.mxu0 %v1672
    %2070 = vmatpush1.bf16.msra.mxu0 %v1671
    %2071 = vmatprep.subr.bf16.mxu0 %v1670
    %2072 = vmatpush1.bf16.msra.mxu0 %v1669
    %2073 = vmatprep.subr.bf16.mxu0 %v1668
    %2074 = vmatpush1.bf16.msra.mxu0 %v1667
    %2075 = vmatprep.subr.bf16.mxu0 %v1666
    %2076 = vmatpush1.bf16.msra.mxu0 %v1665
    %2077 = vmatprep.subr.bf16.mxu0 %v1664
    %2078 = vmatpush1.bf16.msra.mxu0 %v1663
    %2079 = vmatprep.subr.bf16.mxu0 %v1662
    %2080 = vmatpush1.bf16.msra.mxu0 %v1661
    %2081 = vmatprep.subr.bf16.mxu0 %v1660
    %2082 = vmatpush1.bf16.msra.mxu0 %v1659
    %2083 = vmatprep.subr.bf16.mxu0 %v1658
    %2084 = vmatpush1.bf16.msra.mxu0 %v1657
    %2085 = vmatprep.subr.bf16.mxu0 %v1688
    %2086 = vmatpush2.bf16.msra.mxu0 %v1687
    %2087 = vmatprep.subr.bf16.mxu0 %v1686
    %2088 = vmatpush2.bf16.msra.mxu0 %v1685
    %2089 = vmatprep.subr.bf16.mxu0 %v1684
    %2090 = vmatpush2.bf16.msra.mxu0 %v1683
    %2091 = vmatprep.subr.bf16.mxu0 %v1682
    %2092 = vmatpush2.bf16.msra.mxu0 %v1681
    %2093 = vmatprep.subr.bf16.mxu0 %v1680
    %2094 = vmatpush2.bf16.msra.mxu0 %v1679
    %2095 = vmatprep.subr.bf16.mxu0 %v1678
    %2096 = vmatpush2.bf16.msra.mxu0 %v1677
    %2097 = vmatprep.subr.bf16.mxu0 %v1676
    %2098 = vmatpush2.bf16.msra.mxu0 %v1675
    %2099 = vmatprep.subr.bf16.mxu0 %v1674
    %2100 = vmatpush2.bf16.msra.mxu0 %v1673
    %2101 = vmatprep.mubr.bf16.mxu0 %v1381
    %2102 = vmatmul.mubr.bf16.gmra.mxu0 %v1380
    %v2103 = vpop.f32.mrf.mxu0
    %v2104 = vadd.f32 %v1554, %v2103
    %v2105 = vpop.f32.mrf.mxu0
    %v2106 = vadd.f32 %v1558, %v2105
    %v2107 = vpop.f32.mrf.mxu0
    %v2108 = vpop.f32.mrf.mxu0
    %2109 = vdwg.mxu0
    %v2110 = vmul.f32 %v2104, 0.5
    %v2111 = vmul.f32 %v2106, 0.5
    %v2112 = vtanh.pop %v2110
    %v2113 = vtanh.pop %v2111
    %v2114 = vadd.f32 %v2112, 1.0
    %v2115 = vadd.f32 %v2113, 1.0
    %v2116 = vmul.f32 %v2114, 0.5
    %v2117 = vmul.f32 %v2115, 0.5
    %v2118 = vpack.c.bf16 %v2116, %v2116
    %v2119 = vpack.c.bf16 %v2117, %v2117
    %v2122 = vunpack.c.l.b16 %v2118
    %v2123 = vunpack.c.l.b16 %v2119
    %v2124 = vpack.c.b16 %v2123, %v2122
    %2126 = vst [vmem:[#allocation14 + $0x30] sm:$0xff] %v2124
    %2127 = vmatprep.subr.bf16.mxu0 %v1672
    %2128 = vmatpush1.bf16.msra.mxu0 %v1671
    %2129 = vmatprep.subr.bf16.mxu0 %v1670
    %2130 = vmatpush1.bf16.msra.mxu0 %v1669
    %2131 = vmatprep.subr.bf16.mxu0 %v1668
    %2132 = vmatpush1.bf16.msra.mxu0 %v1667
    %2133 = vmatprep.subr.bf16.mxu0 %v1666
    %2134 = vmatpush1.bf16.msra.mxu0 %v1665
    %2135 = vmatprep.subr.bf16.mxu0 %v1664
    %2136 = vmatpush1.bf16.msra.mxu0 %v1663
    %2137 = vmatprep.subr.bf16.mxu0 %v1662
    %2138 = vmatpush1.bf16.msra.mxu0 %v1661
    %2139 = vmatprep.subr.bf16.mxu0 %v1660
    %2140 = vmatpush1.bf16.msra.mxu0 %v1659
    %2141 = vmatprep.subr.bf16.mxu0 %v1658
    %2142 = vmatpush1.bf16.msra.mxu0 %v1657
    %2143 = vmatprep.subr.bf16.mxu0 %v1688
    %2144 = vmatpush2.bf16.msra.mxu0 %v1687
    %2145 = vmatprep.subr.bf16.mxu0 %v1686
    %2146 = vmatpush2.bf16.msra.mxu0 %v1685
    %2147 = vmatprep.subr.bf16.mxu0 %v1684
    %2148 = vmatpush2.bf16.msra.mxu0 %v1683
    %2149 = vmatprep.subr.bf16.mxu0 %v1682
    %2150 = vmatpush2.bf16.msra.mxu0 %v1681
    %2151 = vmatprep.subr.bf16.mxu0 %v1680
    %2152 = vmatpush2.bf16.msra.mxu0 %v1679
    %2153 = vmatprep.subr.bf16.mxu0 %v1678
    %2154 = vmatpush2.bf16.msra.mxu0 %v1677
    %2155 = vmatprep.subr.bf16.mxu0 %v1676
    %2156 = vmatpush2.bf16.msra.mxu0 %v1675
    %2157 = vmatprep.subr.bf16.mxu0 %v1674
    %2158 = vmatpush2.bf16.msra.mxu0 %v1673
    %2159 = vmatprep.mubr.bf16.mxu0 %v1425
    %2160 = vmatmul.mubr.bf16.gmra.mxu0 %v1381
    %v2161 = vpop.f32.mrf.mxu0
    %v2162 = vadd.f32 %v1554, %v2161
    %v2163 = vpop.f32.mrf.mxu0
    %v2164 = vadd.f32 %v1558, %v2163
    %v2165 = vpop.f32.mrf.mxu0
    %v2166 = vpop.f32.mrf.mxu0
    %2167 = vdwg.mxu0
    %v2168 = vmul.f32 %v2162, 0.5
    %v2169 = vmul.f32 %v2164, 0.5
    %v2170 = vtanh.pop %v2168
    %v2171 = vtanh.pop %v2169
    %v2172 = vadd.f32 %v2170, 1.0
    %v2173 = vadd.f32 %v2171, 1.0
    %v2174 = vmul.f32 %v2172, 0.5
    %v2175 = vmul.f32 %v2173, 0.5
    %v2176 = vpack.c.bf16 %v2174, %v2174
    %v2177 = vpack.c.bf16 %v2175, %v2175
    %v2180 = vunpack.c.l.b16 %v2176
    %v2181 = vunpack.c.l.b16 %v2177
    %v2182 = vpack.c.b16 %v2181, %v2180
    %2184 = vst [vmem:[#allocation14 + $0x38] sm:$0xff] %v2182
    %2185 = vmatprep.subr.bf16.mxu0 %v1672
    %2186 = vmatpush1.bf16.msra.mxu0 %v1671
    %2187 = vmatprep.subr.bf16.mxu0 %v1670
    %2188 = vmatpush1.bf16.msra.mxu0 %v1669
    %2189 = vmatprep.subr.bf16.mxu0 %v1668
    %2190 = vmatpush1.bf16.msra.mxu0 %v1667
    %2191 = vmatprep.subr.bf16.mxu0 %v1666
    %2192 = vmatpush1.bf16.msra.mxu0 %v1665
    %2193 = vmatprep.subr.bf16.mxu0 %v1664
    %2194 = vmatpush1.bf16.msra.mxu0 %v1663
    %2195 = vmatprep.subr.bf16.mxu0 %v1662
    %2196 = vmatpush1.bf16.msra.mxu0 %v1661
    %2197 = vmatprep.subr.bf16.mxu0 %v1660
    %2198 = vmatpush1.bf16.msra.mxu0 %v1659
    %2199 = vmatprep.subr.bf16.mxu0 %v1658
    %2200 = vmatpush1.bf16.msra.mxu0 %v1657
    %2201 = vmatprep.subr.bf16.mxu0 %v1688
    %2202 = vmatpush2.bf16.msra.mxu0 %v1687
    %2203 = vmatprep.subr.bf16.mxu0 %v1686
    %2204 = vmatpush2.bf16.msra.mxu0 %v1685
    %2205 = vmatprep.subr.bf16.mxu0 %v1684
    %2206 = vmatpush2.bf16.msra.mxu0 %v1683
    %2207 = vmatprep.subr.bf16.mxu0 %v1682
    %2208 = vmatpush2.bf16.msra.mxu0 %v1681
    %2209 = vmatprep.subr.bf16.mxu0 %v1680
    %2210 = vmatpush2.bf16.msra.mxu0 %v1679
    %2211 = vmatprep.subr.bf16.mxu0 %v1678
    %2212 = vmatpush2.bf16.msra.mxu0 %v1677
    %2213 = vmatprep.subr.bf16.mxu0 %v1676
    %2214 = vmatpush2.bf16.msra.mxu0 %v1675
    %2215 = vmatprep.subr.bf16.mxu0 %v1674
    %2216 = vmatpush2.bf16.msra.mxu0 %v1673
    %2217 = vmatprep.mubr.bf16.mxu0 %v1426
    %2218 = vmatmul.mubr.bf16.gmra.mxu0 %v1425
    %v2219 = vpop.f32.mrf.mxu0
    %v2220 = vadd.f32 %v1554, %v2219
    %v2221 = vpop.f32.mrf.mxu0
    %v2222 = vadd.f32 %v1558, %v2221
    %v2223 = vpop.f32.mrf.mxu0
    %v2224 = vpop.f32.mrf.mxu0
    %2225 = vdwg.mxu0
    %v2226 = vmul.f32 %v2220, 0.5
    %v2227 = vmul.f32 %v2222, 0.5
    %v2228 = vtanh.pop %v2226
    %v2229 = vtanh.pop %v2227
    %v2230 = vadd.f32 %v2228, 1.0
    %v2231 = vadd.f32 %v2229, 1.0
    %v2232 = vmul.f32 %v2230, 0.5
    %v2233 = vmul.f32 %v2231, 0.5
    %v2234 = vpack.c.bf16 %v2232, %v2232
    %v2235 = vpack.c.bf16 %v2233, %v2233
    %v2238 = vunpack.c.l.b16 %v2234
    %v2239 = vunpack.c.l.b16 %v2235
    %v2240 = vpack.c.b16 %v2239, %v2238
    %2242 = vst [vmem:[#allocation14 + $0x40] sm:$0xff] %v2240
    %2243 = vmatprep.subr.bf16.mxu0 %v1672
    %2244 = vmatpush1.bf16.msra.mxu0 %v1671
    %2245 = vmatprep.subr.bf16.mxu0 %v1670
    %2246 = vmatpush1.bf16.msra.mxu0 %v1669
    %2247 = vmatprep.subr.bf16.mxu0 %v1668
    %2248 = vmatpush1.bf16.msra.mxu0 %v1667
    %2249 = vmatprep.subr.bf16.mxu0 %v1666
    %2250 = vmatpush1.bf16.msra.mxu0 %v1665
    %2251 = vmatprep.subr.bf16.mxu0 %v1664
    %2252 = vmatpush1.bf16.msra.mxu0 %v1663
    %2253 = vmatprep.subr.bf16.mxu0 %v1662
    %2254 = vmatpush1.bf16.msra.mxu0 %v1661
    %2255 = vmatprep.subr.bf16.mxu0 %v1660
    %2256 = vmatpush1.bf16.msra.mxu0 %v1659
    %2257 = vmatprep.subr.bf16.mxu0 %v1658
    %2258 = vmatpush1.bf16.msra.mxu0 %v1657
    %2259 = vmatprep.subr.bf16.mxu0 %v1688
    %2260 = vmatpush2.bf16.msra.mxu0 %v1687
    %2261 = vmatprep.subr.bf16.mxu0 %v1686
    %2262 = vmatpush2.bf16.msra.mxu0 %v1685
    %2263 = vmatprep.subr.bf16.mxu0 %v1684
    %2264 = vmatpush2.bf16.msra.mxu0 %v1683
    %2265 = vmatprep.subr.bf16.mxu0 %v1682
    %2266 = vmatpush2.bf16.msra.mxu0 %v1681
    %2267 = vmatprep.subr.bf16.mxu0 %v1680
    %2268 = vmatpush2.bf16.msra.mxu0 %v1679
    %2269 = vmatprep.subr.bf16.mxu0 %v1678
    %2270 = vmatpush2.bf16.msra.mxu0 %v1677
    %2271 = vmatprep.subr.bf16.mxu0 %v1676
    %2272 = vmatpush2.bf16.msra.mxu0 %v1675
    %2273 = vmatprep.subr.bf16.mxu0 %v1674
    %2274 = vmatpush2.bf16.msra.mxu0 %v1673
    %2275 = vmatprep.mubr.bf16.mxu0 %v1470
    %2276 = vmatmul.mubr.bf16.gmra.mxu0 %v1426
    %v2277 = vpop.f32.mrf.mxu0
    %v2278 = vadd.f32 %v1554, %v2277
    %v2279 = vpop.f32.mrf.mxu0
    %v2280 = vadd.f32 %v1558, %v2279
    %v2281 = vpop.f32.mrf.mxu0
    %v2282 = vpop.f32.mrf.mxu0
    %2283 = vdwg.mxu0
    %v2284 = vmul.f32 %v2278, 0.5
    %v2285 = vmul.f32 %v2280, 0.5
    %v2286 = vtanh.pop %v2284
    %v2287 = vtanh.pop %v2285
    %v2288 = vadd.f32 %v2286, 1.0
    %v2289 = vadd.f32 %v2287, 1.0
    %v2290 = vmul.f32 %v2288, 0.5
    %v2291 = vmul.f32 %v2289, 0.5
    %v2292 = vpack.c.bf16 %v2290, %v2290
    %v2293 = vpack.c.bf16 %v2291, %v2291
    %v2296 = vunpack.c.l.b16 %v2292
    %v2297 = vunpack.c.l.b16 %v2293
    %v2298 = vpack.c.b16 %v2297, %v2296
    %2300 = vst [vmem:[#allocation14 + $0x48] sm:$0xff] %v2298
    %2301 = vmatprep.subr.bf16.mxu0 %v1672
    %2302 = vmatpush1.bf16.msra.mxu0 %v1671
    %2303 = vmatprep.subr.bf16.mxu0 %v1670
    %2304 = vmatpush1.bf16.msra.mxu0 %v1669
    %2305 = vmatprep.subr.bf16.mxu0 %v1668
    %2306 = vmatpush1.bf16.msra.mxu0 %v1667
    %2307 = vmatprep.subr.bf16.mxu0 %v1666
    %2308 = vmatpush1.bf16.msra.mxu0 %v1665
    %2309 = vmatprep.subr.bf16.mxu0 %v1664
    %2310 = vmatpush1.bf16.msra.mxu0 %v1663
    %2311 = vmatprep.subr.bf16.mxu0 %v1662
    %2312 = vmatpush1.bf16.msra.mxu0 %v1661
    %2313 = vmatprep.subr.bf16.mxu0 %v1660
    %2314 = vmatpush1.bf16.msra.mxu0 %v1659
    %2315 = vmatprep.subr.bf16.mxu0 %v1658
    %2316 = vmatpush1.bf16.msra.mxu0 %v1657
    %2317 = vmatprep.subr.bf16.mxu0 %v1688
    %2318 = vmatpush2.bf16.msra.mxu0 %v1687
    %2319 = vmatprep.subr.bf16.mxu0 %v1686
    %2320 = vmatpush2.bf16.msra.mxu0 %v1685
    %2321 = vmatprep.subr.bf16.mxu0 %v1684
    %2322 = vmatpush2.bf16.msra.mxu0 %v1683
    %2323 = vmatprep.subr.bf16.mxu0 %v1682
    %2324 = vmatpush2.bf16.msra.mxu0 %v1681
    %2325 = vmatprep.subr.bf16.mxu0 %v1680
    %2326 = vmatpush2.bf16.msra.mxu0 %v1679
    %2327 = vmatprep.subr.bf16.mxu0 %v1678
    %2328 = vmatpush2.bf16.msra.mxu0 %v1677
    %2329 = vmatprep.subr.bf16.mxu0 %v1676
    %2330 = vmatpush2.bf16.msra.mxu0 %v1675
    %2331 = vmatprep.subr.bf16.mxu0 %v1674
    %2332 = vmatpush2.bf16.msra.mxu0 %v1673
    %2333 = vmatprep.mubr.bf16.mxu0 %v1471
    %2334 = vmatmul.mubr.bf16.gmra.mxu0 %v1470
    %v2335 = vpop.f32.mrf.mxu0
    %v2336 = vadd.f32 %v1554, %v2335
    %v2337 = vpop.f32.mrf.mxu0
    %v2338 = vadd.f32 %v1558, %v2337
    %v2339 = vpop.f32.mrf.mxu0
    %v2340 = vpop.f32.mrf.mxu0
    %2341 = vdwg.mxu0
    %v2342 = vmul.f32 %v2336, 0.5
    %v2343 = vmul.f32 %v2338, 0.5
    %v2344 = vtanh.pop %v2342
    %v2345 = vtanh.pop %v2343
    %v2346 = vadd.f32 %v2344, 1.0
    %v2347 = vadd.f32 %v2345, 1.0
    %v2348 = vmul.f32 %v2346, 0.5
    %v2349 = vmul.f32 %v2347, 0.5
    %v2350 = vpack.c.bf16 %v2348, %v2348
    %v2351 = vpack.c.bf16 %v2349, %v2349
    %v2354 = vunpack.c.l.b16 %v2350
    %v2355 = vunpack.c.l.b16 %v2351
    %v2356 = vpack.c.b16 %v2355, %v2354
    %2358 = vst [vmem:[#allocation14 + $0x50] sm:$0xff] %v2356
    %2359 = vmatprep.subr.bf16.mxu0 %v1672
    %2360 = vmatpush1.bf16.msra.mxu0 %v1671
    %2361 = vmatprep.subr.bf16.mxu0 %v1670
    %2362 = vmatpush1.bf16.msra.mxu0 %v1669
    %2363 = vmatprep.subr.bf16.mxu0 %v1668
    %2364 = vmatpush1.bf16.msra.mxu0 %v1667
    %2365 = vmatprep.subr.bf16.mxu0 %v1666
    %2366 = vmatpush1.bf16.msra.mxu0 %v1665
    %2367 = vmatprep.subr.bf16.mxu0 %v1664
    %2368 = vmatpush1.bf16.msra.mxu0 %v1663
    %2369 = vmatprep.subr.bf16.mxu0 %v1662
    %2370 = vmatpush1.bf16.msra.mxu0 %v1661
    %2371 = vmatprep.subr.bf16.mxu0 %v1660
    %2372 = vmatpush1.bf16.msra.mxu0 %v1659
    %2373 = vmatprep.subr.bf16.mxu0 %v1658
    %2374 = vmatpush1.bf16.msra.mxu0 %v1657
    %2375 = vmatprep.subr.bf16.mxu0 %v1688
    %2376 = vmatpush2.bf16.msra.mxu0 %v1687
    %2377 = vmatprep.subr.bf16.mxu0 %v1686
    %2378 = vmatpush2.bf16.msra.mxu0 %v1685
    %2379 = vmatprep.subr.bf16.mxu0 %v1684
    %2380 = vmatpush2.bf16.msra.mxu0 %v1683
    %2381 = vmatprep.subr.bf16.mxu0 %v1682
    %2382 = vmatpush2.bf16.msra.mxu0 %v1681
    %2383 = vmatprep.subr.bf16.mxu0 %v1680
    %2384 = vmatpush2.bf16.msra.mxu0 %v1679
    %2385 = vmatprep.subr.bf16.mxu0 %v1678
    %2386 = vmatpush2.bf16.msra.mxu0 %v1677
    %2387 = vmatprep.subr.bf16.mxu0 %v1676
    %2388 = vmatpush2.bf16.msra.mxu0 %v1675
    %2389 = vmatprep.subr.bf16.mxu0 %v1674
    %2390 = vmatpush2.bf16.msra.mxu0 %v1673
    %2391 = vmatprep.mubr.bf16.mxu0 %v1515
    %2392 = vmatmul.mubr.bf16.gmra.mxu0 %v1471
    %v2393 = vpop.f32.mrf.mxu0
    %v2394 = vadd.f32 %v1554, %v2393
    %v2395 = vpop.f32.mrf.mxu0
    %v2396 = vadd.f32 %v1558, %v2395
    %v2397 = vpop.f32.mrf.mxu0
    %v2398 = vpop.f32.mrf.mxu0
    %2399 = vdwg.mxu0
    %v2400 = vmul.f32 %v2394, 0.5
    %v2401 = vmul.f32 %v2396, 0.5
    %v2402 = vtanh.pop %v2400
    %v2403 = vtanh.pop %v2401
    %v2404 = vadd.f32 %v2402, 1.0
    %v2405 = vadd.f32 %v2403, 1.0
    %v2406 = vmul.f32 %v2404, 0.5
    %v2407 = vmul.f32 %v2405, 0.5
    %v2408 = vpack.c.bf16 %v2406, %v2406
    %v2409 = vpack.c.bf16 %v2407, %v2407
    %v2412 = vunpack.c.l.b16 %v2408
    %v2413 = vunpack.c.l.b16 %v2409
    %v2414 = vpack.c.b16 %v2413, %v2412
    %2416 = vst [vmem:[#allocation14 + $0x58] sm:$0xff] %v2414
    %2417 = vmatprep.subr.bf16.mxu0 %v1672
    %2418 = vmatpush1.bf16.msra.mxu0 %v1671
    %2419 = vmatprep.subr.bf16.mxu0 %v1670
    %2420 = vmatpush1.bf16.msra.mxu0 %v1669
    %2421 = vmatprep.subr.bf16.mxu0 %v1668
    %2422 = vmatpush1.bf16.msra.mxu0 %v1667
    %2423 = vmatprep.subr.bf16.mxu0 %v1666
    %2424 = vmatpush1.bf16.msra.mxu0 %v1665
    %2425 = vmatprep.subr.bf16.mxu0 %v1664
    %2426 = vmatpush1.bf16.msra.mxu0 %v1663
    %2427 = vmatprep.subr.bf16.mxu0 %v1662
    %2428 = vmatpush1.bf16.msra.mxu0 %v1661
    %2429 = vmatprep.subr.bf16.mxu0 %v1660
    %2430 = vmatpush1.bf16.msra.mxu0 %v1659
    %2431 = vmatprep.subr.bf16.mxu0 %v1658
    %2432 = vmatpush1.bf16.msra.mxu0 %v1657
    %2433 = vmatprep.subr.bf16.mxu0 %v1688
    %2434 = vmatpush2.bf16.msra.mxu0 %v1687
    %2435 = vmatprep.subr.bf16.mxu0 %v1686
    %2436 = vmatpush2.bf16.msra.mxu0 %v1685
    %2437 = vmatprep.subr.bf16.mxu0 %v1684
    %2438 = vmatpush2.bf16.msra.mxu0 %v1683
    %2439 = vmatprep.subr.bf16.mxu0 %v1682
    %2440 = vmatpush2.bf16.msra.mxu0 %v1681
    %2441 = vmatprep.subr.bf16.mxu0 %v1680
    %2442 = vmatpush2.bf16.msra.mxu0 %v1679
    %2443 = vmatprep.subr.bf16.mxu0 %v1678
    %2444 = vmatpush2.bf16.msra.mxu0 %v1677
    %2445 = vmatprep.subr.bf16.mxu0 %v1676
    %2446 = vmatpush2.bf16.msra.mxu0 %v1675
    %2447 = vmatprep.subr.bf16.mxu0 %v1674
    %2448 = vmatpush2.bf16.msra.mxu0 %v1673
    %2449 = vmatprep.mubr.bf16.mxu0 %v1516
    %2450 = vmatmul.mubr.bf16.gmra.mxu0 %v1515
    %v2451 = vpop.f32.mrf.mxu0
    %v2452 = vadd.f32 %v1554, %v2451
    %v2453 = vpop.f32.mrf.mxu0
    %v2454 = vadd.f32 %v1558, %v2453
    %v2455 = vpop.f32.mrf.mxu0
    %v2456 = vpop.f32.mrf.mxu0
    %2457 = vdwg.mxu0
    %v2458 = vmul.f32 %v2452, 0.5
    %v2459 = vmul.f32 %v2454, 0.5
    %v2460 = vtanh.pop %v2458
    %v2461 = vtanh.pop %v2459
    %v2462 = vadd.f32 %v2460, 1.0
    %v2463 = vadd.f32 %v2461, 1.0
    %v2464 = vmul.f32 %v2462, 0.5
    %v2465 = vmul.f32 %v2463, 0.5
    %v2466 = vpack.c.bf16 %v2464, %v2464
    %v2467 = vpack.c.bf16 %v2465, %v2465
    %v2470 = vunpack.c.l.b16 %v2466
    %v2471 = vunpack.c.l.b16 %v2467
    %v2472 = vpack.c.b16 %v2471, %v2470
    %2474 = vst [vmem:[#allocation14 + $0x60] sm:$0xff] %v2472
    %2475 = vmatprep.subr.bf16.mxu0 %v1672
    %2476 = vmatpush1.bf16.msra.mxu0 %v1671
    %2477 = vmatprep.subr.bf16.mxu0 %v1670
    %2478 = vmatpush1.bf16.msra.mxu0 %v1669
    %2479 = vmatprep.subr.bf16.mxu0 %v1668
    %2480 = vmatpush1.bf16.msra.mxu0 %v1667
    %2481 = vmatprep.subr.bf16.mxu0 %v1666
    %2482 = vmatpush1.bf16.msra.mxu0 %v1665
    %2483 = vmatprep.subr.bf16.mxu0 %v1664
    %2484 = vmatpush1.bf16.msra.mxu0 %v1663
    %2485 = vmatprep.subr.bf16.mxu0 %v1662
    %2486 = vmatpush1.bf16.msra.mxu0 %v1661
    %2487 = vmatprep.subr.bf16.mxu0 %v1660
    %2488 = vmatpush1.bf16.msra.mxu0 %v1659
    %2489 = vmatprep.subr.bf16.mxu0 %v1658
    %2490 = vmatpush1.bf16.msra.mxu0 %v1657
    %2491 = vmatprep.subr.bf16.mxu0 %v1688
    %2492 = vmatpush2.bf16.msra.mxu0 %v1687
    %2493 = vmatprep.subr.bf16.mxu0 %v1686
    %2494 = vmatpush2.bf16.msra.mxu0 %v1685
    %2495 = vmatprep.subr.bf16.mxu0 %v1684
    %2496 = vmatpush2.bf16.msra.mxu0 %v1683
    %2497 = vmatprep.subr.bf16.mxu0 %v1682
    %2498 = vmatpush2.bf16.msra.mxu0 %v1681
    %2499 = vmatprep.subr.bf16.mxu0 %v1680
    %2500 = vmatpush2.bf16.msra.mxu0 %v1679
    %2501 = vmatprep.subr.bf16.mxu0 %v1678
    %2502 = vmatpush2.bf16.msra.mxu0 %v1677
    %2503 = vmatprep.subr.bf16.mxu0 %v1676
    %2504 = vmatpush2.bf16.msra.mxu0 %v1675
    %2505 = vmatprep.subr.bf16.mxu0 %v1674
    %2506 = vmatpush2.bf16.msra.mxu0 %v1673
    %2507 = vmatprep.mubr.bf16.mxu0 0
    %2508 = vmatmul.mubr.bf16.gmra.mxu0 %v1516
    %v2509 = vpop.f32.mrf.mxu0
    %v2510 = vadd.f32 %v1554, %v2509
    %v2511 = vpop.f32.mrf.mxu0
    %v2512 = vadd.f32 %v1558, %v2511
    %v2513 = vpop.f32.mrf.mxu0
    %v2514 = vpop.f32.mrf.mxu0
    %2515 = vdwg.mxu0
    %v2516 = vmul.f32 %v2510, 0.5
    %v2517 = vmul.f32 %v2512, 0.5
    %v2518 = vtanh.pop %v2516
    %v2519 = vtanh.pop %v2517
    %v2520 = vadd.f32 %v2518, 1.0
    %v2521 = vadd.f32 %v2519, 1.0
    %v2522 = vmul.f32 %v2520, 0.5
    %v2523 = vmul.f32 %v2521, 0.5
    %v2524 = vpack.c.bf16 %v2522, %v2522
    %v2525 = vpack.c.bf16 %v2523, %v2523
    %v2528 = vunpack.c.l.b16 %v2524
    %v2529 = vunpack.c.l.b16 %v2525
    %v2530 = vpack.c.b16 %v2529, %v2528
    %2532 = vst [vmem:[#allocation14 + $0x68] sm:$0xff] %v2530
    // Predicated region
    $region74: #{tpu_custom_call.1} parent=1 // pred_check
      _
    $region75: #{tpu_custom_call.1} parent=1 // pred_check_branch
      %2534 = sbr.rel (0) target = $region77
    $region76: #{tpu_custom_call.1} parent=1 // pred_region
      %s2536 = ssub.s32 1792, 1792
      %2537 = vsyncadd [#allocation4], %s2536
      %s2539 = sshll.u32 [#allocation14], 4
      %s2540 = int_to_ptr.vmem [resolvable:$true] %s2539
      %2542 = dma.vmem_to_hbm [thread:$0]  %s2540, 1792, %s11, [#allocation4]
    $region77: #{tpu_custom_call.1} parent=1 // pred_fallthru
      _
    // Predicated region
    $region78: #{tpu_custom_call.1} parent=1 // pred_check
      _
    $region79: #{tpu_custom_call.1} parent=1 // pred_check_branch
      %2544 = sbr.rel (0) target = $region81
    $region80: #{tpu_custom_call.1} parent=1 // pred_region
      %2545 = dma.done [#allocation4], 1792
    $region81: #{tpu_custom_call.1} parent=1 // pred_fallthru
      _
    %2546 = vsyncpa [#allocation3], 1
    %2547 = vsyncpa [#allocation6], 1
    %2548 = vsyncpa [#allocation9], 1
    %2549 = vsyncpa [#allocation12], 1
    %2550 = vsyncpa [#allocation4], 1

</llo_original>
